<compile_context>
chip_gen: v5e
topology: v5e:2x2
jax: 0.10.0
libtpu: 0.0.40
codegen_flags: <defaults>
</compile_context>

<pallas_src>
import math

import jax
import jax.numpy as jnp
from jax import lax
from jax.experimental import pallas as pl
from jax.experimental.pallas import tpu as pltpu


# ---------------------------------------------------------------------------
# Model configuration (small, consistent with the module constructor)
# ---------------------------------------------------------------------------
TRANSFORMER_LAYERS = 2
EMB_SIZE = 32          # == d_model (required for the torch code to be shape-valid)
D_MODEL = 32
N_HEAD = 4
HEAD_DIM = D_MODEL // N_HEAD
DIM_FF = 2048          # nn.TransformerEncoderLayer default dim_feedforward
FF_TILE = 512          # FFN chunk over DIM_FF (4 chunks)
MAX_LEN = 16
NUM_CLASSES = 8
BATCH = 2
SEQ = 8
LN_EPS = 1e-5


# ---------------------------------------------------------------------------
# Fused kernel (one grid step == one encoder layer)
# ---------------------------------------------------------------------------
def _layernorm(x, g, b):
    mu = jnp.mean(x, axis=-1, keepdims=True)
    var = jnp.mean((x - mu) ** 2, axis=-1, keepdims=True)
    return (x - mu) * lax.rsqrt(var + LN_EPS) * g + b


def fused_encoder_kernel(x_ref, pe_ref, mask_ref,
                         wqkv_ref, bqkv_ref, wo_ref, bo_ref,
                         g1_ref, be1_ref, w1_ref, b1_ref, w2_ref, b2_ref,
                         g2_ref, be2_ref, wc_ref, bc_ref,
                         o_ref, x_scr):
    """One transformer encoder layer per grid step; activation carried in VMEM scratch."""
    l = pl.program_id(0)
    N, D = x_ref.shape                 # N = B * S, flattened rows
    B, S = mask_ref.shape
    H, hd = N_HEAD, HEAD_DIM
    scale = jnp.float32(1.0 / math.sqrt(hd))

    # ---- step 0: positional-encoding add into the persistent activation scratch ----
    # TODO(synk): nn.Dropout(p=0.1) layers are treated as identity (eval mode).
    @pl.when(l == 0)
    def _():
        x0 = x_ref[...].reshape(B, S, D) + pe_ref[0:S, :][None, :, :]
        x_scr[...] = x0.reshape(N, D)

    x = x_scr[...]                                       # (N, D) f32

    # Additive key-padding bias, replicated per head (row n = h*B + b).  Kept f32.
    key_bias = jnp.broadcast_to(mask_ref[...][None, :, :], (H, B, S))
    key_bias = key_bias.reshape(H * B, 1, S) * jnp.float32(-1e30)   # (H*B, 1, S)

    # ---- fused QKV projection: (N, D) @ (D, 3D), bf16 operands, f32 acc ----
    qkv = jnp.dot(x.astype(jnp.bfloat16), wqkv_ref[...],
                  preferred_element_type=jnp.float32) + bqkv_ref[...]    # (N, 3D)
    q = qkv[:, 0 * D:1 * D].reshape(B, S, D)
    k = qkv[:, 1 * D:2 * D].reshape(B, S, D)
    v = qkv[:, 2 * D:3 * D].reshape(B, S, D)

    # ---- head-batched attention: heads stacked into the leading batch dim ----
    def split_heads(t):                                  # (B, S, D) -> (H*B, S, hd)
        return jnp.concatenate(
            [t[:, :, h * hd:(h + 1) * hd] for h in range(H)], axis=0)

    qh = split_heads(q).astype(jnp.bfloat16)
    kh = split_heads(k).astype(jnp.bfloat16)
    vh = split_heads(v).astype(jnp.bfloat16)

    s = jnp.einsum('nqd,nkd->nqk', qh, kh,
                   preferred_element_type=jnp.float32) * scale          # (H*B, S, S)
    s = s + key_bias
    m = jnp.max(s, axis=-1, keepdims=True)
    p = jnp.exp(s - m)
    denom = jnp.sum(p, axis=-1, keepdims=True)
    p = p * pl.reciprocal(denom, approx=True)            # softmax (f32, EUP recip)

    ctx = jnp.einsum('nqk,nkd->nqd', p.astype(jnp.bfloat16), vh,
                     preferred_element_type=jnp.float32)                # (H*B, S, hd)
    ctx = jnp.concatenate(
        [ctx[h * B:(h + 1) * B] for h in range(H)], axis=-1)            # (B, S, D)
    ctx = ctx.reshape(N, D)

    # single fused out-projection
    attn = jnp.dot(ctx.astype(jnp.bfloat16), wo_ref[...],
                   preferred_element_type=jnp.float32) + bo_ref[...]

    # ---- residual + LayerNorm1 (post-norm, f32) ----
    y = _layernorm(x + attn, g1_ref[...], be1_ref[...])

    # ---- feed-forward (ReLU), tiled over DIM_FF to keep the intermediate small ----
    y_bf = y.astype(jnp.bfloat16)
    h2 = jnp.zeros((N, D), jnp.float32)
    for f0 in range(0, DIM_FF, FF_TILE):                 # static unroll, 4 chunks
        h1 = jnp.dot(y_bf, w1_ref[:, f0:f0 + FF_TILE],
                     preferred_element_type=jnp.float32)                # (N, FF_TILE)
        h1 = jnp.maximum(h1 + b1_ref[:, f0:f0 + FF_TILE], 0.0)
        h2 = h2 + jnp.dot(h1.astype(jnp.bfloat16), w2_ref[f0:f0 + FF_TILE, :],
                          preferred_element_type=jnp.float32)           # (N, D)
    h2 = h2 + b2_ref[...]

    # ---- residual + LayerNorm2; write back the carried activation ----
    x_new = _layernorm(y + h2, g2_ref[...], be2_ref[...])
    x_scr[...] = x_new

    # ---- last layer: mean pool over S (includes padded positions) + classifier ----
    @pl.when(l == pl.num_programs(0) - 1)
    def _():
        pooled = jnp.mean(x_new.reshape(B, S, D), axis=1)               # (B, D)
        logits = jnp.dot(pooled.astype(jnp.bfloat16), wc_ref[...],
                         preferred_element_type=jnp.float32) + bc_ref[...]
        o_ref[...] = logits.astype(o_ref.dtype)


# ---------------------------------------------------------------------------
# Wrapper: one fused pallas_call with a layer grid
# ---------------------------------------------------------------------------
@jax.jit
def transformer_encoder_forward(embeddings, attention_mask, pe, params,
                                cls_w_t, cls_b2):
    B, S, D = embeddings.shape
    N = B * S
    L = TRANSFORMER_LAYERS
    C = cls_w_t.shape[-1]

    x2 = embeddings.reshape(N, D)                        # lane-dense 2-D rows
    mask_f = attention_mask.astype(jnp.float32)          # 1.0 == padded key

    args = (x2, pe, mask_f,
            params['wqkv'], params['bqkv'], params['wo'], params['bo'],
            params['ln1_g'], params['ln1_b'],
            params['w1'], params['b1'], params['w2'], params['b2'],
            params['ln2_g'], params['ln2_b'],
            cls_w_t, cls_b2)

    def const_spec(a):
        # whole array resident across all grid steps (block index never changes)
        nd = a.ndim
        return pl.BlockSpec(a.shape, lambda l, _nd=nd: (0,) * _nd)

    def layer_spec(a):
        # stacked (L, ...) param: fetch layer l's slice, leading dim squeezed
        tail = a.shape[1:]
        nd = len(tail)
        return pl.BlockSpec((None,) + tail, lambda l, _nd=nd: (l,) + (0,) * _nd)

    in_specs = [
        const_spec(x2), const_spec(pe), const_spec(mask_f),
        layer_spec(params['wqkv']), layer_spec(params['bqkv']),
        layer_spec(params['wo']), layer_spec(params['bo']),
        layer_spec(params['ln1_g']), layer_spec(params['ln1_b']),
        layer_spec(params['w1']), layer_spec(params['b1']),
        layer_spec(params['w2']), layer_spec(params['b2']),
        layer_spec(params['ln2_g']), layer_spec(params['ln2_b']),
        const_spec(cls_w_t), const_spec(cls_b2),
    ]

    flops_layer = (2 * N * D * 3 * D                       # fused QKV
                   + 2 * 2 * B * N_HEAD * S * S * HEAD_DIM  # scores + context
                   + 2 * N * D * D                          # out projection
                   + 2 * 2 * N * D * DIM_FF)                # FFN
    cost = pl.CostEstimate(
        flops=L * flops_layer + 2 * B * D * C,
        transcendentals=L * B * N_HEAD * S * S,
        bytes_accessed=sum(int(a.size) * a.dtype.itemsize for a in args) + B * C * 4,
    )

    return pl.pallas_call(
        fused_encoder_kernel,
        out_shape=jax.ShapeDtypeStruct((B, C), jnp.float32),
        grid_spec=pltpu.PrefetchScalarGridSpec(
            num_scalar_prefetch=0,
            grid=(L,),
            in_specs=in_specs,
            out_specs=pl.BlockSpec((B, C), lambda l: (0, 0)),
            scratch_shapes=[pltpu.VMEM((N, D), jnp.float32)],   # carried activation
        ),
        compiler_params=pltpu.CompilerParams(
            dimension_semantics=("arbitrary",),
            vmem_limit_bytes=32 * 1024 * 1024,
        ),
        cost_estimate=cost,
    )(*args)


# ---------------------------------------------------------------------------
# Deterministic parameter construction (torch-style layout, then repacked)
# ---------------------------------------------------------------------------
def make_positional_encoding(hidden_size, max_len):
    position = jnp.arange(max_len, dtype=jnp.float32)[:, None]
    div_term = jnp.power(
        10000.0, -jnp.arange(0, hidden_size, 2, dtype=jnp.float32) / hidden_size)
    pe = jnp.zeros((max_len, hidden_size), dtype=jnp.float32)
    pe = pe.at[:, 0::2].set(jnp.sin(position * div_term))
    pe = pe.at[:, 1::2].set(jnp.cos(position * div_term))
    return pe


def make_layer_params(key):
    ks = jax.random.split(key, 7)
    s = 0.05
    return {
        'wq': jax.random.normal(ks[0], (D_MODEL, D_MODEL), jnp.float32) * s,
        'wk': jax.random.normal(ks[1], (D_MODEL, D_MODEL), jnp.float32) * s,
        'wv': jax.random.normal(ks[2], (D_MODEL, D_MODEL), jnp.float32) * s,
        'bq': jnp.zeros((D_MODEL,), jnp.float32),
        'bk': jnp.zeros((D_MODEL,), jnp.float32),
        'bv': jnp.zeros((D_MODEL,), jnp.float32),
        'wo': jax.random.normal(ks[3], (D_MODEL, D_MODEL), jnp.float32) * s,
        'bo': jax.random.normal(ks[4], (D_MODEL,), jnp.float32) * s,
        'ln1_g': jnp.ones((D_MODEL,), jnp.float32),
        'ln1_b': jnp.zeros((D_MODEL,), jnp.float32),
        'w1': jax.random.normal(ks[5], (DIM_FF, D_MODEL), jnp.float32) * s,
        'b1': jnp.zeros((DIM_FF,), jnp.float32),
        'w2': jax.random.normal(ks[6], (D_MODEL, DIM_FF), jnp.float32) * s,
        'b2': jnp.zeros((D_MODEL,), jnp.float32),
        'ln2_g': jnp.ones((D_MODEL,), jnp.float32),
        'ln2_b': jnp.zeros((D_MODEL,), jnp.float32),
    }


def stack_layer_params(layers):
    """Repack per-layer torch-layout params into stacked, kernel-friendly arrays.

    Matmul weights are pre-transposed to (in, out) and cast to bf16 (f32 MXU acc),
    biases / LayerNorm params stay f32 and are reshaped to lane-aligned (1, D) rows.
    """
    bf16, f32 = jnp.bfloat16, jnp.float32

    def stk(fn, dtype):
        return jnp.stack([fn(p) for p in layers]).astype(dtype)

    return {
        # fused QKV: (L, D, 3D) bf16, bias (L, 1, 3D) f32
        'wqkv': stk(lambda p: jnp.concatenate(
            [p['wq'].T, p['wk'].T, p['wv'].T], axis=1), bf16),
        'bqkv': stk(lambda p: jnp.concatenate(
            [p['bq'], p['bk'], p['bv']])[None, :], f32),
        'wo':   stk(lambda p: p['wo'].T, bf16),          # (L, D, D)
        'bo':   stk(lambda p: p['bo'][None, :], f32),    # (L, 1, D)
        'ln1_g': stk(lambda p: p['ln1_g'][None, :], f32),
        'ln1_b': stk(lambda p: p['ln1_b'][None, :], f32),
        'w1':   stk(lambda p: p['w1'].T, bf16),          # (L, D, F)
        'b1':   stk(lambda p: p['b1'][None, :], f32),    # (L, 1, F)
        'w2':   stk(lambda p: p['w2'].T, bf16),          # (L, F, D)
        'b2':   stk(lambda p: p['b2'][None, :], f32),    # (L, 1, D)
        'ln2_g': stk(lambda p: p['ln2_g'][None, :], f32),
        'ln2_b': stk(lambda p: p['ln2_b'][None, :], f32),
    }


if __name__ == "__main__":
    root = jax.random.PRNGKey(0)
    k_emb, k_cls, *k_layers = jax.random.split(root, 2 + TRANSFORMER_LAYERS)

    # Inputs: embeddings (B, S, emb_size), attention_mask (B, S) with 1 = padded.
    embeddings = jax.random.normal(k_emb, (BATCH, SEQ, EMB_SIZE), jnp.float32)
    attention_mask = jnp.zeros((BATCH, SEQ), jnp.float32)
    attention_mask = attention_mask.at[1, 6:].set(1.0)   # pad last 2 tokens of row 1

    pe = make_positional_encoding(EMB_SIZE, MAX_LEN)      # (MAX_LEN, D), sliced in-kernel
    layer_params = [make_layer_params(k) for k in k_layers]
    params = stack_layer_params(layer_params)

    cls_w = jax.random.normal(k_cls, (NUM_CLASSES, D_MODEL), jnp.float32) * 0.05
    cls_b = jnp.zeros((NUM_CLASSES,), jnp.float32)
    cls_w_t = cls_w.T.astype(jnp.bfloat16)               # (D, C), bf16 for MXU
    cls_b2 = cls_b[None, :]                              # (1, C)

    logits = transformer_encoder_forward(
        embeddings, attention_mask, pe, params, cls_w_t, cls_b2)
    logits = jax.block_until_ready(logits)

    assert logits.shape == (BATCH, NUM_CLASSES)
    assert bool(jnp.all(jnp.isfinite(logits)))
    print("KERNEL_OK")
</pallas_src>

<mosaic_0001>
module attributes {stable_mosaic.version = 11 : i64} {
  func.func @fused_encoder_kernel(%arg0: i32, %arg1: memref<16x32xf32, #tpu.memory_space<vmem>>, %arg2: memref<16x32xf32, #tpu.memory_space<vmem>>, %arg3: memref<2x8xf32, #tpu.memory_space<vmem>>, %arg4: memref<1x32x96xbf16, #tpu.memory_space<vmem>>, %arg5: memref<1x1x96xf32, #tpu.memory_space<vmem>>, %arg6: memref<1x32x32xbf16, #tpu.memory_space<vmem>>, %arg7: memref<1x1x32xf32, #tpu.memory_space<vmem>>, %arg8: memref<1x1x32xf32, #tpu.memory_space<vmem>>, %arg9: memref<1x1x32xf32, #tpu.memory_space<vmem>>, %arg10: memref<1x32x2048xbf16, #tpu.memory_space<vmem>>, %arg11: memref<1x1x2048xf32, #tpu.memory_space<vmem>>, %arg12: memref<1x2048x32xbf16, #tpu.memory_space<vmem>>, %arg13: memref<1x1x32xf32, #tpu.memory_space<vmem>>, %arg14: memref<1x1x32xf32, #tpu.memory_space<vmem>>, %arg15: memref<1x1x32xf32, #tpu.memory_space<vmem>>, %arg16: memref<32x8xbf16, #tpu.memory_space<vmem>>, %arg17: memref<1x8xf32, #tpu.memory_space<vmem>>, %arg18: memref<2x8xf32, #tpu.memory_space<vmem>>, %arg19: memref<16x32xf32, #tpu.memory_space<vmem>>) attributes {dimension_semantics = [#tpu.dimension_semantics<arbitrary>], iteration_bounds = array<i64: 2>, scalar_prefetch = 0 : i64, scratch_operands = 1 : i64, tpu.core_type = #tpu.core_type<tc>, window_params = [{pipeline_mode = #tpu.pipeline_mode<synchronous>, transform_indices = @transform_0, window_bounds = array<i64: 16, 32>}, {pipeline_mode = #tpu.pipeline_mode<synchronous>, transform_indices = @transform_1, window_bounds = array<i64: 16, 32>}, {pipeline_mode = #tpu.pipeline_mode<synchronous>, transform_indices = @transform_2, window_bounds = array<i64: 2, 8>}, {transform_indices = @transform_3, window_bounds = array<i64: 1, 32, 96>}, {transform_indices = @transform_4, window_bounds = array<i64: 1, 1, 96>}, {transform_indices = @transform_5, window_bounds = array<i64: 1, 32, 32>}, {transform_indices = @transform_6, window_bounds = array<i64: 1, 1, 32>}, {transform_indices = @transform_7, window_bounds = array<i64: 1, 1, 32>}, {transform_indices = @transform_8, window_bounds = array<i64: 1, 1, 32>}, {transform_indices = @transform_9, window_bounds = array<i64: 1, 32, 2048>}, {transform_indices = @transform_10, window_bounds = array<i64: 1, 1, 2048>}, {transform_indices = @transform_11, window_bounds = array<i64: 1, 2048, 32>}, {transform_indices = @transform_12, window_bounds = array<i64: 1, 1, 32>}, {transform_indices = @transform_13, window_bounds = array<i64: 1, 1, 32>}, {transform_indices = @transform_14, window_bounds = array<i64: 1, 1, 32>}, {pipeline_mode = #tpu.pipeline_mode<synchronous>, transform_indices = @transform_15, window_bounds = array<i64: 32, 8>}, {pipeline_mode = #tpu.pipeline_mode<synchronous>, transform_indices = @transform_16, window_bounds = array<i64: 1, 8>}, {pipeline_mode = #tpu.pipeline_mode<synchronous>, transform_indices = @transform_17, window_bounds = array<i64: 2, 8>}]} {
    %c0_i32 = arith.constant 0 : i32
    %0 = arith.cmpi eq, %arg0, %c0_i32 : i32
    %1 = arith.extui %0 : i1 to i32
    %c0_i32_0 = arith.constant 0 : i32
    %2 = arith.cmpi ne, %1, %c0_i32_0 : i32
    scf.if %2 {
      %c0_97 = arith.constant 0 : index
      %c0_98 = arith.constant 0 : index
      %194 = vector.load %arg1[%c0_97, %c0_98] : memref<16x32xf32, #tpu.memory_space<vmem>>, vector<16x32xf32>
      %195 = vector.shape_cast %194 : vector<16x32xf32> to vector<2x8x32xf32>
      %c0_99 = arith.constant 0 : index
      %c0_100 = arith.constant 0 : index
      %196 = vector.load %arg2[%c0_99, %c0_100] : memref<16x32xf32, #tpu.memory_space<vmem>>, vector<8x32xf32>
      %197 = vector.shape_cast %196 : vector<8x32xf32> to vector<1x8x32xf32>
      %198 = vector.broadcast %197 : vector<1x8x32xf32> to vector<2x8x32xf32>
      %199 = arith.addf %195, %198 : vector<2x8x32xf32>
      %200 = vector.shape_cast %199 : vector<2x8x32xf32> to vector<16x32xf32>
      %c0_101 = arith.constant 0 : index
      %c0_102 = arith.constant 0 : index
      %201 = vector.load %arg19[%c0_101, %c0_102] : memref<16x32xf32, #tpu.memory_space<vmem>>, vector<16x32xf32>
      tpu.vector_store %arg19[%c0_101, %c0_102], %200 {strides = array<i32>} : memref<16x32xf32, #tpu.memory_space<vmem>>, vector<16x32xf32>,
    } else {
    }
    %c0 = arith.constant 0 : index
    %c0_1 = arith.constant 0 : index
    %3 = vector.load %arg19[%c0, %c0_1] : memref<16x32xf32, #tpu.memory_space<vmem>>, vector<16x32xf32>
    %c0_2 = arith.constant 0 : index
    %c0_3 = arith.constant 0 : index
    %4 = vector.load %arg3[%c0_2, %c0_3] : memref<2x8xf32, #tpu.memory_space<vmem>>, vector<2x8xf32>
    %5 = vector.shape_cast %4 : vector<2x8xf32> to vector<1x2x8xf32>
    %6 = vector.shape_cast %5 : vector<1x2x8xf32> to vector<1x2x8xf32>
    %7 = vector.broadcast %6 : vector<1x2x8xf32> to vector<4x2x8xf32>
    %8 = vector.shape_cast %7 : vector<4x2x8xf32> to vector<8x1x8xf32>
    %cst = arith.constant -1.000000e+30 : f32
    %9 = vector.broadcast %cst : f32 to vector<8x1x8xf32>
    %10 = arith.mulf %8, %9 : vector<8x1x8xf32>
    %11 = arith.truncf %3 : vector<16x32xf32> to vector<16x32xbf16>
    %c0_4 = arith.constant 0 : index
    %c0_5 = arith.constant 0 : index
    %c0_6 = arith.constant 0 : index
    %12 = vector.load %arg4[%c0_4, %c0_5, %c0_6] : memref<1x32x96xbf16, #tpu.memory_space<vmem>>, vector<1x32x96xbf16>
    %13 = vector.shape_cast %12 : vector<1x32x96xbf16> to vector<32x96xbf16>
    %cst_7 = arith.constant dense<0.000000e+00> : vector<16x96xf32>
    %14 = tpu.matmul %11, %13, %cst_7 {dimension_numbers = #tpu.dot_dimension_numbers<[1], [0], [0], [1], [0, 0, 1, 1], [], []>} : vector<16x32xbf16>, vector<32x96xbf16>, vector<16x96xf32> -> vector<16x96xf32>
    %c0_8 = arith.constant 0 : index
    %c0_9 = arith.constant 0 : index
    %c0_10 = arith.constant 0 : index
    %15 = vector.load %arg5[%c0_8, %c0_9, %c0_10] : memref<1x1x96xf32, #tpu.memory_space<vmem>>, vector<1x1x96xf32>
    %16 = vector.shape_cast %15 : vector<1x1x96xf32> to vector<1x96xf32>
    %17 = vector.broadcast %16 : vector<1x96xf32> to vector<16x96xf32>
    %18 = arith.addf %14, %17 : vector<16x96xf32>
    %19 = vector.extract_strided_slice %18 {offsets = [0, 0], sizes = [16, 32], strides = [1, 1]} : vector<16x96xf32> to vector<16x32xf32>
    %20 = vector.shape_cast %19 : vector<16x32xf32> to vector<2x8x32xf32>
    %21 = vector.extract_strided_slice %18 {offsets = [0, 32], sizes = [16, 32], strides = [1, 1]} : vector<16x96xf32> to vector<16x32xf32>
    %22 = vector.shape_cast %21 : vector<16x32xf32> to vector<2x8x32xf32>
    %23 = vector.extract_strided_slice %18 {offsets = [0, 64], sizes = [16, 32], strides = [1, 1]} : vector<16x96xf32> to vector<16x32xf32>
    %24 = vector.shape_cast %23 : vector<16x32xf32> to vector<2x8x32xf32>
    %25 = vector.extract_strided_slice %20 {offsets = [0, 0, 0], sizes = [2, 8, 8], strides = [1, 1, 1]} : vector<2x8x32xf32> to vector<2x8x8xf32>
    %26 = vector.extract_strided_slice %20 {offsets = [0, 0, 8], sizes = [2, 8, 8], strides = [1, 1, 1]} : vector<2x8x32xf32> to vector<2x8x8xf32>
    %27 = vector.extract_strided_slice %20 {offsets = [0, 0, 16], sizes = [2, 8, 8], strides = [1, 1, 1]} : vector<2x8x32xf32> to vector<2x8x8xf32>
    %28 = vector.extract_strided_slice %20 {offsets = [0, 0, 24], sizes = [2, 8, 8], strides = [1, 1, 1]} : vector<2x8x32xf32> to vector<2x8x8xf32>
    %29 = tpu.concatenate %25, %26, %27, %28 in 0 : vector<2x8x8xf32>, vector<2x8x8xf32>, vector<2x8x8xf32>, vector<2x8x8xf32> -> vector<8x8x8xf32>
    %30 = arith.truncf %29 : vector<8x8x8xf32> to vector<8x8x8xbf16>
    %31 = vector.extract_strided_slice %22 {offsets = [0, 0, 0], sizes = [2, 8, 8], strides = [1, 1, 1]} : vector<2x8x32xf32> to vector<2x8x8xf32>
    %32 = vector.extract_strided_slice %22 {offsets = [0, 0, 8], sizes = [2, 8, 8], strides = [1, 1, 1]} : vector<2x8x32xf32> to vector<2x8x8xf32>
    %33 = vector.extract_strided_slice %22 {offsets = [0, 0, 16], sizes = [2, 8, 8], strides = [1, 1, 1]} : vector<2x8x32xf32> to vector<2x8x8xf32>
    %34 = vector.extract_strided_slice %22 {offsets = [0, 0, 24], sizes = [2, 8, 8], strides = [1, 1, 1]} : vector<2x8x32xf32> to vector<2x8x8xf32>
    %35 = tpu.concatenate %31, %32, %33, %34 in 0 : vector<2x8x8xf32>, vector<2x8x8xf32>, vector<2x8x8xf32>, vector<2x8x8xf32> -> vector<8x8x8xf32>
    %36 = arith.truncf %35 : vector<8x8x8xf32> to vector<8x8x8xbf16>
    %37 = vector.extract_strided_slice %24 {offsets = [0, 0, 0], sizes = [2, 8, 8], strides = [1, 1, 1]} : vector<2x8x32xf32> to vector<2x8x8xf32>
    %38 = vector.extract_strided_slice %24 {offsets = [0, 0, 8], sizes = [2, 8, 8], strides = [1, 1, 1]} : vector<2x8x32xf32> to vector<2x8x8xf32>
    %39 = vector.extract_strided_slice %24 {offsets = [0, 0, 16], sizes = [2, 8, 8], strides = [1, 1, 1]} : vector<2x8x32xf32> to vector<2x8x8xf32>
    %40 = vector.extract_strided_slice %24 {offsets = [0, 0, 24], sizes = [2, 8, 8], strides = [1, 1, 1]} : vector<2x8x32xf32> to vector<2x8x8xf32>
    %41 = tpu.concatenate %37, %38, %39, %40 in 0 : vector<2x8x8xf32>, vector<2x8x8xf32>, vector<2x8x8xf32>, vector<2x8x8xf32> -> vector<8x8x8xf32>
    %42 = arith.truncf %41 : vector<8x8x8xf32> to vector<8x8x8xbf16>
    "tpu.trace_start"() <{level = 10 : i32, message = "nqd,nkd->nqk"}> : () -> ()
    %cst_11 = arith.constant dense<0.000000e+00> : vector<8x8x8xf32>
    %43 = tpu.matmul %30, %36, %cst_11 {dimension_numbers = #tpu.dot_dimension_numbers<[2], [2], [1], [1], [0, 0, 0, 1, 1, 1], [0], [0]>} : vector<8x8x8xbf16>, vector<8x8x8xbf16>, vector<8x8x8xf32> -> vector<8x8x8xf32>
    "tpu.trace_stop"() : () -> ()
    %cst_12 = arith.constant 0.353553385 : f32
    %44 = vector.broadcast %cst_12 : f32 to vector<8x8x8xf32>
    %45 = arith.mulf %43, %44 : vector<8x8x8xf32>
    %46 = vector.broadcast %10 : vector<8x1x8xf32> to vector<8x8x8xf32>
    %47 = arith.addf %45, %46 : vector<8x8x8xf32>
    %cst_13 = arith.constant dense<0xFF800000> : vector<8x8xf32>
    %48 = vector.multi_reduction <maximumf>, %47, %cst_13 [2] : vector<8x8x8xf32> to vector<8x8xf32>
    %49 = vector.shape_cast %48 : vector<8x8xf32> to vector<8x8x1xf32>
    %50 = vector.broadcast %49 : vector<8x8x1xf32> to vector<8x8x8xf32>
    %51 = arith.subf %47, %50 : vector<8x8x8xf32>
    %52 = math.exp %51 : vector<8x8x8xf32>
    %cst_14 = arith.constant dense<0.000000e+00> : vector<8x8xf32>
    %53 = vector.multi_reduction <add>, %52, %cst_14 [2] : vector<8x8x8xf32> to vector<8x8xf32>
    %54 = vector.shape_cast %53 : vector<8x8xf32> to vector<8x8x1xf32>
    %55 = tpu.reciprocal %54 {approx = true} : vector<8x8x1xf32> -> vector<8x8x1xf32>
    %56 = vector.broadcast %55 : vector<8x8x1xf32> to vector<8x8x8xf32>
    %57 = arith.mulf %52, %56 : vector<8x8x8xf32>
    %58 = arith.truncf %57 : vector<8x8x8xf32> to vector<8x8x8xbf16>
    "tpu.trace_start"() <{level = 10 : i32, message = "nqk,nkd->nqd"}> : () -> ()
    %cst_15 = arith.constant dense<0.000000e+00> : vector<8x8x8xf32>
    %59 = tpu.matmul %58, %42, %cst_15 {dimension_numbers = #tpu.dot_dimension_numbers<[2], [1], [1], [2], [0, 0, 0, 1, 1, 2], [0], [0]>} : vector<8x8x8xbf16>, vector<8x8x8xbf16>, vector<8x8x8xf32> -> vector<8x8x8xf32>
    "tpu.trace_stop"() : () -> ()
    %60 = vector.extract_strided_slice %59 {offsets = [0, 0, 0], sizes = [2, 8, 8], strides = [1, 1, 1]} : vector<8x8x8xf32> to vector<2x8x8xf32>
    %61 = vector.extract_strided_slice %59 {offsets = [2, 0, 0], sizes = [2, 8, 8], strides = [1, 1, 1]} : vector<8x8x8xf32> to vector<2x8x8xf32>
    %62 = vector.extract_strided_slice %59 {offsets = [4, 0, 0], sizes = [2, 8, 8], strides = [1, 1, 1]} : vector<8x8x8xf32> to vector<2x8x8xf32>
    %63 = vector.extract_strided_slice %59 {offsets = [6, 0, 0], sizes = [2, 8, 8], strides = [1, 1, 1]} : vector<8x8x8xf32> to vector<2x8x8xf32>
    %64 = tpu.concatenate %60, %61, %62, %63 in 2 : vector<2x8x8xf32>, vector<2x8x8xf32>, vector<2x8x8xf32>, vector<2x8x8xf32> -> vector<2x8x32xf32>
    %65 = vector.shape_cast %64 : vector<2x8x32xf32> to vector<16x32xf32>
    %66 = arith.truncf %65 : vector<16x32xf32> to vector<16x32xbf16>
    %c0_16 = arith.constant 0 : index
    %c0_17 = arith.constant 0 : index
    %c0_18 = arith.constant 0 : index
    %67 = vector.load %arg6[%c0_16, %c0_17, %c0_18] : memref<1x32x32xbf16, #tpu.memory_space<vmem>>, vector<1x32x32xbf16>
    %68 = vector.shape_cast %67 : vector<1x32x32xbf16> to vector<32x32xbf16>
    %cst_19 = arith.constant dense<0.000000e+00> : vector<16x32xf32>
    %69 = tpu.matmul %66, %68, %cst_19 {dimension_numbers = #tpu.dot_dimension_numbers<[1], [0], [0], [1], [0, 0, 1, 1], [], []>} : vector<16x32xbf16>, vector<32x32xbf16>, vector<16x32xf32> -> vector<16x32xf32>
    %c0_20 = arith.constant 0 : index
    %c0_21 = arith.constant 0 : index
    %c0_22 = arith.constant 0 : index
    %70 = vector.load %arg7[%c0_20, %c0_21, %c0_22] : memref<1x1x32xf32, #tpu.memory_space<vmem>>, vector<1x1x32xf32>
    %71 = vector.shape_cast %70 : vector<1x1x32xf32> to vector<1x32xf32>
    %72 = vector.broadcast %71 : vector<1x32xf32> to vector<16x32xf32>
    %73 = arith.addf %69, %72 : vector<16x32xf32>
    %74 = arith.addf %3, %73 : vector<16x32xf32>
    %c0_23 = arith.constant 0 : index
    %c0_24 = arith.constant 0 : index
    %c0_25 = arith.constant 0 : index
    %75 = vector.load %arg8[%c0_23, %c0_24, %c0_25] : memref<1x1x32xf32, #tpu.memory_space<vmem>>, vector<1x1x32xf32>
    %76 = vector.shape_cast %75 : vector<1x1x32xf32> to vector<1x32xf32>
    %c0_26 = arith.constant 0 : index
    %c0_27 = arith.constant 0 : index
    %c0_28 = arith.constant 0 : index
    %77 = vector.load %arg9[%c0_26, %c0_27, %c0_28] : memref<1x1x32xf32, #tpu.memory_space<vmem>>, vector<1x1x32xf32>
    %78 = vector.shape_cast %77 : vector<1x1x32xf32> to vector<1x32xf32>
    %cst_29 = arith.constant dense<0.000000e+00> : vector<16xf32>
    %79 = vector.multi_reduction <add>, %74, %cst_29 [1] : vector<16x32xf32> to vector<16xf32>
    %80 = vector.shape_cast %79 : vector<16xf32> to vector<16x1xf32>
    %cst_30 = arith.constant 3.200000e+01 : f32
    %81 = vector.broadcast %cst_30 : f32 to vector<16x1xf32>
    %82 = arith.divf %80, %81 : vector<16x1xf32>
    %83 = vector.broadcast %82 : vector<16x1xf32> to vector<16x32xf32>
    %84 = arith.subf %74, %83 : vector<16x32xf32>
    %85 = arith.mulf %84, %84 : vector<16x32xf32>
    %cst_31 = arith.constant dense<0.000000e+00> : vector<16xf32>
    %86 = vector.multi_reduction <add>, %85, %cst_31 [1] : vector<16x32xf32> to vector<16xf32>
    %87 = vector.shape_cast %86 : vector<16xf32> to vector<16x1xf32>
    %cst_32 = arith.constant 3.200000e+01 : f32
    %88 = vector.broadcast %cst_32 : f32 to vector<16x1xf32>
    %89 = arith.divf %87, %88 : vector<16x1xf32>
    %90 = vector.broadcast %82 : vector<16x1xf32> to vector<16x32xf32>
    %91 = arith.subf %74, %90 : vector<16x32xf32>
    %cst_33 = arith.constant 9.99999974E-6 : f32
    %92 = vector.broadcast %cst_33 : f32 to vector<16x1xf32>
    %93 = arith.addf %89, %92 : vector<16x1xf32>
    %94 = math.rsqrt %93 : vector<16x1xf32>
    %95 = vector.broadcast %94 : vector<16x1xf32> to vector<16x32xf32>
    %96 = arith.mulf %91, %95 : vector<16x32xf32>
    %97 = vector.broadcast %76 : vector<1x32xf32> to vector<16x32xf32>
    %98 = arith.mulf %96, %97 : vector<16x32xf32>
    %99 = vector.broadcast %78 : vector<1x32xf32> to vector<16x32xf32>
    %100 = arith.addf %98, %99 : vector<16x32xf32>
    %101 = arith.truncf %100 : vector<16x32xf32> to vector<16x32xbf16>
    %cst_34 = arith.constant 0.000000e+00 : f32
    %102 = vector.broadcast %cst_34 : f32 to vector<16x32xf32>
    %c0_35 = arith.constant 0 : index
    %c0_36 = arith.constant 0 : index
    %c0_37 = arith.constant 0 : index
    %103 = vector.load %arg10[%c0_35, %c0_36, %c0_37] : memref<1x32x2048xbf16, #tpu.memory_space<vmem>>, vector<1x32x512xbf16>
    %104 = vector.shape_cast %103 : vector<1x32x512xbf16> to vector<32x512xbf16>
    %cst_38 = arith.constant dense<0.000000e+00> : vector<16x512xf32>
    %105 = tpu.matmul %101, %104, %cst_38 {dimension_numbers = #tpu.dot_dimension_numbers<[1], [0], [0], [1], [0, 0, 1, 1], [], []>} : vector<16x32xbf16>, vector<32x512xbf16>, vector<16x512xf32> -> vector<16x512xf32>
    %c0_39 = arith.constant 0 : index
    %c0_40 = arith.constant 0 : index
    %c0_41 = arith.constant 0 : index
    %106 = vector.load %arg11[%c0_39, %c0_40, %c0_41] : memref<1x1x2048xf32, #tpu.memory_space<vmem>>, vector<1x1x512xf32>
    %107 = vector.shape_cast %106 : vector<1x1x512xf32> to vector<1x512xf32>
    %108 = vector.broadcast %107 : vector<1x512xf32> to vector<16x512xf32>
    %109 = arith.addf %105, %108 : vector<16x512xf32>
    %cst_42 = arith.constant 0.000000e+00 : f32
    %110 = vector.broadcast %cst_42 : f32 to vector<16x512xf32>
    %111 = arith.maximumf %109, %110 : vector<16x512xf32>
    %112 = arith.truncf %111 : vector<16x512xf32> to vector<16x512xbf16>
    %c0_43 = arith.constant 0 : index
    %c0_44 = arith.constant 0 : index
    %c0_45 = arith.constant 0 : index
    %113 = vector.load %arg12[%c0_43, %c0_44, %c0_45] : memref<1x2048x32xbf16, #tpu.memory_space<vmem>>, vector<1x512x32xbf16>
    %114 = vector.shape_cast %113 : vector<1x512x32xbf16> to vector<512x32xbf16>
    %cst_46 = arith.constant dense<0.000000e+00> : vector<16x32xf32>
    %115 = tpu.matmul %112, %114, %cst_46 {dimension_numbers = #tpu.dot_dimension_numbers<[1], [0], [0], [1], [0, 0, 1, 1], [], []>} : vector<16x512xbf16>, vector<512x32xbf16>, vector<16x32xf32> -> vector<16x32xf32>
    %116 = arith.addf %102, %115 : vector<16x32xf32>
    %c0_47 = arith.constant 0 : index
    %c0_48 = arith.constant 0 : index
    %c512 = arith.constant 512 : index
    %117 = vector.load %arg10[%c0_47, %c0_48, %c512] : memref<1x32x2048xbf16, #tpu.memory_space<vmem>>, vector<1x32x512xbf16>
    %118 = vector.shape_cast %117 : vector<1x32x512xbf16> to vector<32x512xbf16>
    %cst_49 = arith.constant dense<0.000000e+00> : vector<16x512xf32>
    %119 = tpu.matmul %101, %118, %cst_49 {dimension_numbers = #tpu.dot_dimension_numbers<[1], [0], [0], [1], [0, 0, 1, 1], [], []>} : vector<16x32xbf16>, vector<32x512xbf16>, vector<16x512xf32> -> vector<16x512xf32>
    %c0_50 = arith.constant 0 : index
    %c0_51 = arith.constant 0 : index
    %c512_52 = arith.constant 512 : index
    %120 = vector.load %arg11[%c0_50, %c0_51, %c512_52] : memref<1x1x2048xf32, #tpu.memory_space<vmem>>, vector<1x1x512xf32>
    %121 = vector.shape_cast %120 : vector<1x1x512xf32> to vector<1x512xf32>
    %122 = vector.broadcast %121 : vector<1x512xf32> to vector<16x512xf32>
    %123 = arith.addf %119, %122 : vector<16x512xf32>
    %cst_53 = arith.constant 0.000000e+00 : f32
    %124 = vector.broadcast %cst_53 : f32 to vector<16x512xf32>
    %125 = arith.maximumf %123, %124 : vector<16x512xf32>
    %126 = arith.truncf %125 : vector<16x512xf32> to vector<16x512xbf16>
    %c0_54 = arith.constant 0 : index
    %c512_55 = arith.constant 512 : index
    %c0_56 = arith.constant 0 : index
    %127 = vector.load %arg12[%c0_54, %c512_55, %c0_56] : memref<1x2048x32xbf16, #tpu.memory_space<vmem>>, vector<1x512x32xbf16>
    %128 = vector.shape_cast %127 : vector<1x512x32xbf16> to vector<512x32xbf16>
    %cst_57 = arith.constant dense<0.000000e+00> : vector<16x32xf32>
    %129 = tpu.matmul %126, %128, %cst_57 {dimension_numbers = #tpu.dot_dimension_numbers<[1], [0], [0], [1], [0, 0, 1, 1], [], []>} : vector<16x512xbf16>, vector<512x32xbf16>, vector<16x32xf32> -> vector<16x32xf32>
    %130 = arith.addf %116, %129 : vector<16x32xf32>
    %c0_58 = arith.constant 0 : index
    %c0_59 = arith.constant 0 : index
    %c1024 = arith.constant 1024 : index
    %131 = vector.load %arg10[%c0_58, %c0_59, %c1024] : memref<1x32x2048xbf16, #tpu.memory_space<vmem>>, vector<1x32x512xbf16>
    %132 = vector.shape_cast %131 : vector<1x32x512xbf16> to vector<32x512xbf16>
    %cst_60 = arith.constant dense<0.000000e+00> : vector<16x512xf32>
    %133 = tpu.matmul %101, %132, %cst_60 {dimension_numbers = #tpu.dot_dimension_numbers<[1], [0], [0], [1], [0, 0, 1, 1], [], []>} : vector<16x32xbf16>, vector<32x512xbf16>, vector<16x512xf32> -> vector<16x512xf32>
    %c0_61 = arith.constant 0 : index
    %c0_62 = arith.constant 0 : index
    %c1024_63 = arith.constant 1024 : index
    %134 = vector.load %arg11[%c0_61, %c0_62, %c1024_63] : memref<1x1x2048xf32, #tpu.memory_space<vmem>>, vector<1x1x512xf32>
    %135 = vector.shape_cast %134 : vector<1x1x512xf32> to vector<1x512xf32>
    %136 = vector.broadcast %135 : vector<1x512xf32> to vector<16x512xf32>
    %137 = arith.addf %133, %136 : vector<16x512xf32>
    %cst_64 = arith.constant 0.000000e+00 : f32
    %138 = vector.broadcast %cst_64 : f32 to vector<16x512xf32>
    %139 = arith.maximumf %137, %138 : vector<16x512xf32>
    %140 = arith.truncf %139 : vector<16x512xf32> to vector<16x512xbf16>
    %c0_65 = arith.constant 0 : index
    %c1024_66 = arith.constant 1024 : index
    %c0_67 = arith.constant 0 : index
    %141 = vector.load %arg12[%c0_65, %c1024_66, %c0_67] : memref<1x2048x32xbf16, #tpu.memory_space<vmem>>, vector<1x512x32xbf16>
    %142 = vector.shape_cast %141 : vector<1x512x32xbf16> to vector<512x32xbf16>
    %cst_68 = arith.constant dense<0.000000e+00> : vector<16x32xf32>
    %143 = tpu.matmul %140, %142, %cst_68 {dimension_numbers = #tpu.dot_dimension_numbers<[1], [0], [0], [1], [0, 0, 1, 1], [], []>} : vector<16x512xbf16>, vector<512x32xbf16>, vector<16x32xf32> -> vector<16x32xf32>
    %144 = arith.addf %130, %143 : vector<16x32xf32>
    %c0_69 = arith.constant 0 : index
    %c0_70 = arith.constant 0 : index
    %c1536 = arith.constant 1536 : index
    %145 = vector.load %arg10[%c0_69, %c0_70, %c1536] : memref<1x32x2048xbf16, #tpu.memory_space<vmem>>, vector<1x32x512xbf16>
    %146 = vector.shape_cast %145 : vector<1x32x512xbf16> to vector<32x512xbf16>
    %cst_71 = arith.constant dense<0.000000e+00> : vector<16x512xf32>
    %147 = tpu.matmul %101, %146, %cst_71 {dimension_numbers = #tpu.dot_dimension_numbers<[1], [0], [0], [1], [0, 0, 1, 1], [], []>} : vector<16x32xbf16>, vector<32x512xbf16>, vector<16x512xf32> -> vector<16x512xf32>
    %c0_72 = arith.constant 0 : index
    %c0_73 = arith.constant 0 : index
    %c1536_74 = arith.constant 1536 : index
    %148 = vector.load %arg11[%c0_72, %c0_73, %c1536_74] : memref<1x1x2048xf32, #tpu.memory_space<vmem>>, vector<1x1x512xf32>
    %149 = vector.shape_cast %148 : vector<1x1x512xf32> to vector<1x512xf32>
    %150 = vector.broadcast %149 : vector<1x512xf32> to vector<16x512xf32>
    %151 = arith.addf %147, %150 : vector<16x512xf32>
    %cst_75 = arith.constant 0.000000e+00 : f32
    %152 = vector.broadcast %cst_75 : f32 to vector<16x512xf32>
    %153 = arith.maximumf %151, %152 : vector<16x512xf32>
    %154 = arith.truncf %153 : vector<16x512xf32> to vector<16x512xbf16>
    %c0_76 = arith.constant 0 : index
    %c1536_77 = arith.constant 1536 : index
    %c0_78 = arith.constant 0 : index
    %155 = vector.load %arg12[%c0_76, %c1536_77, %c0_78] : memref<1x2048x32xbf16, #tpu.memory_space<vmem>>, vector<1x512x32xbf16>
    %156 = vector.shape_cast %155 : vector<1x512x32xbf16> to vector<512x32xbf16>
    %cst_79 = arith.constant dense<0.000000e+00> : vector<16x32xf32>
    %157 = tpu.matmul %154, %156, %cst_79 {dimension_numbers = #tpu.dot_dimension_numbers<[1], [0], [0], [1], [0, 0, 1, 1], [], []>} : vector<16x512xbf16>, vector<512x32xbf16>, vector<16x32xf32> -> vector<16x32xf32>
    %158 = arith.addf %144, %157 : vector<16x32xf32>
    %c0_80 = arith.constant 0 : index
    %c0_81 = arith.constant 0 : index
    %c0_82 = arith.constant 0 : index
    %159 = vector.load %arg13[%c0_80, %c0_81, %c0_82] : memref<1x1x32xf32, #tpu.memory_space<vmem>>, vector<1x1x32xf32>
    %160 = vector.shape_cast %159 : vector<1x1x32xf32> to vector<1x32xf32>
    %161 = vector.broadcast %160 : vector<1x32xf32> to vector<16x32xf32>
    %162 = arith.addf %158, %161 : vector<16x32xf32>
    %163 = arith.addf %100, %162 : vector<16x32xf32>
    %c0_83 = arith.constant 0 : index
    %c0_84 = arith.constant 0 : index
    %c0_85 = arith.constant 0 : index
    %164 = vector.load %arg14[%c0_83, %c0_84, %c0_85] : memref<1x1x32xf32, #tpu.memory_space<vmem>>, vector<1x1x32xf32>
    %165 = vector.shape_cast %164 : vector<1x1x32xf32> to vector<1x32xf32>
    %c0_86 = arith.constant 0 : index
    %c0_87 = arith.constant 0 : index
    %c0_88 = arith.constant 0 : index
    %166 = vector.load %arg15[%c0_86, %c0_87, %c0_88] : memref<1x1x32xf32, #tpu.memory_space<vmem>>, vector<1x1x32xf32>
    %167 = vector.shape_cast %166 : vector<1x1x32xf32> to vector<1x32xf32>
    %cst_89 = arith.constant dense<0.000000e+00> : vector<16xf32>
    %168 = vector.multi_reduction <add>, %163, %cst_89 [1] : vector<16x32xf32> to vector<16xf32>
    %169 = vector.shape_cast %168 : vector<16xf32> to vector<16x1xf32>
    %cst_90 = arith.constant 3.200000e+01 : f32
    %170 = vector.broadcast %cst_90 : f32 to vector<16x1xf32>
    %171 = arith.divf %169, %170 : vector<16x1xf32>
    %172 = vector.broadcast %171 : vector<16x1xf32> to vector<16x32xf32>
    %173 = arith.subf %163, %172 : vector<16x32xf32>
    %174 = arith.mulf %173, %173 : vector<16x32xf32>
    %cst_91 = arith.constant dense<0.000000e+00> : vector<16xf32>
    %175 = vector.multi_reduction <add>, %174, %cst_91 [1] : vector<16x32xf32> to vector<16xf32>
    %176 = vector.shape_cast %175 : vector<16xf32> to vector<16x1xf32>
    %cst_92 = arith.constant 3.200000e+01 : f32
    %177 = vector.broadcast %cst_92 : f32 to vector<16x1xf32>
    %178 = arith.divf %176, %177 : vector<16x1xf32>
    %179 = vector.broadcast %171 : vector<16x1xf32> to vector<16x32xf32>
    %180 = arith.subf %163, %179 : vector<16x32xf32>
    %cst_93 = arith.constant 9.99999974E-6 : f32
    %181 = vector.broadcast %cst_93 : f32 to vector<16x1xf32>
    %182 = arith.addf %178, %181 : vector<16x1xf32>
    %183 = math.rsqrt %182 : vector<16x1xf32>
    %184 = vector.broadcast %183 : vector<16x1xf32> to vector<16x32xf32>
    %185 = arith.mulf %180, %184 : vector<16x32xf32>
    %186 = vector.broadcast %165 : vector<1x32xf32> to vector<16x32xf32>
    %187 = arith.mulf %185, %186 : vector<16x32xf32>
    %188 = vector.broadcast %167 : vector<1x32xf32> to vector<16x32xf32>
    %189 = arith.addf %187, %188 : vector<16x32xf32>
    %c0_94 = arith.constant 0 : index
    %c0_95 = arith.constant 0 : index
    %190 = vector.load %arg19[%c0_94, %c0_95] : memref<16x32xf32, #tpu.memory_space<vmem>>, vector<16x32xf32>
    tpu.vector_store %arg19[%c0_94, %c0_95], %189 {strides = array<i32>} : memref<16x32xf32, #tpu.memory_space<vmem>>, vector<16x32xf32>,
    %c1_i32 = arith.constant 1 : i32
    %191 = arith.cmpi eq, %arg0, %c1_i32 : i32
    %192 = arith.extui %191 : i1 to i32
    %c0_i32_96 = arith.constant 0 : i32
    %193 = arith.cmpi ne, %192, %c0_i32_96 : i32
    scf.if %193 {
      %194 = vector.shape_cast %189 : vector<16x32xf32> to vector<2x8x32xf32>
      %cst_97 = arith.constant dense<0.000000e+00> : vector<2x32xf32>
      %195 = vector.multi_reduction <add>, %194, %cst_97 [1] : vector<2x8x32xf32> to vector<2x32xf32>
      %cst_98 = arith.constant 8.000000e+00 : f32
      %196 = vector.broadcast %cst_98 : f32 to vector<2x32xf32>
      %197 = arith.divf %195, %196 : vector<2x32xf32>
      %198 = arith.truncf %197 : vector<2x32xf32> to vector<2x32xbf16>
      %c0_99 = arith.constant 0 : index
      %c0_100 = arith.constant 0 : index
      %199 = vector.load %arg16[%c0_99, %c0_100] : memref<32x8xbf16, #tpu.memory_space<vmem>>, vector<32x8xbf16>
      %cst_101 = arith.constant dense<0.000000e+00> : vector<2x8xf32>
      %200 = tpu.matmul %198, %199, %cst_101 {dimension_numbers = #tpu.dot_dimension_numbers<[1], [0], [0], [1], [0, 0, 1, 1], [], []>} : vector<2x32xbf16>, vector<32x8xbf16>, vector<2x8xf32> -> vector<2x8xf32>
      %c0_102 = arith.constant 0 : index
      %c0_103 = arith.constant 0 : index
      %201 = vector.load %arg17[%c0_102, %c0_103] : memref<1x8xf32, #tpu.memory_space<vmem>>, vector<1x8xf32>
      %202 = vector.broadcast %201 : vector<1x8xf32> to vector<2x8xf32>
      %203 = arith.addf %200, %202 : vector<2x8xf32>
      %c0_104 = arith.constant 0 : index
      %c0_105 = arith.constant 0 : index
      %204 = vector.load %arg18[%c0_104, %c0_105] : memref<2x8xf32, #tpu.memory_space<vmem>>, vector<2x8xf32>
      tpu.vector_store %arg18[%c0_104, %c0_105], %203 {strides = array<i32>} : memref<2x8xf32, #tpu.memory_space<vmem>>, vector<2x8xf32>,
    } else {
    }
    return
  }
  func.func @transform_0(%arg0: i32) -> (i32, i32) {
    %c0_i32 = arith.constant 0 : i32
    %c0_i32_0 = arith.constant 0 : i32
    %c0_i32_1 = arith.constant 0 : i32
    return %c0_i32, %c0_i32_0 : i32, i32
  }
  func.func @transform_1(%arg0: i32) -> (i32, i32) {
    %c0_i32 = arith.constant 0 : i32
    %c0_i32_0 = arith.constant 0 : i32
    %c0_i32_1 = arith.constant 0 : i32
    return %c0_i32, %c0_i32_0 : i32, i32
  }
  func.func @transform_2(%arg0: i32) -> (i32, i32) {
    %c0_i32 = arith.constant 0 : i32
    %c0_i32_0 = arith.constant 0 : i32
    %c0_i32_1 = arith.constant 0 : i32
    return %c0_i32, %c0_i32_0 : i32, i32
  }
  func.func @transform_3(%arg0: i32) -> (i32, i32, i32) {
    %c0_i32 = arith.constant 0 : i32
    %c0_i32_0 = arith.constant 0 : i32
    %c0_i32_1 = arith.constant 0 : i32
    return %arg0, %c0_i32, %c0_i32_0 : i32, i32, i32
  }
  func.func @transform_4(%arg0: i32) -> (i32, i32, i32) {
    %c0_i32 = arith.constant 0 : i32
    %c0_i32_0 = arith.constant 0 : i32
    %c0_i32_1 = arith.constant 0 : i32
    return %arg0, %c0_i32, %c0_i32_0 : i32, i32, i32
  }
  func.func @transform_5(%arg0: i32) -> (i32, i32, i32) {
    %c0_i32 = arith.constant 0 : i32
    %c0_i32_0 = arith.constant 0 : i32
    %c0_i32_1 = arith.constant 0 : i32
    return %arg0, %c0_i32, %c0_i32_0 : i32, i32, i32
  }
  func.func @transform_6(%arg0: i32) -> (i32, i32, i32) {
    %c0_i32 = arith.constant 0 : i32
    %c0_i32_0 = arith.constant 0 : i32
    %c0_i32_1 = arith.constant 0 : i32
    return %arg0, %c0_i32, %c0_i32_0 : i32, i32, i32
  }
  func.func @transform_7(%arg0: i32) -> (i32, i32, i32) {
    %c0_i32 = arith.constant 0 : i32
    %c0_i32_0 = arith.constant 0 : i32
    %c0_i32_1 = arith.constant 0 : i32
    return %arg0, %c0_i32, %c0_i32_0 : i32, i32, i32
  }
  func.func @transform_8(%arg0: i32) -> (i32, i32, i32) {
    %c0_i32 = arith.constant 0 : i32
    %c0_i32_0 = arith.constant 0 : i32
    %c0_i32_1 = arith.constant 0 : i32
    return %arg0, %c0_i32, %c0_i32_0 : i32, i32, i32
  }
  func.func @transform_9(%arg0: i32) -> (i32, i32, i32) {
    %c0_i32 = arith.constant 0 : i32
    %c0_i32_0 = arith.constant 0 : i32
    %c0_i32_1 = arith.constant 0 : i32
    return %arg0, %c0_i32, %c0_i32_0 : i32, i32, i32
  }
  func.func @transform_10(%arg0: i32) -> (i32, i32, i32) {
    %c0_i32 = arith.constant 0 : i32
    %c0_i32_0 = arith.constant 0 : i32
    %c0_i32_1 = arith.constant 0 : i32
    return %arg0, %c0_i32, %c0_i32_0 : i32, i32, i32
  }
  func.func @transform_11(%arg0: i32) -> (i32, i32, i32) {
    %c0_i32 = arith.constant 0 : i32
    %c0_i32_0 = arith.constant 0 : i32
    %c0_i32_1 = arith.constant 0 : i32
    return %arg0, %c0_i32, %c0_i32_0 : i32, i32, i32
  }
  func.func @transform_12(%arg0: i32) -> (i32, i32, i32) {
    %c0_i32 = arith.constant 0 : i32
    %c0_i32_0 = arith.constant 0 : i32
    %c0_i32_1 = arith.constant 0 : i32
    return %arg0, %c0_i32, %c0_i32_0 : i32, i32, i32
  }
  func.func @transform_13(%arg0: i32) -> (i32, i32, i32) {
    %c0_i32 = arith.constant 0 : i32
    %c0_i32_0 = arith.constant 0 : i32
    %c0_i32_1 = arith.constant 0 : i32
    return %arg0, %c0_i32, %c0_i32_0 : i32, i32, i32
  }
  func.func @transform_14(%arg0: i32) -> (i32, i32, i32) {
    %c0_i32 = arith.constant 0 : i32
    %c0_i32_0 = arith.constant 0 : i32
    %c0_i32_1 = arith.constant 0 : i32
    return %arg0, %c0_i32, %c0_i32_0 : i32, i32, i32
  }
  func.func @transform_15(%arg0: i32) -> (i32, i32) {
    %c0_i32 = arith.constant 0 : i32
    %c0_i32_0 = arith.constant 0 : i32
    %c0_i32_1 = arith.constant 0 : i32
    return %c0_i32, %c0_i32_0 : i32, i32
  }
  func.func @transform_16(%arg0: i32) -> (i32, i32) {
    %c0_i32 = arith.constant 0 : i32
    %c0_i32_0 = arith.constant 0 : i32
    %c0_i32_1 = arith.constant 0 : i32
    return %c0_i32, %c0_i32_0 : i32, i32
  }
  func.func @transform_17(%arg0: i32) -> (i32, i32) {
    %c0_i32 = arith.constant 0 : i32
    %c0_i32_0 = arith.constant 0 : i32
    %c0_i32_1 = arith.constant 0 : i32
    return %c0_i32, %c0_i32_0 : i32, i32
  }
}

</mosaic_0001>

<llo_original>
// kernel: transformer_encoder_forward.1
$region0: #{transformer_encoder_forward.1}
  #allocation0 [shape = 'u32[]', space=smem, size = 0x4, offset = 0x4, fixed_abs, tag = 'smem constant byte address 0x4 - core index']
  #allocation1 [shape = 'u32[72,128]{1,0:T(1,128)}', space=vmem, size = 0x9000, scoped, tag = 'internal scratch']
  #allocation2 [shape = 'f32[16,32]{1,0:T(8,128)}', space=vmem, size = 0x2000, scoped, tag = 'scratch operand']
  %s0 = inlined_call_operand.vmem [shape: f32[16,32], index: 0, kind: input, shape index: {}]
  %s1 = inlined_call_operand.vmem [shape: f32[16,32], index: 1, kind: input, shape index: {}]
  %s2 = inlined_call_operand.vmem [shape: f32[2,8], index: 2, kind: input, shape index: {}]
  %s3 = inlined_call_operand.vmem [shape: bf16[2,32,96], index: 3, kind: input, shape index: {}]
  %s4 = inlined_call_operand.vmem [shape: f32[2,1,96], index: 4, kind: input, shape index: {}]
  %s5 = inlined_call_operand.vmem [shape: bf16[2,32,32], index: 5, kind: input, shape index: {}]
  %s6 = inlined_call_operand.vmem [shape: f32[2,1,32], index: 6, kind: input, shape index: {}]
  %s7 = inlined_call_operand.vmem [shape: f32[2,1,32], index: 7, kind: input, shape index: {}]
  %s8 = inlined_call_operand.vmem [shape: f32[2,1,32], index: 8, kind: input, shape index: {}]
  %s9 = inlined_call_operand.vmem [shape: bf16[2,32,2048], index: 9, kind: input, shape index: {}]
  %s10 = inlined_call_operand.vmem [shape: f32[2,1,2048], index: 10, kind: input, shape index: {}]
  %s11 = inlined_call_operand.vmem [shape: bf16[2,2048,32], index: 11, kind: input, shape index: {}]
  %s12 = inlined_call_operand.vmem [shape: f32[2,1,32], index: 12, kind: input, shape index: {}]
  %s13 = inlined_call_operand.vmem [shape: f32[2,1,32], index: 13, kind: input, shape index: {}]
  %s14 = inlined_call_operand.vmem [shape: f32[2,1,32], index: 14, kind: input, shape index: {}]
  %s15 = inlined_call_operand.vmem [shape: bf16[32,8], index: 15, kind: input, shape index: {}]
  %s16 = inlined_call_operand.vmem [shape: f32[1,8], index: 16, kind: input, shape index: {}]
  %s17 = inlined_call_operand.hbm [shape: f32[2,8], index: 17, kind: output, shape index: {}]
  %s18 = sld [smem:[#allocation0]]
  $region109: #{transformer_encoder_forward.1} parent=0
    _
  %s20 = ssub.s32 1, %s18
  %s21 = scalar_select 0, %s20, %s18
  $region1: #{transformer_encoder_forward.1} parent=0
    #allocation3 [shape = 'u8[1024]{0}', space=vmem, size = 0x400, scoped, tag = 'output window, operand 0, single buffered']
    #allocation4 [shape = 's32[2]{0}', space=sflag, size = 0x8, scoped, tag = 'scoped memory for transformer_encoder_forward.1']
    %22 = vsyncpa [#allocation4], 0
    loop: start=0, step=1, limit=4
    $region2: #{transformer_encoder_forward.1} parent=1 // loop_pre_header
      _
    $region3: #{transformer_encoder_forward.1} parent=1 // loop_header
      %s24 = sphi 0, %s28
      %p25 = scmp.ge.s32.totalorder %s24, 4
      %s32 = sphi 0, %s32
      %s34 = sphi 0, %s32
      %s35 = sphi 0, %s34
      %s49 = sphi 0, %s35
      %s53 = sphi 0, %s53
      %s55 = sphi 0, %s53
      %s56 = sphi 0, %s55
      %s70 = sphi 0, %s56
      %s74 = sphi 0, %s74
      %s76 = sphi 0, %s74
      %s77 = sphi 0, %s76
      %s91 = sphi 0, %s77
      %s97 = sphi 0, %s99
      %s100 = sphi 0, %s97
      %s101 = sphi 0, %s100
      %s117 = sphi 0, %s101
      %s123 = sphi 0, %s125
      %s126 = sphi 0, %s123
      %s127 = sphi 0, %s126
      %s143 = sphi 0, %s127
      %s149 = sphi 0, %s151
      %s152 = sphi 0, %s149
      %s153 = sphi 0, %s152
      %s169 = sphi 0, %s153
      %s175 = sphi 0, %s177
      %s178 = sphi 0, %s175
      %s179 = sphi 0, %s178
      %s195 = sphi 0, %s179
      %s201 = sphi 0, %s203
      %s204 = sphi 0, %s201
      %s205 = sphi 0, %s204
      %s221 = sphi 0, %s205
      %s227 = sphi 0, %s229
      %s230 = sphi 0, %s227
      %s231 = sphi 0, %s230
      %s247 = sphi 0, %s231
      %s253 = sphi 0, %s255
      %s256 = sphi 0, %s253
      %s257 = sphi 0, %s256
      %s273 = sphi 0, %s257
      %s279 = sphi 0, %s281
      %s282 = sphi 0, %s279
      %s283 = sphi 0, %s282
      %s299 = sphi 0, %s283
      %s305 = sphi 0, %s307
      %s308 = sphi 0, %s305
      %s309 = sphi 0, %s308
      %s325 = sphi 0, %s309
      %s331 = sphi 0, %s333
      %s334 = sphi 0, %s331
      %s335 = sphi 0, %s334
      %s351 = sphi 0, %s335
      %s357 = sphi 0, %s359
      %s360 = sphi 0, %s357
      %s361 = sphi 0, %s360
      %s377 = sphi 0, %s361
      %s383 = sphi 0, %s385
      %s386 = sphi 0, %s383
      %s387 = sphi 0, %s386
      %s403 = sphi 0, %s387
      %s407 = sphi 0, %s407
      %s409 = sphi 0, %s407
      %s410 = sphi 0, %s409
      %s424 = sphi 0, %s410
      %s428 = sphi 0, %s428
      %s430 = sphi 0, %s428
      %s431 = sphi 0, %s430
      %s445 = sphi 0, %s431
      %s449 = sphi 0, %s449
      %s451 = sphi 0, %s449
      %s452 = sphi 0, %s451
      %s466 = sphi 0, %s452
    $region4: #{transformer_encoder_forward.1} parent=1 // loop_header_branch
      %27 = sbr.rel (%p25) target = $region8
    $region5: #{transformer_encoder_forward.1} parent=1 // loop_body
      %s29 = ssub.s32 %s24, 1
      %s30 = ssub.s32 %s24, 2
      %s31 = sadd.s32 %s24, 1
      %s33 = sadd.s32 %s32, 1
      %p36 = scmp.eq.s32.totalorder %s24, 1
      %p37 = scmp.ne.s32.totalorder %s32, %s34
      %p38 = scmp.eq.s32.totalorder %s24, 0
      %p39 = por %p37, %p38
      %p40 = scmp.ne.s32.totalorder %s32, %s34
      %p41 = scmp.eq.s32.totalorder %s29, 1
      %p42 = por %p40, %p41
      %p43 = scmp.ne.s32.totalorder %s34, %s35
      %p44 = scmp.eq.s32.totalorder %s29, 0
      %p45 = por %p43, %p44
      %p46 = scmp.ne.s32.totalorder %s34, %s35
      %p47 = scmp.eq.s32.totalorder %s30, 1
      %p48 = por %p46, %p47
      %p50 = scmp.ne.s32.totalorder %s35, %s49
      %p51 = scmp.eq.s32.totalorder %s30, 0
      %p52 = por %p50, %p51
      %s54 = sadd.s32 %s53, 1
      %p57 = scmp.eq.s32.totalorder %s24, 1
      %p58 = scmp.ne.s32.totalorder %s53, %s55
      %p59 = scmp.eq.s32.totalorder %s24, 0
      %p60 = por %p58, %p59
      %p61 = scmp.ne.s32.totalorder %s53, %s55
      %p62 = scmp.eq.s32.totalorder %s29, 1
      %p63 = por %p61, %p62
      %p64 = scmp.ne.s32.totalorder %s55, %s56
      %p65 = scmp.eq.s32.totalorder %s29, 0
      %p66 = por %p64, %p65
      %p67 = scmp.ne.s32.totalorder %s55, %s56
      %p68 = scmp.eq.s32.totalorder %s30, 1
      %p69 = por %p67, %p68
      %p71 = scmp.ne.s32.totalorder %s56, %s70
      %p72 = scmp.eq.s32.totalorder %s30, 0
      %p73 = por %p71, %p72
      %s75 = sadd.s32 %s74, 1
      %p78 = scmp.eq.s32.totalorder %s24, 1
      %p79 = scmp.ne.s32.totalorder %s74, %s76
      %p80 = scmp.eq.s32.totalorder %s24, 0
      %p81 = por %p79, %p80
      %p82 = scmp.ne.s32.totalorder %s74, %s76
      %p83 = scmp.eq.s32.totalorder %s29, 1
      %p84 = por %p82, %p83
      %p85 = scmp.ne.s32.totalorder %s76, %s77
      %p86 = scmp.eq.s32.totalorder %s29, 0
      %p87 = por %p85, %p86
      %p88 = scmp.ne.s32.totalorder %s76, %s77
      %p89 = scmp.eq.s32.totalorder %s30, 1
      %p90 = por %p88, %p89
      %p92 = scmp.ne.s32.totalorder %s77, %s91
      %p93 = scmp.eq.s32.totalorder %s30, 0
      %p94 = por %p92, %p93
      %s95 = ssub.s32 %s24, %s31
      %p96 = scmp.eq.s32.totalorder %s95, 0
      %s98 = sadd.s32 %s97, 1
      %s99 = scalar_select %p96, %s97, %s98
      %p102 = pneg %p96
      %p103 = scmp.eq.s32.totalorder %s24, 1
      %p104 = por %p102, %p103
      %p105 = scmp.ne.s32.totalorder %s97, %s100
      %p106 = scmp.eq.s32.totalorder %s24, 0
      %p107 = por %p105, %p106
      %p108 = scmp.ne.s32.totalorder %s97, %s100
      %p109 = scmp.eq.s32.totalorder %s29, 1
      %p110 = por %p108, %p109
      %p111 = scmp.ne.s32.totalorder %s100, %s101
      %p112 = scmp.eq.s32.totalorder %s29, 0
      %p113 = por %p111, %p112
      %p114 = scmp.ne.s32.totalorder %s100, %s101
      %p115 = scmp.eq.s32.totalorder %s30, 1
      %p116 = por %p114, %p115
      %p118 = scmp.ne.s32.totalorder %s101, %s117
      %p119 = scmp.eq.s32.totalorder %s30, 0
      %p120 = por %p118, %p119
      %s121 = ssub.s32 %s24, %s31
      %p122 = scmp.eq.s32.totalorder %s121, 0
      %s124 = sadd.s32 %s123, 1
      %s125 = scalar_select %p122, %s123, %s124
      %p128 = pneg %p122
      %p129 = scmp.eq.s32.totalorder %s24, 1
      %p130 = por %p128, %p129
      %p131 = scmp.ne.s32.totalorder %s123, %s126
      %p132 = scmp.eq.s32.totalorder %s24, 0
      %p133 = por %p131, %p132
      %p134 = scmp.ne.s32.totalorder %s123, %s126
      %p135 = scmp.eq.s32.totalorder %s29, 1
      %p136 = por %p134, %p135
      %p137 = scmp.ne.s32.totalorder %s126, %s127
      %p138 = scmp.eq.s32.totalorder %s29, 0
      %p139 = por %p137, %p138
      %p140 = scmp.ne.s32.totalorder %s126, %s127
      %p141 = scmp.eq.s32.totalorder %s30, 1
      %p142 = por %p140, %p141
      %p144 = scmp.ne.s32.totalorder %s127, %s143
      %p145 = scmp.eq.s32.totalorder %s30, 0
      %p146 = por %p144, %p145
      %s147 = ssub.s32 %s24, %s31
      %p148 = scmp.eq.s32.totalorder %s147, 0
      %s150 = sadd.s32 %s149, 1
      %s151 = scalar_select %p148, %s149, %s150
      %p154 = pneg %p148
      %p155 = scmp.eq.s32.totalorder %s24, 1
      %p156 = por %p154, %p155
      %p157 = scmp.ne.s32.totalorder %s149, %s152
      %p158 = scmp.eq.s32.totalorder %s24, 0
      %p159 = por %p157, %p158
      %p160 = scmp.ne.s32.totalorder %s149, %s152
      %p161 = scmp.eq.s32.totalorder %s29, 1
      %p162 = por %p160, %p161
      %p163 = scmp.ne.s32.totalorder %s152, %s153
      %p164 = scmp.eq.s32.totalorder %s29, 0
      %p165 = por %p163, %p164
      %p166 = scmp.ne.s32.totalorder %s152, %s153
      %p167 = scmp.eq.s32.totalorder %s30, 1
      %p168 = por %p166, %p167
      %p170 = scmp.ne.s32.totalorder %s153, %s169
      %p171 = scmp.eq.s32.totalorder %s30, 0
      %p172 = por %p170, %p171
      %s173 = ssub.s32 %s24, %s31
      %p174 = scmp.eq.s32.totalorder %s173, 0
      %s176 = sadd.s32 %s175, 1
      %s177 = scalar_select %p174, %s175, %s176
      %p180 = pneg %p174
      %p181 = scmp.eq.s32.totalorder %s24, 1
      %p182 = por %p180, %p181
      %p183 = scmp.ne.s32.totalorder %s175, %s178
      %p184 = scmp.eq.s32.totalorder %s24, 0
      %p185 = por %p183, %p184
      %p186 = scmp.ne.s32.totalorder %s175, %s178
      %p187 = scmp.eq.s32.totalorder %s29, 1
      %p188 = por %p186, %p187
      %p189 = scmp.ne.s32.totalorder %s178, %s179
      %p190 = scmp.eq.s32.totalorder %s29, 0
      %p191 = por %p189, %p190
      %p192 = scmp.ne.s32.totalorder %s178, %s179
      %p193 = scmp.eq.s32.totalorder %s30, 1
      %p194 = por %p192, %p193
      %p196 = scmp.ne.s32.totalorder %s179, %s195
      %p197 = scmp.eq.s32.totalorder %s30, 0
      %p198 = por %p196, %p197
      %s199 = ssub.s32 %s24, %s31
      %p200 = scmp.eq.s32.totalorder %s199, 0
      %s202 = sadd.s32 %s201, 1
      %s203 = scalar_select %p200, %s201, %s202
      %p206 = pneg %p200
      %p207 = scmp.eq.s32.totalorder %s24, 1
      %p208 = por %p206, %p207
      %p209 = scmp.ne.s32.totalorder %s201, %s204
      %p210 = scmp.eq.s32.totalorder %s24, 0
      %p211 = por %p209, %p210
      %p212 = scmp.ne.s32.totalorder %s201, %s204
      %p213 = scmp.eq.s32.totalorder %s29, 1
      %p214 = por %p212, %p213
      %p215 = scmp.ne.s32.totalorder %s204, %s205
      %p216 = scmp.eq.s32.totalorder %s29, 0
      %p217 = por %p215, %p216
      %p218 = scmp.ne.s32.totalorder %s204, %s205
      %p219 = scmp.eq.s32.totalorder %s30, 1
      %p220 = por %p218, %p219
      %p222 = scmp.ne.s32.totalorder %s205, %s221
      %p223 = scmp.eq.s32.totalorder %s30, 0
      %p224 = por %p222, %p223
      %s225 = ssub.s32 %s24, %s31
      %p226 = scmp.eq.s32.totalorder %s225, 0
      %s228 = sadd.s32 %s227, 1
      %s229 = scalar_select %p226, %s227, %s228
      %p232 = pneg %p226
      %p233 = scmp.eq.s32.totalorder %s24, 1
      %p234 = por %p232, %p233
      %p235 = scmp.ne.s32.totalorder %s227, %s230
      %p236 = scmp.eq.s32.totalorder %s24, 0
      %p237 = por %p235, %p236
      %p238 = scmp.ne.s32.totalorder %s227, %s230
      %p239 = scmp.eq.s32.totalorder %s29, 1
      %p240 = por %p238, %p239
      %p241 = scmp.ne.s32.totalorder %s230, %s231
      %p242 = scmp.eq.s32.totalorder %s29, 0
      %p243 = por %p241, %p242
      %p244 = scmp.ne.s32.totalorder %s230, %s231
      %p245 = scmp.eq.s32.totalorder %s30, 1
      %p246 = por %p244, %p245
      %p248 = scmp.ne.s32.totalorder %s231, %s247
      %p249 = scmp.eq.s32.totalorder %s30, 0
      %p250 = por %p248, %p249
      %s251 = ssub.s32 %s24, %s31
      %p252 = scmp.eq.s32.totalorder %s251, 0
      %s254 = sadd.s32 %s253, 1
      %s255 = scalar_select %p252, %s253, %s254
      %p258 = pneg %p252
      %p259 = scmp.eq.s32.totalorder %s24, 1
      %p260 = por %p258, %p259
      %p261 = scmp.ne.s32.totalorder %s253, %s256
      %p262 = scmp.eq.s32.totalorder %s24, 0
      %p263 = por %p261, %p262
      %p264 = scmp.ne.s32.totalorder %s253, %s256
      %p265 = scmp.eq.s32.totalorder %s29, 1
      %p266 = por %p264, %p265
      %p267 = scmp.ne.s32.totalorder %s256, %s257
      %p268 = scmp.eq.s32.totalorder %s29, 0
      %p269 = por %p267, %p268
      %p270 = scmp.ne.s32.totalorder %s256, %s257
      %p271 = scmp.eq.s32.totalorder %s30, 1
      %p272 = por %p270, %p271
      %p274 = scmp.ne.s32.totalorder %s257, %s273
      %p275 = scmp.eq.s32.totalorder %s30, 0
      %p276 = por %p274, %p275
      %s277 = ssub.s32 %s24, %s31
      %p278 = scmp.eq.s32.totalorder %s277, 0
      %s280 = sadd.s32 %s279, 1
      %s281 = scalar_select %p278, %s279, %s280
      %p284 = pneg %p278
      %p285 = scmp.eq.s32.totalorder %s24, 1
      %p286 = por %p284, %p285
      %p287 = scmp.ne.s32.totalorder %s279, %s282
      %p288 = scmp.eq.s32.totalorder %s24, 0
      %p289 = por %p287, %p288
      %p290 = scmp.ne.s32.totalorder %s279, %s282
      %p291 = scmp.eq.s32.totalorder %s29, 1
      %p292 = por %p290, %p291
      %p293 = scmp.ne.s32.totalorder %s282, %s283
      %p294 = scmp.eq.s32.totalorder %s29, 0
      %p295 = por %p293, %p294
      %p296 = scmp.ne.s32.totalorder %s282, %s283
      %p297 = scmp.eq.s32.totalorder %s30, 1
      %p298 = por %p296, %p297
      %p300 = scmp.ne.s32.totalorder %s283, %s299
      %p301 = scmp.eq.s32.totalorder %s30, 0
      %p302 = por %p300, %p301
      %s303 = ssub.s32 %s24, %s31
      %p304 = scmp.eq.s32.totalorder %s303, 0
      %s306 = sadd.s32 %s305, 1
      %s307 = scalar_select %p304, %s305, %s306
      %p310 = pneg %p304
      %p311 = scmp.eq.s32.totalorder %s24, 1
      %p312 = por %p310, %p311
      %p313 = scmp.ne.s32.totalorder %s305, %s308
      %p314 = scmp.eq.s32.totalorder %s24, 0
      %p315 = por %p313, %p314
      %p316 = scmp.ne.s32.totalorder %s305, %s308
      %p317 = scmp.eq.s32.totalorder %s29, 1
      %p318 = por %p316, %p317
      %p319 = scmp.ne.s32.totalorder %s308, %s309
      %p320 = scmp.eq.s32.totalorder %s29, 0
      %p321 = por %p319, %p320
      %p322 = scmp.ne.s32.totalorder %s308, %s309
      %p323 = scmp.eq.s32.totalorder %s30, 1
      %p324 = por %p322, %p323
      %p326 = scmp.ne.s32.totalorder %s309, %s325
      %p327 = scmp.eq.s32.totalorder %s30, 0
      %p328 = por %p326, %p327
      %s329 = ssub.s32 %s24, %s31
      %p330 = scmp.eq.s32.totalorder %s329, 0
      %s332 = sadd.s32 %s331, 1
      %s333 = scalar_select %p330, %s331, %s332
      %p336 = pneg %p330
      %p337 = scmp.eq.s32.totalorder %s24, 1
      %p338 = por %p336, %p337
      %p339 = scmp.ne.s32.totalorder %s331, %s334
      %p340 = scmp.eq.s32.totalorder %s24, 0
      %p341 = por %p339, %p340
      %p342 = scmp.ne.s32.totalorder %s331, %s334
      %p343 = scmp.eq.s32.totalorder %s29, 1
      %p344 = por %p342, %p343
      %p345 = scmp.ne.s32.totalorder %s334, %s335
      %p346 = scmp.eq.s32.totalorder %s29, 0
      %p347 = por %p345, %p346
      %p348 = scmp.ne.s32.totalorder %s334, %s335
      %p349 = scmp.eq.s32.totalorder %s30, 1
      %p350 = por %p348, %p349
      %p352 = scmp.ne.s32.totalorder %s335, %s351
      %p353 = scmp.eq.s32.totalorder %s30, 0
      %p354 = por %p352, %p353
      %s355 = ssub.s32 %s24, %s31
      %p356 = scmp.eq.s32.totalorder %s355, 0
      %s358 = sadd.s32 %s357, 1
      %s359 = scalar_select %p356, %s357, %s358
      %p362 = pneg %p356
      %p363 = scmp.eq.s32.totalorder %s24, 1
      %p364 = por %p362, %p363
      %p365 = scmp.ne.s32.totalorder %s357, %s360
      %p366 = scmp.eq.s32.totalorder %s24, 0
      %p367 = por %p365, %p366
      %p368 = scmp.ne.s32.totalorder %s357, %s360
      %p369 = scmp.eq.s32.totalorder %s29, 1
      %p370 = por %p368, %p369
      %p371 = scmp.ne.s32.totalorder %s360, %s361
      %p372 = scmp.eq.s32.totalorder %s29, 0
      %p373 = por %p371, %p372
      %p374 = scmp.ne.s32.totalorder %s360, %s361
      %p375 = scmp.eq.s32.totalorder %s30, 1
      %p376 = por %p374, %p375
      %p378 = scmp.ne.s32.totalorder %s361, %s377
      %p379 = scmp.eq.s32.totalorder %s30, 0
      %p380 = por %p378, %p379
      %s381 = ssub.s32 %s24, %s31
      %p382 = scmp.eq.s32.totalorder %s381, 0
      %s384 = sadd.s32 %s383, 1
      %s385 = scalar_select %p382, %s383, %s384
      %p388 = pneg %p382
      %p389 = scmp.eq.s32.totalorder %s24, 1
      %p390 = por %p388, %p389
      %p391 = scmp.ne.s32.totalorder %s383, %s386
      %p392 = scmp.eq.s32.totalorder %s24, 0
      %p393 = por %p391, %p392
      %p394 = scmp.ne.s32.totalorder %s383, %s386
      %p395 = scmp.eq.s32.totalorder %s29, 1
      %p396 = por %p394, %p395
      %p397 = scmp.ne.s32.totalorder %s386, %s387
      %p398 = scmp.eq.s32.totalorder %s29, 0
      %p399 = por %p397, %p398
      %p400 = scmp.ne.s32.totalorder %s386, %s387
      %p401 = scmp.eq.s32.totalorder %s30, 1
      %p402 = por %p400, %p401
      %p404 = scmp.ne.s32.totalorder %s387, %s403
      %p405 = scmp.eq.s32.totalorder %s30, 0
      %p406 = por %p404, %p405
      %s408 = sadd.s32 %s407, 1
      %p411 = scmp.eq.s32.totalorder %s24, 1
      %p412 = scmp.ne.s32.totalorder %s407, %s409
      %p413 = scmp.eq.s32.totalorder %s24, 0
      %p414 = por %p412, %p413
      %p415 = scmp.ne.s32.totalorder %s407, %s409
      %p416 = scmp.eq.s32.totalorder %s29, 1
      %p417 = por %p415, %p416
      %p418 = scmp.ne.s32.totalorder %s409, %s410
      %p419 = scmp.eq.s32.totalorder %s29, 0
      %p420 = por %p418, %p419
      %p421 = scmp.ne.s32.totalorder %s409, %s410
      %p422 = scmp.eq.s32.totalorder %s30, 1
      %p423 = por %p421, %p422
      %p425 = scmp.ne.s32.totalorder %s410, %s424
      %p426 = scmp.eq.s32.totalorder %s30, 0
      %p427 = por %p425, %p426
      %s429 = sadd.s32 %s428, 1
      %p432 = scmp.eq.s32.totalorder %s24, 1
      %p433 = scmp.ne.s32.totalorder %s428, %s430
      %p434 = scmp.eq.s32.totalorder %s24, 0
      %p435 = por %p433, %p434
      %p436 = scmp.ne.s32.totalorder %s428, %s430
      %p437 = scmp.eq.s32.totalorder %s29, 1
      %p438 = por %p436, %p437
      %p439 = scmp.ne.s32.totalorder %s430, %s431
      %p440 = scmp.eq.s32.totalorder %s29, 0
      %p441 = por %p439, %p440
      %p442 = scmp.ne.s32.totalorder %s430, %s431
      %p443 = scmp.eq.s32.totalorder %s30, 1
      %p444 = por %p442, %p443
      %p446 = scmp.ne.s32.totalorder %s431, %s445
      %p447 = scmp.eq.s32.totalorder %s30, 0
      %p448 = por %p446, %p447
      %s450 = sadd.s32 %s449, 1
      %p453 = scmp.eq.s32.totalorder %s24, 1
      %p454 = scmp.ne.s32.totalorder %s449, %s451
      %p455 = scmp.eq.s32.totalorder %s24, 0
      %p456 = por %p454, %p455
      %p457 = scmp.ne.s32.totalorder %s449, %s451
      %p458 = scmp.eq.s32.totalorder %s29, 1
      %p459 = por %p457, %p458
      %p460 = scmp.ne.s32.totalorder %s451, %s452
      %p461 = scmp.eq.s32.totalorder %s29, 0
      %p462 = por %p460, %p461
      %p463 = scmp.ne.s32.totalorder %s451, %s452
      %p464 = scmp.eq.s32.totalorder %s30, 1
      %p465 = por %p463, %p464
      %p467 = scmp.ne.s32.totalorder %s452, %s466
      %p468 = scmp.eq.s32.totalorder %s30, 0
      %p469 = por %p467, %p468
      %p470 = scmp.le.s32.totalorder 1, %s24
      %p471 = scmp.lt.s32.totalorder %s24, 3
      %p472 = pnand %p470, %p471
      %p473 = pneg %p472
      // Predicated region
      $region9: #{transformer_encoder_forward.1} parent=5 // pred_check
        _
      $region10: #{transformer_encoder_forward.1} parent=5 // pred_check_branch
        %475 = sbr.rel (%p472) target = $region12
      $region11: #{transformer_encoder_forward.1} parent=5 // pred_region
        %s476 = ssub.s32 %s24, 1
        // Predicated region
        $region13: #{transformer_encoder_forward.1} parent=11 // pred_check
          %p477 = pneg %p45
        $region14: #{transformer_encoder_forward.1} parent=11 // pred_check_branch
          %479 = sbr.rel (%p477) target = $region16
        $region15: #{transformer_encoder_forward.1} parent=11 // pred_region
          _
        $region16: #{transformer_encoder_forward.1} parent=11 // pred_fallthru
          _
        // Predicated region
        $region17: #{transformer_encoder_forward.1} parent=11 // pred_check
          %p480 = pneg %p66
        $region18: #{transformer_encoder_forward.1} parent=11 // pred_check_branch
          %482 = sbr.rel (%p480) target = $region20
        $region19: #{transformer_encoder_forward.1} parent=11 // pred_region
          _
        $region20: #{transformer_encoder_forward.1} parent=11 // pred_fallthru
          _
        // Predicated region
        $region21: #{transformer_encoder_forward.1} parent=11 // pred_check
          %p483 = pneg %p87
        $region22: #{transformer_encoder_forward.1} parent=11 // pred_check_branch
          %485 = sbr.rel (%p483) target = $region24
        $region23: #{transformer_encoder_forward.1} parent=11 // pred_region
          _
        $region24: #{transformer_encoder_forward.1} parent=11 // pred_fallthru
          _
        // Predicated region
        $region25: #{transformer_encoder_forward.1} parent=11 // pred_check
          %p486 = pneg %p420
        $region26: #{transformer_encoder_forward.1} parent=11 // pred_check_branch
          %488 = sbr.rel (%p486) target = $region28
        $region27: #{transformer_encoder_forward.1} parent=11 // pred_region
          _
        $region28: #{transformer_encoder_forward.1} parent=11 // pred_fallthru
          _
        // Predicated region
        $region29: #{transformer_encoder_forward.1} parent=11 // pred_check
          %p489 = pneg %p441
        $region30: #{transformer_encoder_forward.1} parent=11 // pred_check_branch
          %491 = sbr.rel (%p489) target = $region32
        $region31: #{transformer_encoder_forward.1} parent=11 // pred_region
          _
        $region32: #{transformer_encoder_forward.1} parent=11 // pred_fallthru
          _
      $region12: #{transformer_encoder_forward.1} parent=5 // pred_fallthru
        _
      %p492 = scmp.lt.s32.totalorder %s24, 2
      // Predicated region
      $region33: #{transformer_encoder_forward.1} parent=5 // pred_check
        %p493 = pneg %p492
      $region34: #{transformer_encoder_forward.1} parent=5 // pred_check_branch
        %495 = sbr.rel (%p493) target = $region36
      $region35: #{transformer_encoder_forward.1} parent=5 // pred_region
        // Predicated region
        $region37: #{transformer_encoder_forward.1} parent=35 // pred_check
          %p496 = pneg %p107
        $region38: #{transformer_encoder_forward.1} parent=35 // pred_check_branch
          %498 = sbr.rel (%p496) target = $region40
        $region39: #{transformer_encoder_forward.1} parent=35 // pred_region
          %p499 = scmp.lt.s32.totalorder %s24, 1
          %s500 = scalar_select %p499, %s24, 1
          %s501 = smul.addr %s500, 4
          %s502 = smul.addr %s501, 4
          %s503 = scalar_lea.vmem %s3, %s502
        $region40: #{transformer_encoder_forward.1} parent=35 // pred_fallthru
          _
        // Predicated region
        $region41: #{transformer_encoder_forward.1} parent=35 // pred_check
          %p504 = pneg %p133
        $region42: #{transformer_encoder_forward.1} parent=35 // pred_check_branch
          %506 = sbr.rel (%p504) target = $region44
        $region43: #{transformer_encoder_forward.1} parent=35 // pred_region
          %p507 = scmp.lt.s32.totalorder %s24, 1
          %s508 = scalar_select %p507, %s24, 1
          %s509 = scalar_lea.vmem %s4, %s508
        $region44: #{transformer_encoder_forward.1} parent=35 // pred_fallthru
          _
        // Predicated region
        $region45: #{transformer_encoder_forward.1} parent=35 // pred_check
          %p510 = pneg %p159
        $region46: #{transformer_encoder_forward.1} parent=35 // pred_check_branch
          %512 = sbr.rel (%p510) target = $region48
        $region47: #{transformer_encoder_forward.1} parent=35 // pred_region
          %p513 = scmp.lt.s32.totalorder %s24, 1
          %s514 = scalar_select %p513, %s24, 1
          %s515 = smul.addr %s514, 4
          %s516 = smul.addr %s515, 4
          %s517 = scalar_lea.vmem %s5, %s516
        $region48: #{transformer_encoder_forward.1} parent=35 // pred_fallthru
          _
        // Predicated region
        $region49: #{transformer_encoder_forward.1} parent=35 // pred_check
          %p518 = pneg %p185
        $region50: #{transformer_encoder_forward.1} parent=35 // pred_check_branch
          %520 = sbr.rel (%p518) target = $region52
        $region51: #{transformer_encoder_forward.1} parent=35 // pred_region
          %p521 = scmp.lt.s32.totalorder %s24, 1
          %s522 = scalar_select %p521, %s24, 1
          %s523 = scalar_lea.vmem %s6, %s522
        $region52: #{transformer_encoder_forward.1} parent=35 // pred_fallthru
          _
        // Predicated region
        $region53: #{transformer_encoder_forward.1} parent=35 // pred_check
          %p524 = pneg %p211
        $region54: #{transformer_encoder_forward.1} parent=35 // pred_check_branch
          %526 = sbr.rel (%p524) target = $region56
        $region55: #{transformer_encoder_forward.1} parent=35 // pred_region
          %p527 = scmp.lt.s32.totalorder %s24, 1
          %s528 = scalar_select %p527, %s24, 1
          %s529 = scalar_lea.vmem %s7, %s528
        $region56: #{transformer_encoder_forward.1} parent=35 // pred_fallthru
          _
        // Predicated region
        $region57: #{transformer_encoder_forward.1} parent=35 // pred_check
          %p530 = pneg %p237
        $region58: #{transformer_encoder_forward.1} parent=35 // pred_check_branch
          %532 = sbr.rel (%p530) target = $region60
        $region59: #{transformer_encoder_forward.1} parent=35 // pred_region
          %p533 = scmp.lt.s32.totalorder %s24, 1
          %s534 = scalar_select %p533, %s24, 1
          %s535 = scalar_lea.vmem %s8, %s534
        $region60: #{transformer_encoder_forward.1} parent=35 // pred_fallthru
          _
        // Predicated region
        $region61: #{transformer_encoder_forward.1} parent=35 // pred_check
          %p536 = pneg %p263
        $region62: #{transformer_encoder_forward.1} parent=35 // pred_check_branch
          %538 = sbr.rel (%p536) target = $region64
        $region63: #{transformer_encoder_forward.1} parent=35 // pred_region
          %p539 = scmp.lt.s32.totalorder %s24, 1
          %s540 = scalar_select %p539, %s24, 1
          %s541 = smul.addr %s540, 64
          %s542 = smul.addr %s541, 4
          %s543 = scalar_lea.vmem %s9, %s542
        $region64: #{transformer_encoder_forward.1} parent=35 // pred_fallthru
          _
        // Predicated region
        $region65: #{transformer_encoder_forward.1} parent=35 // pred_check
          %p544 = pneg %p289
        $region66: #{transformer_encoder_forward.1} parent=35 // pred_check_branch
          %546 = sbr.rel (%p544) target = $region68
        $region67: #{transformer_encoder_forward.1} parent=35 // pred_region
          %p547 = scmp.lt.s32.totalorder %s24, 1
          %s548 = scalar_select %p547, %s24, 1
          %s549 = smul.addr %s548, 16
          %s550 = scalar_lea.vmem %s10, %s549
        $region68: #{transformer_encoder_forward.1} parent=35 // pred_fallthru
          _
        // Predicated region
        $region69: #{transformer_encoder_forward.1} parent=35 // pred_check
          %p551 = pneg %p315
        $region70: #{transformer_encoder_forward.1} parent=35 // pred_check_branch
          %553 = sbr.rel (%p551) target = $region72
        $region71: #{transformer_encoder_forward.1} parent=35 // pred_region
          %p554 = scmp.lt.s32.totalorder %s24, 1
          %s555 = scalar_select %p554, %s24, 1
          %s556 = smul.addr %s555, 256
          %s557 = smul.addr %s556, 4
          %s558 = scalar_lea.vmem %s11, %s557
        $region72: #{transformer_encoder_forward.1} parent=35 // pred_fallthru
          _
        // Predicated region
        $region73: #{transformer_encoder_forward.1} parent=35 // pred_check
          %p559 = pneg %p341
        $region74: #{transformer_encoder_forward.1} parent=35 // pred_check_branch
          %561 = sbr.rel (%p559) target = $region76
        $region75: #{transformer_encoder_forward.1} parent=35 // pred_region
          %p562 = scmp.lt.s32.totalorder %s24, 1
          %s563 = scalar_select %p562, %s24, 1
          %s564 = scalar_lea.vmem %s12, %s563
        $region76: #{transformer_encoder_forward.1} parent=35 // pred_fallthru
          _
        // Predicated region
        $region77: #{transformer_encoder_forward.1} parent=35 // pred_check
          %p565 = pneg %p367
        $region78: #{transformer_encoder_forward.1} parent=35 // pred_check_branch
          %567 = sbr.rel (%p565) target = $region80
        $region79: #{transformer_encoder_forward.1} parent=35 // pred_region
          %p568 = scmp.lt.s32.totalorder %s24, 1
          %s569 = scalar_select %p568, %s24, 1
          %s570 = scalar_lea.vmem %s13, %s569
        $region80: #{transformer_encoder_forward.1} parent=35 // pred_fallthru
          _
        // Predicated region
        $region81: #{transformer_encoder_forward.1} parent=35 // pred_check
          %p571 = pneg %p393
        $region82: #{transformer_encoder_forward.1} parent=35 // pred_check_branch
          %573 = sbr.rel (%p571) target = $region84
        $region83: #{transformer_encoder_forward.1} parent=35 // pred_region
          %p574 = scmp.lt.s32.totalorder %s24, 1
          %s575 = scalar_select %p574, %s24, 1
          %s576 = scalar_lea.vmem %s14, %s575
        $region84: #{transformer_encoder_forward.1} parent=35 // pred_fallthru
          _
      $region36: #{transformer_encoder_forward.1} parent=5 // pred_fallthru
        _
      %p577 = scmp.le.s32.totalorder 1, %s24
      %p578 = scmp.lt.s32.totalorder %s24, 3
      %p579 = pnand %p577, %p578
      %p580 = pneg %p579
      // Predicated region
      $region85: #{transformer_encoder_forward.1} parent=5 // pred_check
        _
      $region86: #{transformer_encoder_forward.1} parent=5 // pred_check_branch
        %582 = sbr.rel (%p579) target = $region88
      $region87: #{transformer_encoder_forward.1} parent=5 // pred_region
        %s583 = ssub.s32 %s24, 1
        %p584 = pneg %p45
        %p585 = pneg %p42
        %p586 = pneg %p66
        %p587 = pneg %p63
        %p588 = pneg %p87
        %p589 = pneg %p84
        %p590 = scmp.lt.s32.totalorder %s29, 1
        %s591 = scalar_select %p590, %s29, 1
        %s592 = smul.addr %s591, 4
        %s593 = smul.addr %s592, 4
        %s594 = scalar_lea.vmem %s3, %s593
        %p595 = pneg %p113
        %p596 = pneg %p110
        %p597 = scmp.lt.s32.totalorder %s29, 1
        %s598 = scalar_select %p597, %s29, 1
        %s599 = scalar_lea.vmem %s4, %s598
        %p600 = pneg %p139
        %p601 = pneg %p136
        %p602 = scmp.lt.s32.totalorder %s29, 1
        %s603 = scalar_select %p602, %s29, 1
        %s604 = smul.addr %s603, 4
        %s605 = smul.addr %s604, 4
        %s606 = scalar_lea.vmem %s5, %s605
        %p607 = pneg %p165
        %p608 = pneg %p162
        %p609 = scmp.lt.s32.totalorder %s29, 1
        %s610 = scalar_select %p609, %s29, 1
        %s611 = scalar_lea.vmem %s6, %s610
        %p612 = pneg %p191
        %p613 = pneg %p188
        %p614 = scmp.lt.s32.totalorder %s29, 1
        %s615 = scalar_select %p614, %s29, 1
        %s616 = scalar_lea.vmem %s7, %s615
        %p617 = pneg %p217
        %p618 = pneg %p214
        %p619 = scmp.lt.s32.totalorder %s29, 1
        %s620 = scalar_select %p619, %s29, 1
        %s621 = scalar_lea.vmem %s8, %s620
        %p622 = pneg %p243
        %p623 = pneg %p240
        %p624 = scmp.lt.s32.totalorder %s29, 1
        %s625 = scalar_select %p624, %s29, 1
        %s626 = smul.addr %s625, 64
        %s627 = smul.addr %s626, 4
        %s628 = scalar_lea.vmem %s9, %s627
        %p629 = pneg %p269
        %p630 = pneg %p266
        %p631 = scmp.lt.s32.totalorder %s29, 1
        %s632 = scalar_select %p631, %s29, 1
        %s633 = smul.addr %s632, 16
        %s634 = scalar_lea.vmem %s10, %s633
        %p635 = pneg %p295
        %p636 = pneg %p292
        %p637 = scmp.lt.s32.totalorder %s29, 1
        %s638 = scalar_select %p637, %s29, 1
        %s639 = smul.addr %s638, 256
        %s640 = smul.addr %s639, 4
        %s641 = scalar_lea.vmem %s11, %s640
        %p642 = pneg %p321
        %p643 = pneg %p318
        %p644 = scmp.lt.s32.totalorder %s29, 1
        %s645 = scalar_select %p644, %s29, 1
        %s646 = scalar_lea.vmem %s12, %s645
        %p647 = pneg %p347
        %p648 = pneg %p344
        %p649 = scmp.lt.s32.totalorder %s29, 1
        %s650 = scalar_select %p649, %s29, 1
        %s651 = scalar_lea.vmem %s13, %s650
        %p652 = pneg %p373
        %p653 = pneg %p370
        %p654 = scmp.lt.s32.totalorder %s29, 1
        %s655 = scalar_select %p654, %s29, 1
        %s656 = scalar_lea.vmem %s14, %s655
        %p657 = pneg %p399
        %p658 = pneg %p396
        %p659 = pneg %p420
        %p660 = pneg %p417
        %p661 = pneg %p441
        %p662 = pneg %p438
        %p663 = pneg %p462
        %p664 = pneg %p459
        %p665 = scmp.lt.s32.totalorder %s29, 1
        %s666 = scalar_select %p665, %s29, 1
        %s667 = smul.addr %s666, 4
        %s668 = smul.addr %s667, 4
        %s669 = scalar_lea.vmem %s3, %s668
        %p670 = scmp.lt.s32.totalorder %s29, 1
        %s671 = scalar_select %p670, %s29, 1
        %s672 = scalar_lea.vmem %s4, %s671
        %p673 = scmp.lt.s32.totalorder %s29, 1
        %s674 = scalar_select %p673, %s29, 1
        %s675 = smul.addr %s674, 4
        %s676 = smul.addr %s675, 4
        %s677 = scalar_lea.vmem %s5, %s676
        %p678 = scmp.lt.s32.totalorder %s29, 1
        %s679 = scalar_select %p678, %s29, 1
        %s680 = scalar_lea.vmem %s6, %s679
        %p681 = scmp.lt.s32.totalorder %s29, 1
        %s682 = scalar_select %p681, %s29, 1
        %s683 = scalar_lea.vmem %s7, %s682
        %p684 = scmp.lt.s32.totalorder %s29, 1
        %s685 = scalar_select %p684, %s29, 1
        %s686 = scalar_lea.vmem %s8, %s685
        %p687 = scmp.lt.s32.totalorder %s29, 1
        %s688 = scalar_select %p687, %s29, 1
        %s689 = smul.addr %s688, 64
        %s690 = smul.addr %s689, 4
        %s691 = scalar_lea.vmem %s9, %s690
        %p692 = scmp.lt.s32.totalorder %s29, 1
        %s693 = scalar_select %p692, %s29, 1
        %s694 = smul.addr %s693, 16
        %s695 = scalar_lea.vmem %s10, %s694
        %p696 = scmp.lt.s32.totalorder %s29, 1
        %s697 = scalar_select %p696, %s29, 1
        %s698 = smul.addr %s697, 256
        %s699 = smul.addr %s698, 4
        %s700 = scalar_lea.vmem %s11, %s699
        %p701 = scmp.lt.s32.totalorder %s29, 1
        %s702 = scalar_select %p701, %s29, 1
        %s703 = scalar_lea.vmem %s12, %s702
        %p704 = scmp.lt.s32.totalorder %s29, 1
        %s705 = scalar_select %p704, %s29, 1
        %s706 = scalar_lea.vmem %s13, %s705
        %p707 = scmp.lt.s32.totalorder %s29, 1
        %s708 = scalar_select %p707, %s29, 1
        %s709 = scalar_lea.vmem %s14, %s708
        %p711 = scmp.eq.s32.totalorder %s29, 0
        // Predicated region
        $region89: #{transformer_encoder_forward.1} parent=87 // pred_check
          %p712 = pneg %p711
        $region90: #{transformer_encoder_forward.1} parent=87 // pred_check_branch
          %714 = sbr.rel (%p712) target = $region92
        $region91: #{transformer_encoder_forward.1} parent=87 // pred_region
          %v715 = vld [vmem:[%s0] sm:$0xff]
          %v716 = vld [vmem:[%s0 + $0x8] sm:$0xff]
          %v717 = vld [vmem:[%s1] sm:$0xff]
          %v718 = vadd.f32 %v715, %v717
          %v719 = vadd.f32 %v716, %v717
          %vm720 = vcmask 261120
          %721 = vst.msk [vmem:[#allocation2] sm:$0xff] %vm720, %v718
          %722 = vst.msk [vmem:[#allocation2 + $0x8] sm:$0xff] %vm720, %v719
        $region92: #{transformer_encoder_forward.1} parent=87 // pred_fallthru
          _
        %v723 = vld [vmem:[#allocation2] sm:$0xff]
        %v724 = vld [vmem:[#allocation2 + $0x8] sm:$0xff]
        %v725 = vld [vmem:[%s2] sm:$0x3]
        %v727 = vrot.slane %v725, 1
        %v729 = vmul.f32 %v725, -1e+30
        %v730 = vmul.f32 %v727, -1e+30
        %v731 = vpack.c.bf16 %v724, %v723
        %v732 = vld [vmem:[%s669] sm:$0xf]
        %v733 = vld [vmem:[%s669 + $0x4] sm:$0xf]
        %v734 = vld [vmem:[%s669 + $0x8] sm:$0xf]
        %v735 = vld [vmem:[%s669 + $0xc] sm:$0xf]
        %v736 = vld [vmem:[%s672] sm:$0x1]
        %v738 = vperm.slane %v736, 0
        %v744 = vunpack.c.l.b16 %v732
        %v745 = vunpack.c.l.b16 %v733
        %v746 = vunpack.c.l.b16 %v734
        %v747 = vunpack.c.l.b16 %v735
        %v748 = vpack.c.b16 %v745, %v744
        %v749 = vpack.c.b16 %v747, %v746
        %vm752 = vcmask 261120
        %v754 = vsel %vm752, %v731, 0
        %756 = vmatpush.bf16.msra.mxu0 0
        %757 = vmatpush.bf16.msra.mxu0 0
        %758 = vmatpush.bf16.msra.mxu0 0
        %759 = vmatpush.bf16.msra.mxu0 0
        %760 = vmatpush.bf16.msra.mxu0 0
        %761 = vmatpush.bf16.msra.mxu0 0
        %762 = vmatpush.bf16.msra.mxu0 %v749
        %763 = vmatpush.bf16.msra.mxu0 %v748
        %764 = vmatmul.bf16.gmra.mxu0 %v754
        %v765 = vpop.f32.mrf.mxu0
        %v766 = vadd.f32 %v738, %v765
        %v767 = vpop.f32.mrf.mxu0
        %v768 = vadd.f32 %v738, %v767
        %769 = vdwg.mxu0
        %772 = vrot.lane.b32.xlu0 %v766, 120
        %v773 = vpop.permute.xlu0 %772
        %774 = vrot.lane.b32.xlu0 %v768, 120
        %v775 = vpop.permute.xlu0 %774
        %778 = vrot.lane.b32.xlu0 %v766, 112
        %v779 = vpop.permute.xlu0 %778
        %780 = vrot.lane.b32.xlu0 %v768, 112
        %v781 = vpop.permute.xlu0 %780
        %784 = vrot.lane.b32.xlu0 %v766, 104
        %v785 = vpop.permute.xlu0 %784
        %786 = vrot.lane.b32.xlu0 %v768, 104
        %v787 = vpop.permute.xlu0 %786
        %v790 = vpack.c.bf16 %v766, %v766
        %v791 = vpack.c.bf16 %v768, %v768
        %v792 = vpack.c.bf16 %v773, %v773
        %v793 = vpack.c.bf16 %v775, %v775
        %v794 = vpack.c.bf16 %v779, %v779
        %v795 = vpack.c.bf16 %v781, %v781
        %v796 = vpack.c.bf16 %v785, %v785
        %v797 = vpack.c.bf16 %v787, %v787
        %v799 = vunpack.c.l.b16 %v790
        %v800 = vpack.c.b16 %v799, %v799
        %801 = vrot.lane.b32.xlu0 %v800, 96
        %v802 = vpop.permute.xlu0 %801
        %vm803 = vcmask 64512
        %v805 = vsel %vm803, %v790, 0
        %v808 = vsel %vm803, %v802, 0
        %810 = vmatpush.bf16.xpose.msra.mxu0 0
        %811 = vmatpush.bf16.xpose.msra.mxu0 0
        %812 = vmatpush.bf16.xpose.msra.mxu0 0
        %813 = vmatpush.bf16.xpose.msra.mxu0 0
        %814 = vmatpush.bf16.xpose.msra.mxu0 0
        %815 = vmatpush.bf16.xpose.msra.mxu0 0
        %816 = vmatpush.bf16.xpose.msra.mxu0 0
        %817 = vmatpush.bf16.xpose.msra.mxu0 %v808
        %818 = vmatmul.bf16.gmra.mxu0 %v805
        %v819 = vpop.f32.mrf.mxu0
        %v820 = vadd.f32 0.0, %v819
        %v821 = vpop.f32.mrf.mxu0
        %822 = vdwg.mxu0
        %v824 = vunpack.c.l.b16 %v791
        %v825 = vpack.c.b16 %v824, %v824
        %826 = vrot.lane.b32.xlu0 %v825, 96
        %v827 = vpop.permute.xlu0 %826
        %v829 = vsel %vm803, %v791, 0
        %v832 = vsel %vm803, %v827, 0
        %834 = vmatpush.bf16.xpose.msra.mxu0 0
        %835 = vmatpush.bf16.xpose.msra.mxu0 0
        %836 = vmatpush.bf16.xpose.msra.mxu0 0
        %837 = vmatpush.bf16.xpose.msra.mxu0 0
        %838 = vmatpush.bf16.xpose.msra.mxu0 0
        %839 = vmatpush.bf16.xpose.msra.mxu0 0
        %840 = vmatpush.bf16.xpose.msra.mxu0 0
        %841 = vmatpush.bf16.xpose.msra.mxu0 %v832
        %842 = vmatmul.bf16.gmra.mxu0 %v829
        %v843 = vpop.f32.mrf.mxu0
        %v844 = vadd.f32 0.0, %v843
        %v845 = vpop.f32.mrf.mxu0
        %846 = vdwg.mxu0
        %v848 = vunpack.c.l.b16 %v792
        %v849 = vpack.c.b16 %v848, %v848
        %850 = vrot.lane.b32.xlu0 %v849, 96
        %v851 = vpop.permute.xlu0 %850
        %v853 = vsel %vm803, %v792, 0
        %v856 = vsel %vm803, %v851, 0
        %858 = vmatpush.bf16.xpose.msra.mxu0 0
        %859 = vmatpush.bf16.xpose.msra.mxu0 0
        %860 = vmatpush.bf16.xpose.msra.mxu0 0
        %861 = vmatpush.bf16.xpose.msra.mxu0 0
        %862 = vmatpush.bf16.xpose.msra.mxu0 0
        %863 = vmatpush.bf16.xpose.msra.mxu0 0
        %864 = vmatpush.bf16.xpose.msra.mxu0 0
        %865 = vmatpush.bf16.xpose.msra.mxu0 %v856
        %866 = vmatmul.bf16.gmra.mxu0 %v853
        %v867 = vpop.f32.mrf.mxu0
        %v868 = vadd.f32 0.0, %v867
        %v869 = vpop.f32.mrf.mxu0
        %870 = vdwg.mxu0
        %v872 = vunpack.c.l.b16 %v793
        %v873 = vpack.c.b16 %v872, %v872
        %874 = vrot.lane.b32.xlu0 %v873, 96
        %v875 = vpop.permute.xlu0 %874
        %v877 = vsel %vm803, %v793, 0
        %v880 = vsel %vm803, %v875, 0
        %882 = vmatpush.bf16.xpose.msra.mxu0 0
        %883 = vmatpush.bf16.xpose.msra.mxu0 0
        %884 = vmatpush.bf16.xpose.msra.mxu0 0
        %885 = vmatpush.bf16.xpose.msra.mxu0 0
        %886 = vmatpush.bf16.xpose.msra.mxu0 0
        %887 = vmatpush.bf16.xpose.msra.mxu0 0
        %888 = vmatpush.bf16.xpose.msra.mxu0 0
        %889 = vmatpush.bf16.xpose.msra.mxu0 %v880
        %890 = vmatmul.bf16.gmra.mxu0 %v877
        %v891 = vpop.f32.mrf.mxu0
        %v892 = vadd.f32 0.0, %v891
        %v893 = vpop.f32.mrf.mxu0
        %894 = vdwg.mxu0
        %v896 = vunpack.c.l.b16 %v794
        %v897 = vpack.c.b16 %v896, %v896
        %898 = vrot.lane.b32.xlu0 %v897, 96
        %v899 = vpop.permute.xlu0 %898
        %v901 = vsel %vm803, %v794, 0
        %v904 = vsel %vm803, %v899, 0
        %906 = vmatpush.bf16.xpose.msra.mxu0 0
        %907 = vmatpush.bf16.xpose.msra.mxu0 0
        %908 = vmatpush.bf16.xpose.msra.mxu0 0
        %909 = vmatpush.bf16.xpose.msra.mxu0 0
        %910 = vmatpush.bf16.xpose.msra.mxu0 0
        %911 = vmatpush.bf16.xpose.msra.mxu0 0
        %912 = vmatpush.bf16.xpose.msra.mxu0 0
        %913 = vmatpush.bf16.xpose.msra.mxu0 %v904
        %914 = vmatmul.bf16.gmra.mxu0 %v901
        %v915 = vpop.f32.mrf.mxu0
        %v916 = vadd.f32 0.0, %v915
        %v917 = vpop.f32.mrf.mxu0
        %918 = vdwg.mxu0
        %v920 = vunpack.c.l.b16 %v795
        %v921 = vpack.c.b16 %v920, %v920
        %922 = vrot.lane.b32.xlu0 %v921, 96
        %v923 = vpop.permute.xlu0 %922
        %v925 = vsel %vm803, %v795, 0
        %v928 = vsel %vm803, %v923, 0
        %930 = vmatpush.bf16.xpose.msra.mxu0 0
        %931 = vmatpush.bf16.xpose.msra.mxu0 0
        %932 = vmatpush.bf16.xpose.msra.mxu0 0
        %933 = vmatpush.bf16.xpose.msra.mxu0 0
        %934 = vmatpush.bf16.xpose.msra.mxu0 0
        %935 = vmatpush.bf16.xpose.msra.mxu0 0
        %936 = vmatpush.bf16.xpose.msra.mxu0 0
        %937 = vmatpush.bf16.xpose.msra.mxu0 %v928
        %938 = vmatmul.bf16.gmra.mxu0 %v925
        %v939 = vpop.f32.mrf.mxu0
        %v940 = vadd.f32 0.0, %v939
        %v941 = vpop.f32.mrf.mxu0
        %942 = vdwg.mxu0
        %v944 = vunpack.c.l.b16 %v796
        %v945 = vpack.c.b16 %v944, %v944
        %946 = vrot.lane.b32.xlu0 %v945, 96
        %v947 = vpop.permute.xlu0 %946
        %v949 = vsel %vm803, %v796, 0
        %v952 = vsel %vm803, %v947, 0
        %954 = vmatpush.bf16.xpose.msra.mxu0 0
        %955 = vmatpush.bf16.xpose.msra.mxu0 0
        %956 = vmatpush.bf16.xpose.msra.mxu0 0
        %957 = vmatpush.bf16.xpose.msra.mxu0 0
        %958 = vmatpush.bf16.xpose.msra.mxu0 0
        %959 = vmatpush.bf16.xpose.msra.mxu0 0
        %960 = vmatpush.bf16.xpose.msra.mxu0 0
        %961 = vmatpush.bf16.xpose.msra.mxu0 %v952
        %962 = vmatmul.bf16.gmra.mxu0 %v949
        %v963 = vpop.f32.mrf.mxu0
        %v964 = vadd.f32 0.0, %v963
        %v965 = vpop.f32.mrf.mxu0
        %966 = vdwg.mxu0
        %v968 = vunpack.c.l.b16 %v797
        %v969 = vpack.c.b16 %v968, %v968
        %970 = vrot.lane.b32.xlu0 %v969, 96
        %v971 = vpop.permute.xlu0 %970
        %v973 = vsel %vm803, %v797, 0
        %v976 = vsel %vm803, %v971, 0
        %978 = vmatpush.bf16.xpose.msra.mxu0 0
        %979 = vmatpush.bf16.xpose.msra.mxu0 0
        %980 = vmatpush.bf16.xpose.msra.mxu0 0
        %981 = vmatpush.bf16.xpose.msra.mxu0 0
        %982 = vmatpush.bf16.xpose.msra.mxu0 0
        %983 = vmatpush.bf16.xpose.msra.mxu0 0
        %984 = vmatpush.bf16.xpose.msra.mxu0 0
        %985 = vmatpush.bf16.xpose.msra.mxu0 %v976
        %986 = vmatmul.bf16.gmra.mxu0 %v973
        %v987 = vpop.f32.mrf.mxu0
        %v988 = vadd.f32 0.0, %v987
        %v989 = vpop.f32.mrf.mxu0
        %990 = vdwg.mxu0
        %v991 = vmul.f32 %v820, 0.35355338
        %v992 = vmul.f32 %v844, 0.35355338
        %v993 = vmul.f32 %v868, 0.35355338
        %v994 = vmul.f32 %v892, 0.35355338
        %v995 = vmul.f32 %v916, 0.35355338
        %v996 = vmul.f32 %v940, 0.35355338
        %v997 = vmul.f32 %v964, 0.35355338
        %v998 = vmul.f32 %v988, 0.35355338
        %v1001 = vperm.slane %v729, 0
        %v1002 = vperm.slane %v730, 0
        %v1005 = vadd.f32 %v991, %v1001
        %v1006 = vadd.f32 %v992, %v1002
        %v1007 = vadd.f32 %v993, %v1001
        %v1008 = vadd.f32 %v994, %v1002
        %v1009 = vadd.f32 %v995, %v1001
        %v1010 = vadd.f32 %v996, %v1002
        %v1011 = vadd.f32 %v997, %v1001
        %v1012 = vadd.f32 %v998, %v1002
        %v1013 = vsel %vm803, %v1005, -inf
        %1014 = vmax.xlane.f32.xlu0 %v1013
        %v1015 = vpop.xlane.xlu0 %1014
        %v1016 = vsel %vm803, %v1006, -inf
        %1017 = vmax.xlane.f32.xlu0 %v1016
        %v1018 = vpop.xlane.xlu0 %1017
        %v1019 = vsel %vm803, %v1007, -inf
        %1020 = vmax.xlane.f32.xlu0 %v1019
        %v1021 = vpop.xlane.xlu0 %1020
        %v1022 = vsel %vm803, %v1008, -inf
        %1023 = vmax.xlane.f32.xlu0 %v1022
        %v1024 = vpop.xlane.xlu0 %1023
        %v1025 = vsel %vm803, %v1009, -inf
        %1026 = vmax.xlane.f32.xlu0 %v1025
        %v1027 = vpop.xlane.xlu0 %1026
        %v1028 = vsel %vm803, %v1010, -inf
        %1029 = vmax.xlane.f32.xlu0 %v1028
        %v1030 = vpop.xlane.xlu0 %1029
        %v1031 = vsel %vm803, %v1011, -inf
        %1032 = vmax.xlane.f32.xlu0 %v1031
        %v1033 = vpop.xlane.xlu0 %1032
        %v1034 = vsel %vm803, %v1012, -inf
        %1035 = vmax.xlane.f32.xlu0 %v1034
        %v1036 = vpop.xlane.xlu0 %1035
        %v1037 = vsub.f32 %v1005, %v1015
        %v1038 = vsub.f32 %v1006, %v1018
        %v1039 = vsub.f32 %v1007, %v1021
        %v1040 = vsub.f32 %v1008, %v1024
        %v1041 = vsub.f32 %v1009, %v1027
        %v1042 = vsub.f32 %v1010, %v1030
        %v1043 = vsub.f32 %v1011, %v1033
        %v1044 = vsub.f32 %v1012, %v1036
        %v1045 = vmul.f32 %v1037, 1.442695
        %v1046 = vpow.pop %v1045
        %v1047 = vmul.f32 %v1038, 1.442695
        %v1048 = vpow.pop %v1047
        %v1049 = vmul.f32 %v1039, 1.442695
        %v1050 = vpow.pop %v1049
        %v1051 = vmul.f32 %v1040, 1.442695
        %v1052 = vpow.pop %v1051
        %v1053 = vmul.f32 %v1041, 1.442695
        %v1054 = vpow.pop %v1053
        %v1055 = vmul.f32 %v1042, 1.442695
        %v1056 = vpow.pop %v1055
        %v1057 = vmul.f32 %v1043, 1.442695
        %v1058 = vpow.pop %v1057
        %v1059 = vmul.f32 %v1044, 1.442695
        %v1060 = vpow.pop %v1059
        %v1061 = vsel %vm803, %v1046, 0.0
        %1062 = vadd.xlane.f32.xlu0 %v1061
        %v1063 = vpop.xlane.xlu0 %1062
        %v1064 = vsel %vm803, %v1048, 0.0
        %1065 = vadd.xlane.f32.xlu0 %v1064
        %v1066 = vpop.xlane.xlu0 %1065
        %v1067 = vsel %vm803, %v1050, 0.0
        %1068 = vadd.xlane.f32.xlu0 %v1067
        %v1069 = vpop.xlane.xlu0 %1068
        %v1070 = vsel %vm803, %v1052, 0.0
        %1071 = vadd.xlane.f32.xlu0 %v1070
        %v1072 = vpop.xlane.xlu0 %1071
        %v1073 = vsel %vm803, %v1054, 0.0
        %1074 = vadd.xlane.f32.xlu0 %v1073
        %v1075 = vpop.xlane.xlu0 %1074
        %v1076 = vsel %vm803, %v1056, 0.0
        %1077 = vadd.xlane.f32.xlu0 %v1076
        %v1078 = vpop.xlane.xlu0 %1077
        %v1079 = vsel %vm803, %v1058, 0.0
        %1080 = vadd.xlane.f32.xlu0 %v1079
        %v1081 = vpop.xlane.xlu0 %1080
        %v1082 = vsel %vm803, %v1060, 0.0
        %1083 = vadd.xlane.f32.xlu0 %v1082
        %v1084 = vpop.xlane.xlu0 %1083
        %v1085 = vrcp.pop %v1063
        %v1086 = vrcp.pop %v1066
        %v1087 = vrcp.pop %v1069
        %v1088 = vrcp.pop %v1072
        %v1089 = vrcp.pop %v1075
        %v1090 = vrcp.pop %v1078
        %v1091 = vrcp.pop %v1081
        %v1092 = vrcp.pop %v1084
        %v1093 = vmul.f32 %v1046, %v1085
        %v1094 = vmul.f32 %v1048, %v1086
        %v1095 = vmul.f32 %v1050, %v1087
        %v1096 = vmul.f32 %v1052, %v1088
        %v1097 = vmul.f32 %v1054, %v1089
        %v1098 = vmul.f32 %v1056, %v1090
        %v1099 = vmul.f32 %v1058, %v1091
        %v1100 = vmul.f32 %v1060, %v1092
        %v1101 = vpack.c.bf16 %v1093, %v1093
        %v1102 = vpack.c.bf16 %v1094, %v1094
        %v1103 = vpack.c.bf16 %v1095, %v1095
        %v1104 = vpack.c.bf16 %v1096, %v1096
        %v1105 = vpack.c.bf16 %v1097, %v1097
        %v1106 = vpack.c.bf16 %v1098, %v1098
        %v1107 = vpack.c.bf16 %v1099, %v1099
        %v1108 = vpack.c.bf16 %v1100, %v1100
        %1109 = vrot.lane.b32.xlu0 %v800, 64
        %v1110 = vpop.permute.xlu0 %1109
        %v1112 = vsel %vm803, %v1101, 0
        %vm1114 = vcmask 1043456
        %v1116 = vsel %vm1114, %v1110, 0
        %1118 = vmatpush.bf16.msra.mxu0 0
        %1119 = vmatpush.bf16.msra.mxu0 0
        %1120 = vmatpush.bf16.msra.mxu0 0
        %1121 = vmatpush.bf16.msra.mxu0 0
        %1122 = vmatpush.bf16.msra.mxu0 0
        %1123 = vmatpush.bf16.msra.mxu0 0
        %1124 = vmatpush.bf16.msra.mxu0 0
        %1125 = vmatpush.bf16.msra.mxu0 %v1116
        %1126 = vmatmul.bf16.gmra.mxu0 %v1112
        %v1127 = vpop.f32.mrf.mxu0
        %v1128 = vadd.f32 0.0, %v1127
        %v1129 = vpop.f32.mrf.mxu0
        %1130 = vdwg.mxu0
        %1131 = vrot.lane.b32.xlu0 %v825, 64
        %v1132 = vpop.permute.xlu0 %1131
        %v1134 = vsel %vm803, %v1102, 0
        %v1137 = vsel %vm1114, %v1132, 0
        %1139 = vmatpush.bf16.msra.mxu0 0
        %1140 = vmatpush.bf16.msra.mxu0 0
        %1141 = vmatpush.bf16.msra.mxu0 0
        %1142 = vmatpush.bf16.msra.mxu0 0
        %1143 = vmatpush.bf16.msra.mxu0 0
        %1144 = vmatpush.bf16.msra.mxu0 0
        %1145 = vmatpush.bf16.msra.mxu0 0
        %1146 = vmatpush.bf16.msra.mxu0 %v1137
        %1147 = vmatmul.bf16.gmra.mxu0 %v1134
        %v1148 = vpop.f32.mrf.mxu0
        %v1149 = vadd.f32 0.0, %v1148
        %v1150 = vpop.f32.mrf.mxu0
        %1151 = vdwg.mxu0
        %1152 = vrot.lane.b32.xlu0 %v849, 64
        %v1153 = vpop.permute.xlu0 %1152
        %v1155 = vsel %vm803, %v1103, 0
        %v1158 = vsel %vm1114, %v1153, 0
        %1160 = vmatpush.bf16.msra.mxu0 0
        %1161 = vmatpush.bf16.msra.mxu0 0
        %1162 = vmatpush.bf16.msra.mxu0 0
        %1163 = vmatpush.bf16.msra.mxu0 0
        %1164 = vmatpush.bf16.msra.mxu0 0
        %1165 = vmatpush.bf16.msra.mxu0 0
        %1166 = vmatpush.bf16.msra.mxu0 0
        %1167 = vmatpush.bf16.msra.mxu0 %v1158
        %1168 = vmatmul.bf16.gmra.mxu0 %v1155
        %v1169 = vpop.f32.mrf.mxu0
        %v1170 = vadd.f32 0.0, %v1169
        %v1171 = vpop.f32.mrf.mxu0
        %1172 = vdwg.mxu0
        %1173 = vrot.lane.b32.xlu0 %v873, 64
        %v1174 = vpop.permute.xlu0 %1173
        %v1176 = vsel %vm803, %v1104, 0
        %v1179 = vsel %vm1114, %v1174, 0
        %1181 = vmatpush.bf16.msra.mxu0 0
        %1182 = vmatpush.bf16.msra.mxu0 0
        %1183 = vmatpush.bf16.msra.mxu0 0
        %1184 = vmatpush.bf16.msra.mxu0 0
        %1185 = vmatpush.bf16.msra.mxu0 0
        %1186 = vmatpush.bf16.msra.mxu0 0
        %1187 = vmatpush.bf16.msra.mxu0 0
        %1188 = vmatpush.bf16.msra.mxu0 %v1179
        %1189 = vmatmul.bf16.gmra.mxu0 %v1176
        %v1190 = vpop.f32.mrf.mxu0
        %v1191 = vadd.f32 0.0, %v1190
        %v1192 = vpop.f32.mrf.mxu0
        %1193 = vdwg.mxu0
        %1194 = vrot.lane.b32.xlu0 %v897, 64
        %v1195 = vpop.permute.xlu0 %1194
        %v1197 = vsel %vm803, %v1105, 0
        %v1200 = vsel %vm1114, %v1195, 0
        %1202 = vmatpush.bf16.msra.mxu0 0
        %1203 = vmatpush.bf16.msra.mxu0 0
        %1204 = vmatpush.bf16.msra.mxu0 0
        %1205 = vmatpush.bf16.msra.mxu0 0
        %1206 = vmatpush.bf16.msra.mxu0 0
        %1207 = vmatpush.bf16.msra.mxu0 0
        %1208 = vmatpush.bf16.msra.mxu0 0
        %1209 = vmatpush.bf16.msra.mxu0 %v1200
        %1210 = vmatmul.bf16.gmra.mxu0 %v1197
        %v1211 = vpop.f32.mrf.mxu0
        %v1212 = vadd.f32 0.0, %v1211
        %v1213 = vpop.f32.mrf.mxu0
        %1214 = vdwg.mxu0
        %1215 = vrot.lane.b32.xlu0 %v921, 64
        %v1216 = vpop.permute.xlu0 %1215
        %v1218 = vsel %vm803, %v1106, 0
        %v1221 = vsel %vm1114, %v1216, 0
        %1223 = vmatpush.bf16.msra.mxu0 0
        %1224 = vmatpush.bf16.msra.mxu0 0
        %1225 = vmatpush.bf16.msra.mxu0 0
        %1226 = vmatpush.bf16.msra.mxu0 0
        %1227 = vmatpush.bf16.msra.mxu0 0
        %1228 = vmatpush.bf16.msra.mxu0 0
        %1229 = vmatpush.bf16.msra.mxu0 0
        %1230 = vmatpush.bf16.msra.mxu0 %v1221
        %1231 = vmatmul.bf16.gmra.mxu0 %v1218
        %v1232 = vpop.f32.mrf.mxu0
        %v1233 = vadd.f32 0.0, %v1232
        %v1234 = vpop.f32.mrf.mxu0
        %1235 = vdwg.mxu0
        %1236 = vrot.lane.b32.xlu0 %v945, 64
        %v1237 = vpop.permute.xlu0 %1236
        %v1239 = vsel %vm803, %v1107, 0
        %v1242 = vsel %vm1114, %v1237, 0
        %1244 = vmatpush.bf16.msra.mxu0 0
        %1245 = vmatpush.bf16.msra.mxu0 0
        %1246 = vmatpush.bf16.msra.mxu0 0
        %1247 = vmatpush.bf16.msra.mxu0 0
        %1248 = vmatpush.bf16.msra.mxu0 0
        %1249 = vmatpush.bf16.msra.mxu0 0
        %1250 = vmatpush.bf16.msra.mxu0 0
        %1251 = vmatpush.bf16.msra.mxu0 %v1242
        %1252 = vmatmul.bf16.gmra.mxu0 %v1239
        %v1253 = vpop.f32.mrf.mxu0
        %v1254 = vadd.f32 0.0, %v1253
        %v1255 = vpop.f32.mrf.mxu0
        %1256 = vdwg.mxu0
        %1257 = vrot.lane.b32.xlu0 %v969, 64
        %v1258 = vpop.permute.xlu0 %1257
        %v1260 = vsel %vm803, %v1108, 0
        %v1263 = vsel %vm1114, %v1258, 0
        %1265 = vmatpush.bf16.msra.mxu0 0
        %1266 = vmatpush.bf16.msra.mxu0 0
        %1267 = vmatpush.bf16.msra.mxu0 0
        %1268 = vmatpush.bf16.msra.mxu0 0
        %1269 = vmatpush.bf16.msra.mxu0 0
        %1270 = vmatpush.bf16.msra.mxu0 0
        %1271 = vmatpush.bf16.msra.mxu0 0
        %1272 = vmatpush.bf16.msra.mxu0 %v1263
        %1273 = vmatmul.bf16.gmra.mxu0 %v1260
        %v1274 = vpop.f32.mrf.mxu0
        %v1275 = vadd.f32 0.0, %v1274
        %v1276 = vpop.f32.mrf.mxu0
        %1277 = vdwg.mxu0
        %1280 = vrot.lane.b32.xlu0 %v1170, 8
        %v1281 = vpop.permute.xlu0 %1280
        %1282 = vrot.lane.b32.xlu0 %v1191, 8
        %v1283 = vpop.permute.xlu0 %1282
        %1288 = vrot.lane.b32.xlu0 %v1212, 16
        %v1289 = vpop.permute.xlu0 %1288
        %1290 = vrot.lane.b32.xlu0 %v1233, 16
        %v1291 = vpop.permute.xlu0 %1290
        %1296 = vrot.lane.b32.xlu0 %v1254, 24
        %v1297 = vpop.permute.xlu0 %1296
        %1298 = vrot.lane.b32.xlu0 %v1275, 24
        %v1299 = vpop.permute.xlu0 %1298
        %v1302 = vsel %vm803, %v1128, %v1281
        %v1303 = vsel %vm803, %v1149, %v1283
        %vm1304 = vcmask 130048
        %v1305 = vsel %vm1304, %v1302, %v1289
        %v1306 = vsel %vm1304, %v1303, %v1291
        %vm1307 = vcmask 195584
        %v1308 = vsel %vm1307, %v1305, %v1297
        %v1309 = vsel %vm1307, %v1306, %v1299
        %v1310 = vpack.c.bf16 %v1309, %v1308
        %v1311 = vld [vmem:[%s677] sm:$0xf]
        %v1312 = vld [vmem:[%s677 + $0x4] sm:$0xf]
        %v1313 = vld [vmem:[%s677 + $0x8] sm:$0xf]
        %v1314 = vld [vmem:[%s677 + $0xc] sm:$0xf]
        %v1315 = vld [vmem:[%s680] sm:$0x1]
        %v1317 = vperm.slane %v1315, 0
        %v1323 = vunpack.c.l.b16 %v1311
        %v1324 = vunpack.c.l.b16 %v1312
        %v1325 = vunpack.c.l.b16 %v1313
        %v1326 = vunpack.c.l.b16 %v1314
        %v1327 = vpack.c.b16 %v1324, %v1323
        %v1328 = vpack.c.b16 %v1326, %v1325
        %v1332 = vsel %vm752, %v1310, 0
        %1334 = vmatpush.bf16.msra.mxu0 0
        %1335 = vmatpush.bf16.msra.mxu0 0
        %1336 = vmatpush.bf16.msra.mxu0 0
        %1337 = vmatpush.bf16.msra.mxu0 0
        %1338 = vmatpush.bf16.msra.mxu0 0
        %1339 = vmatpush.bf16.msra.mxu0 0
        %1340 = vmatpush.bf16.msra.mxu0 %v1328
        %1341 = vmatpush.bf16.msra.mxu0 %v1327
        %1342 = vmatmul.bf16.gmra.mxu0 %v1332
        %v1343 = vpop.f32.mrf.mxu0
        %v1344 = vadd.f32 %v1317, %v1343
        %v1345 = vpop.f32.mrf.mxu0
        %v1346 = vadd.f32 %v1317, %v1345
        %1347 = vdwg.mxu0
        %v1348 = vadd.f32 %v723, %v1344
        %v1349 = vadd.f32 %v724, %v1346
        %v1350 = vld [vmem:[%s683] sm:$0x1]
        %v1351 = vld [vmem:[%s686] sm:$0x1]
        %v1352 = vsel %vm752, %v1348, 0.0
        %1353 = vadd.xlane.f32.xlu0 %v1352
        %v1354 = vpop.xlane.xlu0 %1353
        %v1355 = vsel %vm752, %v1349, 0.0
        %1356 = vadd.xlane.f32.xlu0 %v1355
        %v1357 = vpop.xlane.xlu0 %1356
        %v1358 = vrcp.pop 32.0
        %v1359 = vmul.f32 32.0, %v1358
        %v1360 = vsub.f32 1.0, %v1359
        %v1361 = vmul.f32 %v1358, %v1360
        %v1362 = vadd.f32 %v1358, %v1361
        %vm1363 = vweird.f32 %v1358
        %v1364 = vsel %vm1363, %v1358, %v1362
        %v1365 = vmul.f32 %v1354, %v1364
        %v1366 = vmul.f32 %v1357, %v1364
        %v1367 = vsub.f32 %v1348, %v1365
        %v1368 = vsub.f32 %v1349, %v1366
        %v1369 = vmul.f32 %v1367, %v1367
        %v1370 = vmul.f32 %v1368, %v1368
        %v1371 = vsel %vm752, %v1369, 0.0
        %1372 = vadd.xlane.f32.xlu0 %v1371
        %v1373 = vpop.xlane.xlu0 %1372
        %v1374 = vsel %vm752, %v1370, 0.0
        %1375 = vadd.xlane.f32.xlu0 %v1374
        %v1376 = vpop.xlane.xlu0 %1375
        %v1377 = vmul.f32 %v1373, %v1364
        %v1378 = vmul.f32 %v1376, %v1364
        %v1379 = vadd.f32 %v1377, 1e-05
        %v1380 = vadd.f32 %v1378, 1e-05
        %v1381 = vrsqrt.pop %v1379
        %v1382 = vmul.f32 %v1381, %v1379
        %v1383 = vmul.f32 %v1382, %v1381
        %v1384 = vmul.f32 0.5, %v1383
        %v1385 = vsub.f32 1.5, %v1384
        %v1386 = vmul.f32 %v1381, %v1385
        %vm1387 = vweird.f32 %v1379
        %vm1388 = vweird.f32 %v1381
        %vm1389 = vmor %vm1387, %vm1388
        %v1390 = vsel %vm1389, %v1381, %v1386
        %v1391 = vrsqrt.pop %v1380
        %v1392 = vmul.f32 %v1391, %v1380
        %v1393 = vmul.f32 %v1392, %v1391
        %v1394 = vmul.f32 0.5, %v1393
        %v1395 = vsub.f32 1.5, %v1394
        %v1396 = vmul.f32 %v1391, %v1395
        %vm1397 = vweird.f32 %v1380
        %vm1398 = vweird.f32 %v1391
        %vm1399 = vmor %vm1397, %vm1398
        %v1400 = vsel %vm1399, %v1391, %v1396
        %v1401 = vmul.f32 %v1367, %v1390
        %v1402 = vmul.f32 %v1368, %v1400
        %v1404 = vperm.slane %v1350, 0
        %v1406 = vmul.f32 %v1401, %v1404
        %v1407 = vmul.f32 %v1402, %v1404
        %v1409 = vperm.slane %v1351, 0
        %v1411 = vadd.f32 %v1406, %v1409
        %v1412 = vadd.f32 %v1407, %v1409
        %v1413 = vpack.c.bf16 %v1412, %v1411
        %v1414 = vld [vmem:[%s691] sm:$0xff]
        %v1415 = vld [vmem:[%s691 + $0x8] sm:$0xff]
        %v1416 = vld [vmem:[%s691 + $0x40] sm:$0xff]
        %v1417 = vld [vmem:[%s691 + $0x48] sm:$0xff]
        %v1418 = vld [vmem:[%s691 + $0x80] sm:$0xff]
        %v1419 = vld [vmem:[%s691 + $0x88] sm:$0xff]
        %v1420 = vld [vmem:[%s691 + $0xc0] sm:$0xff]
        %v1421 = vld [vmem:[%s691 + $0xc8] sm:$0xff]
        %v1422 = vld [vmem:[%s695] sm:$0xf]
        %v1424 = vperm.slane %v1422, 0
        %v1425 = vperm.slane %v1422, 1
        %v1426 = vperm.slane %v1422, 2
        %v1427 = vperm.slane %v1422, 3
        %v1440 = vunpack.c.l.b16 %v1414
        %v1441 = vunpack.c.h.b16 %v1414
        %v1442 = vunpack.c.l.b16 %v1415
        %v1443 = vunpack.c.h.b16 %v1415
        %v1444 = vunpack.c.l.b16 %v1416
        %v1445 = vunpack.c.h.b16 %v1416
        %v1446 = vunpack.c.l.b16 %v1417
        %v1447 = vunpack.c.h.b16 %v1417
        %v1448 = vunpack.c.l.b16 %v1418
        %v1449 = vunpack.c.h.b16 %v1418
        %v1450 = vunpack.c.l.b16 %v1419
        %v1451 = vunpack.c.h.b16 %v1419
        %v1452 = vunpack.c.l.b16 %v1420
        %v1453 = vunpack.c.h.b16 %v1420
        %v1454 = vunpack.c.l.b16 %v1421
        %v1455 = vunpack.c.h.b16 %v1421
        %v1456 = vpack.c.b16 %v1444, %v1440
        %v1457 = vpack.c.b16 %v1445, %v1441
        %v1458 = vpack.c.b16 %v1446, %v1442
        %v1459 = vpack.c.b16 %v1447, %v1443
        %v1460 = vpack.c.b16 %v1452, %v1448
        %v1461 = vpack.c.b16 %v1453, %v1449
        %v1462 = vpack.c.b16 %v1454, %v1450
        %v1463 = vpack.c.b16 %v1455, %v1451
        %v1473 = vsel %vm752, %v1413, 0
        %1475 = vmatpush.bf16.msra.mxu0 0
        %1476 = vmatpush.bf16.msra.mxu0 0
        %1477 = vmatpush.bf16.msra.mxu0 0
        %1478 = vmatpush.bf16.msra.mxu0 0
        %1479 = vmatpush.bf16.msra.mxu0 0
        %1480 = vmatpush.bf16.msra.mxu0 0
        %1481 = vmatpush.bf16.msra.mxu0 %v1460
        %1482 = vmatpush.bf16.msra.mxu0 %v1456
        %1483 = vmatmul.bf16.gmra.mxu0 %v1473
        %v1484 = vpop.f32.mrf.mxu0
        %v1485 = vadd.f32 %v1424, %v1484
        %v1486 = vpop.f32.mrf.mxu0
        %v1487 = vadd.f32 %v1424, %v1486
        %1488 = vdwg.mxu0
        %1489 = vmatpush.bf16.msra.mxu0 0
        %1490 = vmatpush.bf16.msra.mxu0 0
        %1491 = vmatpush.bf16.msra.mxu0 0
        %1492 = vmatpush.bf16.msra.mxu0 0
        %1493 = vmatpush.bf16.msra.mxu0 0
        %1494 = vmatpush.bf16.msra.mxu0 0
        %1495 = vmatpush.bf16.msra.mxu0 %v1461
        %1496 = vmatpush.bf16.msra.mxu0 %v1457
        %1497 = vmatmul.bf16.gmra.mxu0 %v1473
        %v1498 = vpop.f32.mrf.mxu0
        %v1499 = vadd.f32 %v1425, %v1498
        %v1500 = vpop.f32.mrf.mxu0
        %v1501 = vadd.f32 %v1425, %v1500
        %1502 = vdwg.mxu0
        %1503 = vmatpush.bf16.msra.mxu0 0
        %1504 = vmatpush.bf16.msra.mxu0 0
        %1505 = vmatpush.bf16.msra.mxu0 0
        %1506 = vmatpush.bf16.msra.mxu0 0
        %1507 = vmatpush.bf16.msra.mxu0 0
        %1508 = vmatpush.bf16.msra.mxu0 0
        %1509 = vmatpush.bf16.msra.mxu0 %v1462
        %1510 = vmatpush.bf16.msra.mxu0 %v1458
        %1511 = vmatmul.bf16.gmra.mxu0 %v1473
        %v1512 = vpop.f32.mrf.mxu0
        %v1513 = vadd.f32 %v1426, %v1512
        %v1514 = vpop.f32.mrf.mxu0
        %v1515 = vadd.f32 %v1426, %v1514
        %1516 = vdwg.mxu0
        %1517 = vmatpush.bf16.msra.mxu0 0
        %1518 = vmatpush.bf16.msra.mxu0 0
        %1519 = vmatpush.bf16.msra.mxu0 0
        %1520 = vmatpush.bf16.msra.mxu0 0
        %1521 = vmatpush.bf16.msra.mxu0 0
        %1522 = vmatpush.bf16.msra.mxu0 0
        %1523 = vmatpush.bf16.msra.mxu0 %v1463
        %1524 = vmatpush.bf16.msra.mxu0 %v1459
        %1525 = vmatmul.bf16.gmra.mxu0 %v1473
        %v1526 = vpop.f32.mrf.mxu0
        %v1527 = vadd.f32 %v1427, %v1526
        %v1528 = vpop.f32.mrf.mxu0
        %v1529 = vadd.f32 %v1427, %v1528
        %1530 = vdwg.mxu0
        %v1531 = vmax.f32 %v1485, 0.0
        %v1532 = vmax.f32 %v1499, 0.0
        %v1533 = vmax.f32 %v1513, 0.0
        %v1534 = vmax.f32 %v1527, 0.0
        %v1535 = vmax.f32 %v1487, 0.0
        %v1536 = vmax.f32 %v1501, 0.0
        %v1537 = vmax.f32 %v1515, 0.0
        %v1538 = vmax.f32 %v1529, 0.0
        %v1539 = vpack.c.bf16 %v1535, %v1531
        %v1540 = vpack.c.bf16 %v1536, %v1532
        %v1541 = vpack.c.bf16 %v1537, %v1533
        %v1542 = vpack.c.bf16 %v1538, %v1534
        %v1543 = vld [vmem:[%s700] sm:$0xf]
        %v1544 = vld [vmem:[%s700 + $0x4] sm:$0xf]
        %v1545 = vld [vmem:[%s700 + $0x8] sm:$0xf]
        %v1546 = vld [vmem:[%s700 + $0xc] sm:$0xf]
        %v1547 = vld [vmem:[%s700 + $0x10] sm:$0xf]
        %v1548 = vld [vmem:[%s700 + $0x14] sm:$0xf]
        %v1549 = vld [vmem:[%s700 + $0x18] sm:$0xf]
        %v1550 = vld [vmem:[%s700 + $0x1c] sm:$0xf]
        %v1551 = vld [vmem:[%s700 + $0x20] sm:$0xf]
        %v1552 = vld [vmem:[%s700 + $0x24] sm:$0xf]
        %v1553 = vld [vmem:[%s700 + $0x28] sm:$0xf]
        %v1554 = vld [vmem:[%s700 + $0x2c] sm:$0xf]
        %v1555 = vld [vmem:[%s700 + $0x30] sm:$0xf]
        %v1556 = vld [vmem:[%s700 + $0x34] sm:$0xf]
        %v1557 = vld [vmem:[%s700 + $0x38] sm:$0xf]
        %v1558 = vld [vmem:[%s700 + $0x3c] sm:$0xf]
        %v1559 = vld [vmem:[%s700 + $0x40] sm:$0xf]
        %v1560 = vld [vmem:[%s700 + $0x44] sm:$0xf]
        %v1561 = vld [vmem:[%s700 + $0x48] sm:$0xf]
        %v1562 = vld [vmem:[%s700 + $0x4c] sm:$0xf]
        %v1563 = vld [vmem:[%s700 + $0x50] sm:$0xf]
        %v1564 = vld [vmem:[%s700 + $0x54] sm:$0xf]
        %v1565 = vld [vmem:[%s700 + $0x58] sm:$0xf]
        %v1566 = vld [vmem:[%s700 + $0x5c] sm:$0xf]
        %v1567 = vld [vmem:[%s700 + $0x60] sm:$0xf]
        %v1568 = vld [vmem:[%s700 + $0x64] sm:$0xf]
        %v1569 = vld [vmem:[%s700 + $0x68] sm:$0xf]
        %v1570 = vld [vmem:[%s700 + $0x6c] sm:$0xf]
        %v1571 = vld [vmem:[%s700 + $0x70] sm:$0xf]
        %v1572 = vld [vmem:[%s700 + $0x74] sm:$0xf]
        %v1573 = vld [vmem:[%s700 + $0x78] sm:$0xf]
        %v1574 = vld [vmem:[%s700 + $0x7c] sm:$0xf]
        %v1575 = vld [vmem:[%s700 + $0x80] sm:$0xf]
        %v1576 = vld [vmem:[%s700 + $0x84] sm:$0xf]
        %v1577 = vld [vmem:[%s700 + $0x88] sm:$0xf]
        %v1578 = vld [vmem:[%s700 + $0x8c] sm:$0xf]
        %v1579 = vld [vmem:[%s700 + $0x90] sm:$0xf]
        %v1580 = vld [vmem:[%s700 + $0x94] sm:$0xf]
        %v1581 = vld [vmem:[%s700 + $0x98] sm:$0xf]
        %v1582 = vld [vmem:[%s700 + $0x9c] sm:$0xf]
        %v1583 = vld [vmem:[%s700 + $0xa0] sm:$0xf]
        %v1584 = vld [vmem:[%s700 + $0xa4] sm:$0xf]
        %v1585 = vld [vmem:[%s700 + $0xa8] sm:$0xf]
        %v1586 = vld [vmem:[%s700 + $0xac] sm:$0xf]
        %v1587 = vld [vmem:[%s700 + $0xb0] sm:$0xf]
        %v1588 = vld [vmem:[%s700 + $0xb4] sm:$0xf]
        %v1589 = vld [vmem:[%s700 + $0xb8] sm:$0xf]
        %v1590 = vld [vmem:[%s700 + $0xbc] sm:$0xf]
        %v1591 = vld [vmem:[%s700 + $0xc0] sm:$0xf]
        %v1592 = vld [vmem:[%s700 + $0xc4] sm:$0xf]
        %v1593 = vld [vmem:[%s700 + $0xc8] sm:$0xf]
        %v1594 = vld [vmem:[%s700 + $0xcc] sm:$0xf]
        %v1595 = vld [vmem:[%s700 + $0xd0] sm:$0xf]
        %v1596 = vld [vmem:[%s700 + $0xd4] sm:$0xf]
        %v1597 = vld [vmem:[%s700 + $0xd8] sm:$0xf]
        %v1598 = vld [vmem:[%s700 + $0xdc] sm:$0xf]
        %v1599 = vld [vmem:[%s700 + $0xe0] sm:$0xf]
        %v1600 = vld [vmem:[%s700 + $0xe4] sm:$0xf]
        %v1601 = vld [vmem:[%s700 + $0xe8] sm:$0xf]
        %v1602 = vld [vmem:[%s700 + $0xec] sm:$0xf]
        %v1603 = vld [vmem:[%s700 + $0xf0] sm:$0xf]
        %v1604 = vld [vmem:[%s700 + $0xf4] sm:$0xf]
        %v1605 = vld [vmem:[%s700 + $0xf8] sm:$0xf]
        %v1606 = vld [vmem:[%s700 + $0xfc] sm:$0xf]
        %v1607 = vld [vmem:[%s691 + $0x10] sm:$0xff]
        %v1608 = vld [vmem:[%s691 + $0x18] sm:$0xff]
        %v1609 = vld [vmem:[%s691 + $0x50] sm:$0xff]
        %v1610 = vld [vmem:[%s691 + $0x58] sm:$0xff]
        %v1611 = vld [vmem:[%s691 + $0x90] sm:$0xff]
        %v1612 = vld [vmem:[%s691 + $0x98] sm:$0xff]
        %v1613 = vld [vmem:[%s691 + $0xd0] sm:$0xff]
        %v1614 = vld [vmem:[%s691 + $0xd8] sm:$0xff]
        %v1615 = vld [vmem:[%s695 + $0x4] sm:$0xf]
        %v1617 = vperm.slane %v1615, 0
        %v1618 = vperm.slane %v1615, 1
        %v1619 = vperm.slane %v1615, 2
        %v1620 = vperm.slane %v1615, 3
        %v1633 = vunpack.c.l.b16 %v1607
        %v1634 = vunpack.c.h.b16 %v1607
        %v1635 = vunpack.c.l.b16 %v1608
        %v1636 = vunpack.c.h.b16 %v1608
        %v1637 = vunpack.c.l.b16 %v1609
        %v1638 = vunpack.c.h.b16 %v1609
        %v1639 = vunpack.c.l.b16 %v1610
        %v1640 = vunpack.c.h.b16 %v1610
        %v1641 = vunpack.c.l.b16 %v1611
        %v1642 = vunpack.c.h.b16 %v1611
        %v1643 = vunpack.c.l.b16 %v1612
        %v1644 = vunpack.c.h.b16 %v1612
        %v1645 = vunpack.c.l.b16 %v1613
        %v1646 = vunpack.c.h.b16 %v1613
        %v1647 = vunpack.c.l.b16 %v1614
        %v1648 = vunpack.c.h.b16 %v1614
        %v1649 = vpack.c.b16 %v1637, %v1633
        %v1650 = vpack.c.b16 %v1638, %v1634
        %v1651 = vpack.c.b16 %v1639, %v1635
        %v1652 = vpack.c.b16 %v1640, %v1636
        %v1653 = vpack.c.b16 %v1645, %v1641
        %v1654 = vpack.c.b16 %v1646, %v1642
        %v1655 = vpack.c.b16 %v1647, %v1643
        %v1656 = vpack.c.b16 %v1648, %v1644
        %1665 = vmatpush.bf16.msra.mxu0 0
        %1666 = vmatpush.bf16.msra.mxu0 0
        %1667 = vmatpush.bf16.msra.mxu0 0
        %1668 = vmatpush.bf16.msra.mxu0 0
        %1669 = vmatpush.bf16.msra.mxu0 0
        %1670 = vmatpush.bf16.msra.mxu0 0
        %1671 = vmatpush.bf16.msra.mxu0 %v1653
        %1672 = vmatpush.bf16.msra.mxu0 %v1649
        %1673 = vmatmul.bf16.gmra.mxu0 %v1473
        %v1674 = vpop.f32.mrf.mxu0
        %v1675 = vadd.f32 %v1617, %v1674
        %v1676 = vpop.f32.mrf.mxu0
        %v1677 = vadd.f32 %v1617, %v1676
        %1678 = vdwg.mxu0
        %1679 = vmatpush.bf16.msra.mxu0 0
        %1680 = vmatpush.bf16.msra.mxu0 0
        %1681 = vmatpush.bf16.msra.mxu0 0
        %1682 = vmatpush.bf16.msra.mxu0 0
        %1683 = vmatpush.bf16.msra.mxu0 0
        %1684 = vmatpush.bf16.msra.mxu0 0
        %1685 = vmatpush.bf16.msra.mxu0 %v1654
        %1686 = vmatpush.bf16.msra.mxu0 %v1650
        %1687 = vmatmul.bf16.gmra.mxu0 %v1473
        %v1688 = vpop.f32.mrf.mxu0
        %v1689 = vadd.f32 %v1618, %v1688
        %v1690 = vpop.f32.mrf.mxu0
        %v1691 = vadd.f32 %v1618, %v1690
        %1692 = vdwg.mxu0
        %1693 = vmatpush.bf16.msra.mxu0 0
        %1694 = vmatpush.bf16.msra.mxu0 0
        %1695 = vmatpush.bf16.msra.mxu0 0
        %1696 = vmatpush.bf16.msra.mxu0 0
        %1697 = vmatpush.bf16.msra.mxu0 0
        %1698 = vmatpush.bf16.msra.mxu0 0
        %1699 = vmatpush.bf16.msra.mxu0 %v1655
        %1700 = vmatpush.bf16.msra.mxu0 %v1651
        %1701 = vmatmul.bf16.gmra.mxu0 %v1473
        %v1702 = vpop.f32.mrf.mxu0
        %v1703 = vadd.f32 %v1619, %v1702
        %v1704 = vpop.f32.mrf.mxu0
        %v1705 = vadd.f32 %v1619, %v1704
        %1706 = vdwg.mxu0
        %1707 = vmatpush.bf16.msra.mxu0 0
        %1708 = vmatpush.bf16.msra.mxu0 0
        %1709 = vmatpush.bf16.msra.mxu0 0
        %1710 = vmatpush.bf16.msra.mxu0 0
        %1711 = vmatpush.bf16.msra.mxu0 0
        %1712 = vmatpush.bf16.msra.mxu0 0
        %1713 = vmatpush.bf16.msra.mxu0 %v1656
        %1714 = vmatpush.bf16.msra.mxu0 %v1652
        %1715 = vmatmul.bf16.gmra.mxu0 %v1473
        %v1716 = vpop.f32.mrf.mxu0
        %v1717 = vadd.f32 %v1620, %v1716
        %v1718 = vpop.f32.mrf.mxu0
        %v1719 = vadd.f32 %v1620, %v1718
        %1720 = vdwg.mxu0
        %v1721 = vmax.f32 %v1675, 0.0
        %v1722 = vmax.f32 %v1689, 0.0
        %v1723 = vmax.f32 %v1703, 0.0
        %v1724 = vmax.f32 %v1717, 0.0
        %v1725 = vmax.f32 %v1677, 0.0
        %v1726 = vmax.f32 %v1691, 0.0
        %v1727 = vmax.f32 %v1705, 0.0
        %v1728 = vmax.f32 %v1719, 0.0
        %v1729 = vpack.c.bf16 %v1725, %v1721
        %v1730 = vpack.c.bf16 %v1726, %v1722
        %v1731 = vpack.c.bf16 %v1727, %v1723
        %v1732 = vpack.c.bf16 %v1728, %v1724
        %v1733 = vld [vmem:[%s700 + $0x100] sm:$0xf]
        %v1734 = vld [vmem:[%s700 + $0x104] sm:$0xf]
        %v1735 = vld [vmem:[%s700 + $0x108] sm:$0xf]
        %v1736 = vld [vmem:[%s700 + $0x10c] sm:$0xf]
        %v1737 = vld [vmem:[%s700 + $0x110] sm:$0xf]
        %v1738 = vld [vmem:[%s700 + $0x114] sm:$0xf]
        %v1739 = vld [vmem:[%s700 + $0x118] sm:$0xf]
        %v1740 = vld [vmem:[%s700 + $0x11c] sm:$0xf]
        %v1741 = vld [vmem:[%s700 + $0x120] sm:$0xf]
        %v1742 = vld [vmem:[%s700 + $0x124] sm:$0xf]
        %v1743 = vld [vmem:[%s700 + $0x128] sm:$0xf]
        %v1744 = vld [vmem:[%s700 + $0x12c] sm:$0xf]
        %v1745 = vld [vmem:[%s700 + $0x130] sm:$0xf]
        %v1746 = vld [vmem:[%s700 + $0x134] sm:$0xf]
        %v1747 = vld [vmem:[%s700 + $0x138] sm:$0xf]
        %v1748 = vld [vmem:[%s700 + $0x13c] sm:$0xf]
        %v1749 = vld [vmem:[%s700 + $0x140] sm:$0xf]
        %v1750 = vld [vmem:[%s700 + $0x144] sm:$0xf]
        %v1751 = vld [vmem:[%s700 + $0x148] sm:$0xf]
        %v1752 = vld [vmem:[%s700 + $0x14c] sm:$0xf]
        %v1753 = vld [vmem:[%s700 + $0x150] sm:$0xf]
        %v1754 = vld [vmem:[%s700 + $0x154] sm:$0xf]
        %v1755 = vld [vmem:[%s700 + $0x158] sm:$0xf]
        %v1756 = vld [vmem:[%s700 + $0x15c] sm:$0xf]
        %v1757 = vld [vmem:[%s700 + $0x160] sm:$0xf]
        %v1758 = vld [vmem:[%s700 + $0x164] sm:$0xf]
        %v1759 = vld [vmem:[%s700 + $0x168] sm:$0xf]
        %v1760 = vld [vmem:[%s700 + $0x16c] sm:$0xf]
        %v1761 = vld [vmem:[%s700 + $0x170] sm:$0xf]
        %v1762 = vld [vmem:[%s700 + $0x174] sm:$0xf]
        %v1763 = vld [vmem:[%s700 + $0x178] sm:$0xf]
        %v1764 = vld [vmem:[%s700 + $0x17c] sm:$0xf]
        %v1765 = vld [vmem:[%s700 + $0x180] sm:$0xf]
        %v1766 = vld [vmem:[%s700 + $0x184] sm:$0xf]
        %v1767 = vld [vmem:[%s700 + $0x188] sm:$0xf]
        %v1768 = vld [vmem:[%s700 + $0x18c] sm:$0xf]
        %v1769 = vld [vmem:[%s700 + $0x190] sm:$0xf]
        %v1770 = vld [vmem:[%s700 + $0x194] sm:$0xf]
        %v1771 = vld [vmem:[%s700 + $0x198] sm:$0xf]
        %v1772 = vld [vmem:[%s700 + $0x19c] sm:$0xf]
        %v1773 = vld [vmem:[%s700 + $0x1a0] sm:$0xf]
        %v1774 = vld [vmem:[%s700 + $0x1a4] sm:$0xf]
        %v1775 = vld [vmem:[%s700 + $0x1a8] sm:$0xf]
        %v1776 = vld [vmem:[%s700 + $0x1ac] sm:$0xf]
        %v1777 = vld [vmem:[%s700 + $0x1b0] sm:$0xf]
        %v1778 = vld [vmem:[%s700 + $0x1b4] sm:$0xf]
        %v1779 = vld [vmem:[%s700 + $0x1b8] sm:$0xf]
        %v1780 = vld [vmem:[%s700 + $0x1bc] sm:$0xf]
        %v1781 = vld [vmem:[%s700 + $0x1c0] sm:$0xf]
        %v1782 = vld [vmem:[%s700 + $0x1c4] sm:$0xf]
        %v1783 = vld [vmem:[%s700 + $0x1c8] sm:$0xf]
        %v1784 = vld [vmem:[%s700 + $0x1cc] sm:$0xf]
        %v1785 = vld [vmem:[%s700 + $0x1d0] sm:$0xf]
        %v1786 = vld [vmem:[%s700 + $0x1d4] sm:$0xf]
        %v1787 = vld [vmem:[%s700 + $0x1d8] sm:$0xf]
        %v1788 = vld [vmem:[%s700 + $0x1dc] sm:$0xf]
        %v1789 = vld [vmem:[%s700 + $0x1e0] sm:$0xf]
        %v1790 = vld [vmem:[%s700 + $0x1e4] sm:$0xf]
        %v1791 = vld [vmem:[%s700 + $0x1e8] sm:$0xf]
        %v1792 = vld [vmem:[%s700 + $0x1ec] sm:$0xf]
        %v1793 = vld [vmem:[%s700 + $0x1f0] sm:$0xf]
        %v1794 = vld [vmem:[%s700 + $0x1f4] sm:$0xf]
        %v1795 = vld [vmem:[%s700 + $0x1f8] sm:$0xf]
        %v1796 = vld [vmem:[%s700 + $0x1fc] sm:$0xf]
        %v1861 = vunpack.c.l.b16 %v1733
        %v1862 = vunpack.c.l.b16 %v1734
        %v1863 = vunpack.c.l.b16 %v1735
        %v1864 = vunpack.c.l.b16 %v1736
        %v1865 = vunpack.c.l.b16 %v1737
        %v1866 = vunpack.c.l.b16 %v1738
        %v1867 = vunpack.c.l.b16 %v1739
        %v1868 = vunpack.c.l.b16 %v1740
        %v1869 = vunpack.c.l.b16 %v1741
        %v1870 = vunpack.c.l.b16 %v1742
        %v1871 = vunpack.c.l.b16 %v1743
        %v1872 = vunpack.c.l.b16 %v1744
        %v1873 = vunpack.c.l.b16 %v1745
        %v1874 = vunpack.c.l.b16 %v1746
        %v1875 = vunpack.c.l.b16 %v1747
        %v1876 = vunpack.c.l.b16 %v1748
        %v1877 = vunpack.c.l.b16 %v1749
        %v1878 = vunpack.c.l.b16 %v1750
        %v1879 = vunpack.c.l.b16 %v1751
        %v1880 = vunpack.c.l.b16 %v1752
        %v1881 = vunpack.c.l.b16 %v1753
        %v1882 = vunpack.c.l.b16 %v1754
        %v1883 = vunpack.c.l.b16 %v1755
        %v1884 = vunpack.c.l.b16 %v1756
        %v1885 = vunpack.c.l.b16 %v1757
        %v1886 = vunpack.c.l.b16 %v1758
        %v1887 = vunpack.c.l.b16 %v1759
        %v1888 = vunpack.c.l.b16 %v1760
        %v1889 = vunpack.c.l.b16 %v1761
        %v1890 = vunpack.c.l.b16 %v1762
        %v1891 = vunpack.c.l.b16 %v1763
        %v1892 = vunpack.c.l.b16 %v1764
        %v1893 = vunpack.c.l.b16 %v1765
        %v1894 = vunpack.c.l.b16 %v1766
        %v1895 = vunpack.c.l.b16 %v1767
        %v1896 = vunpack.c.l.b16 %v1768
        %v1897 = vunpack.c.l.b16 %v1769
        %v1898 = vunpack.c.l.b16 %v1770
        %v1899 = vunpack.c.l.b16 %v1771
        %v1900 = vunpack.c.l.b16 %v1772
        %v1901 = vunpack.c.l.b16 %v1773
        %v1902 = vunpack.c.l.b16 %v1774
        %v1903 = vunpack.c.l.b16 %v1775
        %v1904 = vunpack.c.l.b16 %v1776
        %v1905 = vunpack.c.l.b16 %v1777
        %v1906 = vunpack.c.l.b16 %v1778
        %v1907 = vunpack.c.l.b16 %v1779
        %v1908 = vunpack.c.l.b16 %v1780
        %v1909 = vunpack.c.l.b16 %v1781
        %v1910 = vunpack.c.l.b16 %v1782
        %v1911 = vunpack.c.l.b16 %v1783
        %v1912 = vunpack.c.l.b16 %v1784
        %v1913 = vunpack.c.l.b16 %v1785
        %v1914 = vunpack.c.l.b16 %v1786
        %v1915 = vunpack.c.l.b16 %v1787
        %v1916 = vunpack.c.l.b16 %v1788
        %v1917 = vunpack.c.l.b16 %v1789
        %v1918 = vunpack.c.l.b16 %v1790
        %v1919 = vunpack.c.l.b16 %v1791
        %v1920 = vunpack.c.l.b16 %v1792
        %v1921 = vunpack.c.l.b16 %v1793
        %v1922 = vunpack.c.l.b16 %v1794
        %v1923 = vunpack.c.l.b16 %v1795
        %v1924 = vunpack.c.l.b16 %v1796
        %v1925 = vpack.c.b16 %v1862, %v1861
        %v1926 = vpack.c.b16 %v1864, %v1863
        %v1927 = vpack.c.b16 %v1866, %v1865
        %v1928 = vpack.c.b16 %v1868, %v1867
        %v1929 = vpack.c.b16 %v1870, %v1869
        %v1930 = vpack.c.b16 %v1872, %v1871
        %v1931 = vpack.c.b16 %v1874, %v1873
        %v1932 = vpack.c.b16 %v1876, %v1875
        %v1933 = vpack.c.b16 %v1878, %v1877
        %v1934 = vpack.c.b16 %v1880, %v1879
        %v1935 = vpack.c.b16 %v1882, %v1881
        %v1936 = vpack.c.b16 %v1884, %v1883
        %v1937 = vpack.c.b16 %v1886, %v1885
        %v1938 = vpack.c.b16 %v1888, %v1887
        %v1939 = vpack.c.b16 %v1890, %v1889
        %v1940 = vpack.c.b16 %v1892, %v1891
        %v1941 = vpack.c.b16 %v1894, %v1893
        %v1942 = vpack.c.b16 %v1896, %v1895
        %v1943 = vpack.c.b16 %v1898, %v1897
        %v1944 = vpack.c.b16 %v1900, %v1899
        %v1945 = vpack.c.b16 %v1902, %v1901
        %v1946 = vpack.c.b16 %v1904, %v1903
        %v1947 = vpack.c.b16 %v1906, %v1905
        %v1948 = vpack.c.b16 %v1908, %v1907
        %v1949 = vpack.c.b16 %v1910, %v1909
        %v1950 = vpack.c.b16 %v1912, %v1911
        %v1951 = vpack.c.b16 %v1914, %v1913
        %v1952 = vpack.c.b16 %v1916, %v1915
        %v1953 = vpack.c.b16 %v1918, %v1917
        %v1954 = vpack.c.b16 %v1920, %v1919
        %v1955 = vpack.c.b16 %v1922, %v1921
        %v1956 = vpack.c.b16 %v1924, %v1923
        %1989 = vmatpush.bf16.msra.mxu0 %v1932
        %1990 = vmatpush.bf16.msra.mxu0 %v1931
        %1991 = vmatpush.bf16.msra.mxu0 %v1930
        %1992 = vmatpush.bf16.msra.mxu0 %v1929
        %1993 = vmatpush.bf16.msra.mxu0 %v1928
        %1994 = vmatpush.bf16.msra.mxu0 %v1927
        %1995 = vmatpush.bf16.msra.mxu0 %v1926
        %1996 = vmatpush.bf16.msra.mxu0 %v1925
        %1997 = vmatmul.bf16.gmra.mxu0 %v1729
        %v1998 = vpop.f32.mrf.mxu0
        %v1999 = vadd.f32 0.0, %v1998
        %v2000 = vpop.f32.mrf.mxu0
        %v2001 = vadd.f32 0.0, %v2000
        %2002 = vdwg.mxu0
        %2003 = vmatpush.bf16.msra.mxu0 %v1940
        %2004 = vmatpush.bf16.msra.mxu0 %v1939
        %2005 = vmatpush.bf16.msra.mxu0 %v1938
        %2006 = vmatpush.bf16.msra.mxu0 %v1937
        %2007 = vmatpush.bf16.msra.mxu0 %v1936
        %2008 = vmatpush.bf16.msra.mxu0 %v1935
        %2009 = vmatpush.bf16.msra.mxu0 %v1934
        %2010 = vmatpush.bf16.msra.mxu0 %v1933
        %2011 = vmatmul.bf16.gmra.mxu0 %v1730
        %v2012 = vpop.f32.mrf.mxu0
        %v2013 = vadd.f32 %v1999, %v2012
        %v2014 = vpop.f32.mrf.mxu0
        %v2015 = vadd.f32 %v2001, %v2014
        %2016 = vdwg.mxu0
        %2017 = vmatpush.bf16.msra.mxu0 %v1948
        %2018 = vmatpush.bf16.msra.mxu0 %v1947
        %2019 = vmatpush.bf16.msra.mxu0 %v1946
        %2020 = vmatpush.bf16.msra.mxu0 %v1945
        %2021 = vmatpush.bf16.msra.mxu0 %v1944
        %2022 = vmatpush.bf16.msra.mxu0 %v1943
        %2023 = vmatpush.bf16.msra.mxu0 %v1942
        %2024 = vmatpush.bf16.msra.mxu0 %v1941
        %2025 = vmatmul.bf16.gmra.mxu0 %v1731
        %v2026 = vpop.f32.mrf.mxu0
        %v2027 = vadd.f32 %v2013, %v2026
        %v2028 = vpop.f32.mrf.mxu0
        %v2029 = vadd.f32 %v2015, %v2028
        %2030 = vdwg.mxu0
        %2031 = vmatpush.bf16.msra.mxu0 %v1956
        %2032 = vmatpush.bf16.msra.mxu0 %v1955
        %2033 = vmatpush.bf16.msra.mxu0 %v1954
        %2034 = vmatpush.bf16.msra.mxu0 %v1953
        %2035 = vmatpush.bf16.msra.mxu0 %v1952
        %2036 = vmatpush.bf16.msra.mxu0 %v1951
        %2037 = vmatpush.bf16.msra.mxu0 %v1950
        %2038 = vmatpush.bf16.msra.mxu0 %v1949
        %2039 = vmatmul.bf16.gmra.mxu0 %v1732
        %v2040 = vpop.f32.mrf.mxu0
        %v2041 = vadd.f32 %v2027, %v2040
        %v2042 = vpop.f32.mrf.mxu0
        %v2043 = vadd.f32 %v2029, %v2042
        %2044 = vdwg.mxu0
        %v2109 = vunpack.c.l.b16 %v1543
        %v2110 = vunpack.c.l.b16 %v1544
        %v2111 = vunpack.c.l.b16 %v1545
        %v2112 = vunpack.c.l.b16 %v1546
        %v2113 = vunpack.c.l.b16 %v1547
        %v2114 = vunpack.c.l.b16 %v1548
        %v2115 = vunpack.c.l.b16 %v1549
        %v2116 = vunpack.c.l.b16 %v1550
        %v2117 = vunpack.c.l.b16 %v1551
        %v2118 = vunpack.c.l.b16 %v1552
        %v2119 = vunpack.c.l.b16 %v1553
        %v2120 = vunpack.c.l.b16 %v1554
        %v2121 = vunpack.c.l.b16 %v1555
        %v2122 = vunpack.c.l.b16 %v1556
        %v2123 = vunpack.c.l.b16 %v1557
        %v2124 = vunpack.c.l.b16 %v1558
        %v2125 = vunpack.c.l.b16 %v1559
        %v2126 = vunpack.c.l.b16 %v1560
        %v2127 = vunpack.c.l.b16 %v1561
        %v2128 = vunpack.c.l.b16 %v1562
        %v2129 = vunpack.c.l.b16 %v1563
        %v2130 = vunpack.c.l.b16 %v1564
        %v2131 = vunpack.c.l.b16 %v1565
        %v2132 = vunpack.c.l.b16 %v1566
        %v2133 = vunpack.c.l.b16 %v1567
        %v2134 = vunpack.c.l.b16 %v1568
        %v2135 = vunpack.c.l.b16 %v1569
        %v2136 = vunpack.c.l.b16 %v1570
        %v2137 = vunpack.c.l.b16 %v1571
        %v2138 = vunpack.c.l.b16 %v1572
        %v2139 = vunpack.c.l.b16 %v1573
        %v2140 = vunpack.c.l.b16 %v1574
        %v2141 = vunpack.c.l.b16 %v1575
        %v2142 = vunpack.c.l.b16 %v1576
        %v2143 = vunpack.c.l.b16 %v1577
        %v2144 = vunpack.c.l.b16 %v1578
        %v2145 = vunpack.c.l.b16 %v1579
        %v2146 = vunpack.c.l.b16 %v1580
        %v2147 = vunpack.c.l.b16 %v1581
        %v2148 = vunpack.c.l.b16 %v1582
        %v2149 = vunpack.c.l.b16 %v1583
        %v2150 = vunpack.c.l.b16 %v1584
        %v2151 = vunpack.c.l.b16 %v1585
        %v2152 = vunpack.c.l.b16 %v1586
        %v2153 = vunpack.c.l.b16 %v1587
        %v2154 = vunpack.c.l.b16 %v1588
        %v2155 = vunpack.c.l.b16 %v1589
        %v2156 = vunpack.c.l.b16 %v1590
        %v2157 = vunpack.c.l.b16 %v1591
        %v2158 = vunpack.c.l.b16 %v1592
        %v2159 = vunpack.c.l.b16 %v1593
        %v2160 = vunpack.c.l.b16 %v1594
        %v2161 = vunpack.c.l.b16 %v1595
        %v2162 = vunpack.c.l.b16 %v1596
        %v2163 = vunpack.c.l.b16 %v1597
        %v2164 = vunpack.c.l.b16 %v1598
        %v2165 = vunpack.c.l.b16 %v1599
        %v2166 = vunpack.c.l.b16 %v1600
        %v2167 = vunpack.c.l.b16 %v1601
        %v2168 = vunpack.c.l.b16 %v1602
        %v2169 = vunpack.c.l.b16 %v1603
        %v2170 = vunpack.c.l.b16 %v1604
        %v2171 = vunpack.c.l.b16 %v1605
        %v2172 = vunpack.c.l.b16 %v1606
        %v2173 = vpack.c.b16 %v2110, %v2109
        %v2174 = vpack.c.b16 %v2112, %v2111
        %v2175 = vpack.c.b16 %v2114, %v2113
        %v2176 = vpack.c.b16 %v2116, %v2115
        %v2177 = vpack.c.b16 %v2118, %v2117
        %v2178 = vpack.c.b16 %v2120, %v2119
        %v2179 = vpack.c.b16 %v2122, %v2121
        %v2180 = vpack.c.b16 %v2124, %v2123
        %v2181 = vpack.c.b16 %v2126, %v2125
        %v2182 = vpack.c.b16 %v2128, %v2127
        %v2183 = vpack.c.b16 %v2130, %v2129
        %v2184 = vpack.c.b16 %v2132, %v2131
        %v2185 = vpack.c.b16 %v2134, %v2133
        %v2186 = vpack.c.b16 %v2136, %v2135
        %v2187 = vpack.c.b16 %v2138, %v2137
        %v2188 = vpack.c.b16 %v2140, %v2139
        %v2189 = vpack.c.b16 %v2142, %v2141
        %v2190 = vpack.c.b16 %v2144, %v2143
        %v2191 = vpack.c.b16 %v2146, %v2145
        %v2192 = vpack.c.b16 %v2148, %v2147
        %v2193 = vpack.c.b16 %v2150, %v2149
        %v2194 = vpack.c.b16 %v2152, %v2151
        %v2195 = vpack.c.b16 %v2154, %v2153
        %v2196 = vpack.c.b16 %v2156, %v2155
        %v2197 = vpack.c.b16 %v2158, %v2157
        %v2198 = vpack.c.b16 %v2160, %v2159
        %v2199 = vpack.c.b16 %v2162, %v2161
        %v2200 = vpack.c.b16 %v2164, %v2163
        %v2201 = vpack.c.b16 %v2166, %v2165
        %v2202 = vpack.c.b16 %v2168, %v2167
        %v2203 = vpack.c.b16 %v2170, %v2169
        %v2204 = vpack.c.b16 %v2172, %v2171
        %2237 = vmatpush.bf16.msra.mxu0 %v2180
        %2238 = vmatpush.bf16.msra.mxu0 %v2179
        %2239 = vmatpush.bf16.msra.mxu0 %v2178
        %2240 = vmatpush.bf16.msra.mxu0 %v2177
        %2241 = vmatpush.bf16.msra.mxu0 %v2176
        %2242 = vmatpush.bf16.msra.mxu0 %v2175
        %2243 = vmatpush.bf16.msra.mxu0 %v2174
        %2244 = vmatpush.bf16.msra.mxu0 %v2173
        %2245 = vmatmul.bf16.gmra.mxu0 %v1539
        %v2246 = vpop.f32.mrf.mxu0
        %v2247 = vadd.f32 %v2041, %v2246
        %v2248 = vpop.f32.mrf.mxu0
        %v2249 = vadd.f32 %v2043, %v2248
        %2250 = vdwg.mxu0
        %2251 = vmatpush.bf16.msra.mxu0 %v2188
        %2252 = vmatpush.bf16.msra.mxu0 %v2187
        %2253 = vmatpush.bf16.msra.mxu0 %v2186
        %2254 = vmatpush.bf16.msra.mxu0 %v2185
        %2255 = vmatpush.bf16.msra.mxu0 %v2184
        %2256 = vmatpush.bf16.msra.mxu0 %v2183
        %2257 = vmatpush.bf16.msra.mxu0 %v2182
        %2258 = vmatpush.bf16.msra.mxu0 %v2181
        %2259 = vmatmul.bf16.gmra.mxu0 %v1540
        %v2260 = vpop.f32.mrf.mxu0
        %v2261 = vadd.f32 %v2247, %v2260
        %v2262 = vpop.f32.mrf.mxu0
        %v2263 = vadd.f32 %v2249, %v2262
        %2264 = vdwg.mxu0
        %2265 = vmatpush.bf16.msra.mxu0 %v2196
        %2266 = vmatpush.bf16.msra.mxu0 %v2195
        %2267 = vmatpush.bf16.msra.mxu0 %v2194
        %2268 = vmatpush.bf16.msra.mxu0 %v2193
        %2269 = vmatpush.bf16.msra.mxu0 %v2192
        %2270 = vmatpush.bf16.msra.mxu0 %v2191
        %2271 = vmatpush.bf16.msra.mxu0 %v2190
        %2272 = vmatpush.bf16.msra.mxu0 %v2189
        %2273 = vmatmul.bf16.gmra.mxu0 %v1541
        %v2274 = vpop.f32.mrf.mxu0
        %v2275 = vadd.f32 %v2261, %v2274
        %v2276 = vpop.f32.mrf.mxu0
        %v2277 = vadd.f32 %v2263, %v2276
        %2278 = vdwg.mxu0
        %2279 = vmatpush.bf16.msra.mxu0 %v2204
        %2280 = vmatpush.bf16.msra.mxu0 %v2203
        %2281 = vmatpush.bf16.msra.mxu0 %v2202
        %2282 = vmatpush.bf16.msra.mxu0 %v2201
        %2283 = vmatpush.bf16.msra.mxu0 %v2200
        %2284 = vmatpush.bf16.msra.mxu0 %v2199
        %2285 = vmatpush.bf16.msra.mxu0 %v2198
        %2286 = vmatpush.bf16.msra.mxu0 %v2197
        %2287 = vmatmul.bf16.gmra.mxu0 %v1542
        %v2288 = vpop.f32.mrf.mxu0
        %v2289 = vadd.f32 %v2275, %v2288
        %v2290 = vpop.f32.mrf.mxu0
        %v2291 = vadd.f32 %v2277, %v2290
        %2292 = vdwg.mxu0
        %v2293 = vld [vmem:[%s691 + $0x20] sm:$0xff]
        %v2294 = vld [vmem:[%s691 + $0x28] sm:$0xff]
        %v2295 = vld [vmem:[%s691 + $0x60] sm:$0xff]
        %v2296 = vld [vmem:[%s691 + $0x68] sm:$0xff]
        %v2297 = vld [vmem:[%s691 + $0xa0] sm:$0xff]
        %v2298 = vld [vmem:[%s691 + $0xa8] sm:$0xff]
        %v2299 = vld [vmem:[%s691 + $0xe0] sm:$0xff]
        %v2300 = vld [vmem:[%s691 + $0xe8] sm:$0xff]
        %v2301 = vld [vmem:[%s695 + $0x8] sm:$0xf]
        %v2303 = vperm.slane %v2301, 0
        %v2304 = vperm.slane %v2301, 1
        %v2305 = vperm.slane %v2301, 2
        %v2306 = vperm.slane %v2301, 3
        %v2319 = vunpack.c.l.b16 %v2293
        %v2320 = vunpack.c.h.b16 %v2293
        %v2321 = vunpack.c.l.b16 %v2294
        %v2322 = vunpack.c.h.b16 %v2294
        %v2323 = vunpack.c.l.b16 %v2295
        %v2324 = vunpack.c.h.b16 %v2295
        %v2325 = vunpack.c.l.b16 %v2296
        %v2326 = vunpack.c.h.b16 %v2296
        %v2327 = vunpack.c.l.b16 %v2297
        %v2328 = vunpack.c.h.b16 %v2297
        %v2329 = vunpack.c.l.b16 %v2298
        %v2330 = vunpack.c.h.b16 %v2298
        %v2331 = vunpack.c.l.b16 %v2299
        %v2332 = vunpack.c.h.b16 %v2299
        %v2333 = vunpack.c.l.b16 %v2300
        %v2334 = vunpack.c.h.b16 %v2300
        %v2335 = vpack.c.b16 %v2323, %v2319
        %v2336 = vpack.c.b16 %v2324, %v2320
        %v2337 = vpack.c.b16 %v2325, %v2321
        %v2338 = vpack.c.b16 %v2326, %v2322
        %v2339 = vpack.c.b16 %v2331, %v2327
        %v2340 = vpack.c.b16 %v2332, %v2328
        %v2341 = vpack.c.b16 %v2333, %v2329
        %v2342 = vpack.c.b16 %v2334, %v2330
        %2351 = vmatpush.bf16.msra.mxu0 0
        %2352 = vmatpush.bf16.msra.mxu0 0
        %2353 = vmatpush.bf16.msra.mxu0 0
        %2354 = vmatpush.bf16.msra.mxu0 0
        %2355 = vmatpush.bf16.msra.mxu0 0
        %2356 = vmatpush.bf16.msra.mxu0 0
        %2357 = vmatpush.bf16.msra.mxu0 %v2339
        %2358 = vmatpush.bf16.msra.mxu0 %v2335
        %2359 = vmatmul.bf16.gmra.mxu0 %v1473
        %v2360 = vpop.f32.mrf.mxu0
        %v2361 = vadd.f32 %v2303, %v2360
        %v2362 = vpop.f32.mrf.mxu0
        %v2363 = vadd.f32 %v2303, %v2362
        %2364 = vdwg.mxu0
        %2365 = vmatpush.bf16.msra.mxu0 0
        %2366 = vmatpush.bf16.msra.mxu0 0
        %2367 = vmatpush.bf16.msra.mxu0 0
        %2368 = vmatpush.bf16.msra.mxu0 0
        %2369 = vmatpush.bf16.msra.mxu0 0
        %2370 = vmatpush.bf16.msra.mxu0 0
        %2371 = vmatpush.bf16.msra.mxu0 %v2340
        %2372 = vmatpush.bf16.msra.mxu0 %v2336
        %2373 = vmatmul.bf16.gmra.mxu0 %v1473
        %v2374 = vpop.f32.mrf.mxu0
        %v2375 = vadd.f32 %v2304, %v2374
        %v2376 = vpop.f32.mrf.mxu0
        %v2377 = vadd.f32 %v2304, %v2376
        %2378 = vdwg.mxu0
        %2379 = vmatpush.bf16.msra.mxu0 0
        %2380 = vmatpush.bf16.msra.mxu0 0
        %2381 = vmatpush.bf16.msra.mxu0 0
        %2382 = vmatpush.bf16.msra.mxu0 0
        %2383 = vmatpush.bf16.msra.mxu0 0
        %2384 = vmatpush.bf16.msra.mxu0 0
        %2385 = vmatpush.bf16.msra.mxu0 %v2341
        %2386 = vmatpush.bf16.msra.mxu0 %v2337
        %2387 = vmatmul.bf16.gmra.mxu0 %v1473
        %v2388 = vpop.f32.mrf.mxu0
        %v2389 = vadd.f32 %v2305, %v2388
        %v2390 = vpop.f32.mrf.mxu0
        %v2391 = vadd.f32 %v2305, %v2390
        %2392 = vdwg.mxu0
        %2393 = vmatpush.bf16.msra.mxu0 0
        %2394 = vmatpush.bf16.msra.mxu0 0
        %2395 = vmatpush.bf16.msra.mxu0 0
        %2396 = vmatpush.bf16.msra.mxu0 0
        %2397 = vmatpush.bf16.msra.mxu0 0
        %2398 = vmatpush.bf16.msra.mxu0 0
        %2399 = vmatpush.bf16.msra.mxu0 %v2342
        %2400 = vmatpush.bf16.msra.mxu0 %v2338
        %2401 = vmatmul.bf16.gmra.mxu0 %v1473
        %v2402 = vpop.f32.mrf.mxu0
        %v2403 = vadd.f32 %v2306, %v2402
        %v2404 = vpop.f32.mrf.mxu0
        %v2405 = vadd.f32 %v2306, %v2404
        %2406 = vdwg.mxu0
        %v2407 = vmax.f32 %v2361, 0.0
        %v2408 = vmax.f32 %v2375, 0.0
        %v2409 = vmax.f32 %v2389, 0.0
        %v2410 = vmax.f32 %v2403, 0.0
        %v2411 = vmax.f32 %v2363, 0.0
        %v2412 = vmax.f32 %v2377, 0.0
        %v2413 = vmax.f32 %v2391, 0.0
        %v2414 = vmax.f32 %v2405, 0.0
        %v2415 = vpack.c.bf16 %v2411, %v2407
        %v2416 = vpack.c.bf16 %v2412, %v2408
        %v2417 = vpack.c.bf16 %v2413, %v2409
        %v2418 = vpack.c.bf16 %v2414, %v2410
        %v2419 = vld [vmem:[%s700 + $0x200] sm:$0xf]
        %v2420 = vld [vmem:[%s700 + $0x204] sm:$0xf]
        %v2421 = vld [vmem:[%s700 + $0x208] sm:$0xf]
        %v2422 = vld [vmem:[%s700 + $0x20c] sm:$0xf]
        %v2423 = vld [vmem:[%s700 + $0x210] sm:$0xf]
        %v2424 = vld [vmem:[%s700 + $0x214] sm:$0xf]
        %v2425 = vld [vmem:[%s700 + $0x218] sm:$0xf]
        %v2426 = vld [vmem:[%s700 + $0x21c] sm:$0xf]
        %v2427 = vld [vmem:[%s700 + $0x220] sm:$0xf]
        %v2428 = vld [vmem:[%s700 + $0x224] sm:$0xf]
        %v2429 = vld [vmem:[%s700 + $0x228] sm:$0xf]
        %v2430 = vld [vmem:[%s700 + $0x22c] sm:$0xf]
        %v2431 = vld [vmem:[%s700 + $0x230] sm:$0xf]
        %v2432 = vld [vmem:[%s700 + $0x234] sm:$0xf]
        %v2433 = vld [vmem:[%s700 + $0x238] sm:$0xf]
        %v2434 = vld [vmem:[%s700 + $0x23c] sm:$0xf]
        %v2435 = vld [vmem:[%s700 + $0x240] sm:$0xf]
        %v2436 = vld [vmem:[%s700 + $0x244] sm:$0xf]
        %v2437 = vld [vmem:[%s700 + $0x248] sm:$0xf]
        %v2438 = vld [vmem:[%s700 + $0x24c] sm:$0xf]
        %v2439 = vld [vmem:[%s700 + $0x250] sm:$0xf]
        %v2440 = vld [vmem:[%s700 + $0x254] sm:$0xf]
        %v2441 = vld [vmem:[%s700 + $0x258] sm:$0xf]
        %v2442 = vld [vmem:[%s700 + $0x25c] sm:$0xf]
        %v2443 = vld [vmem:[%s700 + $0x260] sm:$0xf]
        %v2444 = vld [vmem:[%s700 + $0x264] sm:$0xf]
        %v2445 = vld [vmem:[%s700 + $0x268] sm:$0xf]
        %v2446 = vld [vmem:[%s700 + $0x26c] sm:$0xf]
        %v2447 = vld [vmem:[%s700 + $0x270] sm:$0xf]
        %v2448 = vld [vmem:[%s700 + $0x274] sm:$0xf]
        %v2449 = vld [vmem:[%s700 + $0x278] sm:$0xf]
        %v2450 = vld [vmem:[%s700 + $0x27c] sm:$0xf]
        %v2451 = vld [vmem:[%s700 + $0x280] sm:$0xf]
        %v2452 = vld [vmem:[%s700 + $0x284] sm:$0xf]
        %v2453 = vld [vmem:[%s700 + $0x288] sm:$0xf]
        %v2454 = vld [vmem:[%s700 + $0x28c] sm:$0xf]
        %v2455 = vld [vmem:[%s700 + $0x290] sm:$0xf]
        %v2456 = vld [vmem:[%s700 + $0x294] sm:$0xf]
        %v2457 = vld [vmem:[%s700 + $0x298] sm:$0xf]
        %v2458 = vld [vmem:[%s700 + $0x29c] sm:$0xf]
        %v2459 = vld [vmem:[%s700 + $0x2a0] sm:$0xf]
        %v2460 = vld [vmem:[%s700 + $0x2a4] sm:$0xf]
        %v2461 = vld [vmem:[%s700 + $0x2a8] sm:$0xf]
        %v2462 = vld [vmem:[%s700 + $0x2ac] sm:$0xf]
        %v2463 = vld [vmem:[%s700 + $0x2b0] sm:$0xf]
        %v2464 = vld [vmem:[%s700 + $0x2b4] sm:$0xf]
        %v2465 = vld [vmem:[%s700 + $0x2b8] sm:$0xf]
        %v2466 = vld [vmem:[%s700 + $0x2bc] sm:$0xf]
        %v2467 = vld [vmem:[%s700 + $0x2c0] sm:$0xf]
        %v2468 = vld [vmem:[%s700 + $0x2c4] sm:$0xf]
        %v2469 = vld [vmem:[%s700 + $0x2c8] sm:$0xf]
        %v2470 = vld [vmem:[%s700 + $0x2cc] sm:$0xf]
        %v2471 = vld [vmem:[%s700 + $0x2d0] sm:$0xf]
        %v2472 = vld [vmem:[%s700 + $0x2d4] sm:$0xf]
        %v2473 = vld [vmem:[%s700 + $0x2d8] sm:$0xf]
        %v2474 = vld [vmem:[%s700 + $0x2dc] sm:$0xf]
        %v2475 = vld [vmem:[%s700 + $0x2e0] sm:$0xf]
        %v2476 = vld [vmem:[%s700 + $0x2e4] sm:$0xf]
        %v2477 = vld [vmem:[%s700 + $0x2e8] sm:$0xf]
        %v2478 = vld [vmem:[%s700 + $0x2ec] sm:$0xf]
        %v2479 = vld [vmem:[%s700 + $0x2f0] sm:$0xf]
        %v2480 = vld [vmem:[%s700 + $0x2f4] sm:$0xf]
        %v2481 = vld [vmem:[%s700 + $0x2f8] sm:$0xf]
        %v2482 = vld [vmem:[%s700 + $0x2fc] sm:$0xf]
        %v2547 = vunpack.c.l.b16 %v2419
        %v2548 = vunpack.c.l.b16 %v2420
        %v2549 = vunpack.c.l.b16 %v2421
        %v2550 = vunpack.c.l.b16 %v2422
        %v2551 = vunpack.c.l.b16 %v2423
        %v2552 = vunpack.c.l.b16 %v2424
        %v2553 = vunpack.c.l.b16 %v2425
        %v2554 = vunpack.c.l.b16 %v2426
        %v2555 = vunpack.c.l.b16 %v2427
        %v2556 = vunpack.c.l.b16 %v2428
        %v2557 = vunpack.c.l.b16 %v2429
        %v2558 = vunpack.c.l.b16 %v2430
        %v2559 = vunpack.c.l.b16 %v2431
        %v2560 = vunpack.c.l.b16 %v2432
        %v2561 = vunpack.c.l.b16 %v2433
        %v2562 = vunpack.c.l.b16 %v2434
        %v2563 = vunpack.c.l.b16 %v2435
        %v2564 = vunpack.c.l.b16 %v2436
        %v2565 = vunpack.c.l.b16 %v2437
        %v2566 = vunpack.c.l.b16 %v2438
        %v2567 = vunpack.c.l.b16 %v2439
        %v2568 = vunpack.c.l.b16 %v2440
        %v2569 = vunpack.c.l.b16 %v2441
        %v2570 = vunpack.c.l.b16 %v2442
        %v2571 = vunpack.c.l.b16 %v2443
        %v2572 = vunpack.c.l.b16 %v2444
        %v2573 = vunpack.c.l.b16 %v2445
        %v2574 = vunpack.c.l.b16 %v2446
        %v2575 = vunpack.c.l.b16 %v2447
        %v2576 = vunpack.c.l.b16 %v2448
        %v2577 = vunpack.c.l.b16 %v2449
        %v2578 = vunpack.c.l.b16 %v2450
        %v2579 = vunpack.c.l.b16 %v2451
        %v2580 = vunpack.c.l.b16 %v2452
        %v2581 = vunpack.c.l.b16 %v2453
        %v2582 = vunpack.c.l.b16 %v2454
        %v2583 = vunpack.c.l.b16 %v2455
        %v2584 = vunpack.c.l.b16 %v2456
        %v2585 = vunpack.c.l.b16 %v2457
        %v2586 = vunpack.c.l.b16 %v2458
        %v2587 = vunpack.c.l.b16 %v2459
        %v2588 = vunpack.c.l.b16 %v2460
        %v2589 = vunpack.c.l.b16 %v2461
        %v2590 = vunpack.c.l.b16 %v2462
        %v2591 = vunpack.c.l.b16 %v2463
        %v2592 = vunpack.c.l.b16 %v2464
        %v2593 = vunpack.c.l.b16 %v2465
        %v2594 = vunpack.c.l.b16 %v2466
        %v2595 = vunpack.c.l.b16 %v2467
        %v2596 = vunpack.c.l.b16 %v2468
        %v2597 = vunpack.c.l.b16 %v2469
        %v2598 = vunpack.c.l.b16 %v2470
        %v2599 = vunpack.c.l.b16 %v2471
        %v2600 = vunpack.c.l.b16 %v2472
        %v2601 = vunpack.c.l.b16 %v2473
        %v2602 = vunpack.c.l.b16 %v2474
        %v2603 = vunpack.c.l.b16 %v2475
        %v2604 = vunpack.c.l.b16 %v2476
        %v2605 = vunpack.c.l.b16 %v2477
        %v2606 = vunpack.c.l.b16 %v2478
        %v2607 = vunpack.c.l.b16 %v2479
        %v2608 = vunpack.c.l.b16 %v2480
        %v2609 = vunpack.c.l.b16 %v2481
        %v2610 = vunpack.c.l.b16 %v2482
        %v2611 = vpack.c.b16 %v2548, %v2547
        %v2612 = vpack.c.b16 %v2550, %v2549
        %v2613 = vpack.c.b16 %v2552, %v2551
        %v2614 = vpack.c.b16 %v2554, %v2553
        %v2615 = vpack.c.b16 %v2556, %v2555
        %v2616 = vpack.c.b16 %v2558, %v2557
        %v2617 = vpack.c.b16 %v2560, %v2559
        %v2618 = vpack.c.b16 %v2562, %v2561
        %v2619 = vpack.c.b16 %v2564, %v2563
        %v2620 = vpack.c.b16 %v2566, %v2565
        %v2621 = vpack.c.b16 %v2568, %v2567
        %v2622 = vpack.c.b16 %v2570, %v2569
        %v2623 = vpack.c.b16 %v2572, %v2571
        %v2624 = vpack.c.b16 %v2574, %v2573
        %v2625 = vpack.c.b16 %v2576, %v2575
        %v2626 = vpack.c.b16 %v2578, %v2577
        %v2627 = vpack.c.b16 %v2580, %v2579
        %v2628 = vpack.c.b16 %v2582, %v2581
        %v2629 = vpack.c.b16 %v2584, %v2583
        %v2630 = vpack.c.b16 %v2586, %v2585
        %v2631 = vpack.c.b16 %v2588, %v2587
        %v2632 = vpack.c.b16 %v2590, %v2589
        %v2633 = vpack.c.b16 %v2592, %v2591
        %v2634 = vpack.c.b16 %v2594, %v2593
        %v2635 = vpack.c.b16 %v2596, %v2595
        %v2636 = vpack.c.b16 %v2598, %v2597
        %v2637 = vpack.c.b16 %v2600, %v2599
        %v2638 = vpack.c.b16 %v2602, %v2601
        %v2639 = vpack.c.b16 %v2604, %v2603
        %v2640 = vpack.c.b16 %v2606, %v2605
        %v2641 = vpack.c.b16 %v2608, %v2607
        %v2642 = vpack.c.b16 %v2610, %v2609
        %2675 = vmatpush.bf16.msra.mxu0 %v2618
        %2676 = vmatpush.bf16.msra.mxu0 %v2617
        %2677 = vmatpush.bf16.msra.mxu0 %v2616
        %2678 = vmatpush.bf16.msra.mxu0 %v2615
        %2679 = vmatpush.bf16.msra.mxu0 %v2614
        %2680 = vmatpush.bf16.msra.mxu0 %v2613
        %2681 = vmatpush.bf16.msra.mxu0 %v2612
        %2682 = vmatpush.bf16.msra.mxu0 %v2611
        %2683 = vmatmul.bf16.gmra.mxu0 %v2415
        %v2684 = vpop.f32.mrf.mxu0
        %v2685 = vadd.f32 0.0, %v2684
        %v2686 = vpop.f32.mrf.mxu0
        %v2687 = vadd.f32 0.0, %v2686
        %2688 = vdwg.mxu0
        %2689 = vmatpush.bf16.msra.mxu0 %v2626
        %2690 = vmatpush.bf16.msra.mxu0 %v2625
        %2691 = vmatpush.bf16.msra.mxu0 %v2624
        %2692 = vmatpush.bf16.msra.mxu0 %v2623
        %2693 = vmatpush.bf16.msra.mxu0 %v2622
        %2694 = vmatpush.bf16.msra.mxu0 %v2621
        %2695 = vmatpush.bf16.msra.mxu0 %v2620
        %2696 = vmatpush.bf16.msra.mxu0 %v2619
        %2697 = vmatmul.bf16.gmra.mxu0 %v2416
        %v2698 = vpop.f32.mrf.mxu0
        %v2699 = vadd.f32 %v2685, %v2698
        %v2700 = vpop.f32.mrf.mxu0
        %v2701 = vadd.f32 %v2687, %v2700
        %2702 = vdwg.mxu0
        %2703 = vmatpush.bf16.msra.mxu0 %v2634
        %2704 = vmatpush.bf16.msra.mxu0 %v2633
        %2705 = vmatpush.bf16.msra.mxu0 %v2632
        %2706 = vmatpush.bf16.msra.mxu0 %v2631
        %2707 = vmatpush.bf16.msra.mxu0 %v2630
        %2708 = vmatpush.bf16.msra.mxu0 %v2629
        %2709 = vmatpush.bf16.msra.mxu0 %v2628
        %2710 = vmatpush.bf16.msra.mxu0 %v2627
        %2711 = vmatmul.bf16.gmra.mxu0 %v2417
        %v2712 = vpop.f32.mrf.mxu0
        %v2713 = vadd.f32 %v2699, %v2712
        %v2714 = vpop.f32.mrf.mxu0
        %v2715 = vadd.f32 %v2701, %v2714
        %2716 = vdwg.mxu0
        %2717 = vmatpush.bf16.msra.mxu0 %v2642
        %2718 = vmatpush.bf16.msra.mxu0 %v2641
        %2719 = vmatpush.bf16.msra.mxu0 %v2640
        %2720 = vmatpush.bf16.msra.mxu0 %v2639
        %2721 = vmatpush.bf16.msra.mxu0 %v2638
        %2722 = vmatpush.bf16.msra.mxu0 %v2637
        %2723 = vmatpush.bf16.msra.mxu0 %v2636
        %2724 = vmatpush.bf16.msra.mxu0 %v2635
        %2725 = vmatmul.bf16.gmra.mxu0 %v2418
        %v2726 = vpop.f32.mrf.mxu0
        %v2727 = vadd.f32 %v2713, %v2726
        %v2728 = vpop.f32.mrf.mxu0
        %v2729 = vadd.f32 %v2715, %v2728
        %2730 = vdwg.mxu0
        %v2731 = vadd.f32 %v2289, %v2727
        %v2732 = vadd.f32 %v2291, %v2729
        %v2733 = vld [vmem:[%s691 + $0x30] sm:$0xff]
        %v2734 = vld [vmem:[%s691 + $0x38] sm:$0xff]
        %v2735 = vld [vmem:[%s691 + $0x70] sm:$0xff]
        %v2736 = vld [vmem:[%s691 + $0x78] sm:$0xff]
        %v2737 = vld [vmem:[%s691 + $0xb0] sm:$0xff]
        %v2738 = vld [vmem:[%s691 + $0xb8] sm:$0xff]
        %v2739 = vld [vmem:[%s691 + $0xf0] sm:$0xff]
        %v2740 = vld [vmem:[%s691 + $0xf8] sm:$0xff]
        %v2741 = vld [vmem:[%s695 + $0xc] sm:$0xf]
        %v2743 = vperm.slane %v2741, 0
        %v2744 = vperm.slane %v2741, 1
        %v2745 = vperm.slane %v2741, 2
        %v2746 = vperm.slane %v2741, 3
        %v2759 = vunpack.c.l.b16 %v2733
        %v2760 = vunpack.c.h.b16 %v2733
        %v2761 = vunpack.c.l.b16 %v2734
        %v2762 = vunpack.c.h.b16 %v2734
        %v2763 = vunpack.c.l.b16 %v2735
        %v2764 = vunpack.c.h.b16 %v2735
        %v2765 = vunpack.c.l.b16 %v2736
        %v2766 = vunpack.c.h.b16 %v2736
        %v2767 = vunpack.c.l.b16 %v2737
        %v2768 = vunpack.c.h.b16 %v2737
        %v2769 = vunpack.c.l.b16 %v2738
        %v2770 = vunpack.c.h.b16 %v2738
        %v2771 = vunpack.c.l.b16 %v2739
        %v2772 = vunpack.c.h.b16 %v2739
        %v2773 = vunpack.c.l.b16 %v2740
        %v2774 = vunpack.c.h.b16 %v2740
        %v2775 = vpack.c.b16 %v2763, %v2759
        %v2776 = vpack.c.b16 %v2764, %v2760
        %v2777 = vpack.c.b16 %v2765, %v2761
        %v2778 = vpack.c.b16 %v2766, %v2762
        %v2779 = vpack.c.b16 %v2771, %v2767
        %v2780 = vpack.c.b16 %v2772, %v2768
        %v2781 = vpack.c.b16 %v2773, %v2769
        %v2782 = vpack.c.b16 %v2774, %v2770
        %2791 = vmatpush.bf16.msra.mxu0 0
        %2792 = vmatpush.bf16.msra.mxu0 0
        %2793 = vmatpush.bf16.msra.mxu0 0
        %2794 = vmatpush.bf16.msra.mxu0 0
        %2795 = vmatpush.bf16.msra.mxu0 0
        %2796 = vmatpush.bf16.msra.mxu0 0
        %2797 = vmatpush.bf16.msra.mxu0 %v2779
        %2798 = vmatpush.bf16.msra.mxu0 %v2775
        %2799 = vmatmul.bf16.gmra.mxu0 %v1473
        %v2800 = vpop.f32.mrf.mxu0
        %v2801 = vadd.f32 %v2743, %v2800
        %v2802 = vpop.f32.mrf.mxu0
        %v2803 = vadd.f32 %v2743, %v2802
        %2804 = vdwg.mxu0
        %2805 = vmatpush.bf16.msra.mxu0 0
        %2806 = vmatpush.bf16.msra.mxu0 0
        %2807 = vmatpush.bf16.msra.mxu0 0
        %2808 = vmatpush.bf16.msra.mxu0 0
        %2809 = vmatpush.bf16.msra.mxu0 0
        %2810 = vmatpush.bf16.msra.mxu0 0
        %2811 = vmatpush.bf16.msra.mxu0 %v2780
        %2812 = vmatpush.bf16.msra.mxu0 %v2776
        %2813 = vmatmul.bf16.gmra.mxu0 %v1473
        %v2814 = vpop.f32.mrf.mxu0
        %v2815 = vadd.f32 %v2744, %v2814
        %v2816 = vpop.f32.mrf.mxu0
        %v2817 = vadd.f32 %v2744, %v2816
        %2818 = vdwg.mxu0
        %2819 = vmatpush.bf16.msra.mxu0 0
        %2820 = vmatpush.bf16.msra.mxu0 0
        %2821 = vmatpush.bf16.msra.mxu0 0
        %2822 = vmatpush.bf16.msra.mxu0 0
        %2823 = vmatpush.bf16.msra.mxu0 0
        %2824 = vmatpush.bf16.msra.mxu0 0
        %2825 = vmatpush.bf16.msra.mxu0 %v2781
        %2826 = vmatpush.bf16.msra.mxu0 %v2777
        %2827 = vmatmul.bf16.gmra.mxu0 %v1473
        %v2828 = vpop.f32.mrf.mxu0
        %v2829 = vadd.f32 %v2745, %v2828
        %v2830 = vpop.f32.mrf.mxu0
        %v2831 = vadd.f32 %v2745, %v2830
        %2832 = vdwg.mxu0
        %2833 = vmatpush.bf16.msra.mxu0 0
        %2834 = vmatpush.bf16.msra.mxu0 0
        %2835 = vmatpush.bf16.msra.mxu0 0
        %2836 = vmatpush.bf16.msra.mxu0 0
        %2837 = vmatpush.bf16.msra.mxu0 0
        %2838 = vmatpush.bf16.msra.mxu0 0
        %2839 = vmatpush.bf16.msra.mxu0 %v2782
        %2840 = vmatpush.bf16.msra.mxu0 %v2778
        %2841 = vmatmul.bf16.gmra.mxu0 %v1473
        %v2842 = vpop.f32.mrf.mxu0
        %v2843 = vadd.f32 %v2746, %v2842
        %v2844 = vpop.f32.mrf.mxu0
        %v2845 = vadd.f32 %v2746, %v2844
        %2846 = vdwg.mxu0
        %v2847 = vmax.f32 %v2801, 0.0
        %v2848 = vmax.f32 %v2815, 0.0
        %v2849 = vmax.f32 %v2829, 0.0
        %v2850 = vmax.f32 %v2843, 0.0
        %v2851 = vmax.f32 %v2803, 0.0
        %v2852 = vmax.f32 %v2817, 0.0
        %v2853 = vmax.f32 %v2831, 0.0
        %v2854 = vmax.f32 %v2845, 0.0
        %v2855 = vpack.c.bf16 %v2851, %v2847
        %v2856 = vpack.c.bf16 %v2852, %v2848
        %v2857 = vpack.c.bf16 %v2853, %v2849
        %v2858 = vpack.c.bf16 %v2854, %v2850
        %v2859 = vld [vmem:[%s700 + $0x300] sm:$0xf]
        %v2860 = vld [vmem:[%s700 + $0x304] sm:$0xf]
        %v2861 = vld [vmem:[%s700 + $0x308] sm:$0xf]
        %v2862 = vld [vmem:[%s700 + $0x30c] sm:$0xf]
        %v2863 = vld [vmem:[%s700 + $0x310] sm:$0xf]
        %v2864 = vld [vmem:[%s700 + $0x314] sm:$0xf]
        %v2865 = vld [vmem:[%s700 + $0x318] sm:$0xf]
        %v2866 = vld [vmem:[%s700 + $0x31c] sm:$0xf]
        %v2867 = vld [vmem:[%s700 + $0x320] sm:$0xf]
        %v2868 = vld [vmem:[%s700 + $0x324] sm:$0xf]
        %v2869 = vld [vmem:[%s700 + $0x328] sm:$0xf]
        %v2870 = vld [vmem:[%s700 + $0x32c] sm:$0xf]
        %v2871 = vld [vmem:[%s700 + $0x330] sm:$0xf]
        %v2872 = vld [vmem:[%s700 + $0x334] sm:$0xf]
        %v2873 = vld [vmem:[%s700 + $0x338] sm:$0xf]
        %v2874 = vld [vmem:[%s700 + $0x33c] sm:$0xf]
        %v2875 = vld [vmem:[%s700 + $0x340] sm:$0xf]
        %v2876 = vld [vmem:[%s700 + $0x344] sm:$0xf]
        %v2877 = vld [vmem:[%s700 + $0x348] sm:$0xf]
        %v2878 = vld [vmem:[%s700 + $0x34c] sm:$0xf]
        %v2879 = vld [vmem:[%s700 + $0x350] sm:$0xf]
        %v2880 = vld [vmem:[%s700 + $0x354] sm:$0xf]
        %v2881 = vld [vmem:[%s700 + $0x358] sm:$0xf]
        %v2882 = vld [vmem:[%s700 + $0x35c] sm:$0xf]
        %v2883 = vld [vmem:[%s700 + $0x360] sm:$0xf]
        %v2884 = vld [vmem:[%s700 + $0x364] sm:$0xf]
        %v2885 = vld [vmem:[%s700 + $0x368] sm:$0xf]
        %v2886 = vld [vmem:[%s700 + $0x36c] sm:$0xf]
        %v2887 = vld [vmem:[%s700 + $0x370] sm:$0xf]
        %v2888 = vld [vmem:[%s700 + $0x374] sm:$0xf]
        %v2889 = vld [vmem:[%s700 + $0x378] sm:$0xf]
        %v2890 = vld [vmem:[%s700 + $0x37c] sm:$0xf]
        %v2891 = vld [vmem:[%s700 + $0x380] sm:$0xf]
        %v2892 = vld [vmem:[%s700 + $0x384] sm:$0xf]
        %v2893 = vld [vmem:[%s700 + $0x388] sm:$0xf]
        %v2894 = vld [vmem:[%s700 + $0x38c] sm:$0xf]
        %v2895 = vld [vmem:[%s700 + $0x390] sm:$0xf]
        %v2896 = vld [vmem:[%s700 + $0x394] sm:$0xf]
        %v2897 = vld [vmem:[%s700 + $0x398] sm:$0xf]
        %v2898 = vld [vmem:[%s700 + $0x39c] sm:$0xf]
        %v2899 = vld [vmem:[%s700 + $0x3a0] sm:$0xf]
        %v2900 = vld [vmem:[%s700 + $0x3a4] sm:$0xf]
        %v2901 = vld [vmem:[%s700 + $0x3a8] sm:$0xf]
        %v2902 = vld [vmem:[%s700 + $0x3ac] sm:$0xf]
        %v2903 = vld [vmem:[%s700 + $0x3b0] sm:$0xf]
        %v2904 = vld [vmem:[%s700 + $0x3b4] sm:$0xf]
        %v2905 = vld [vmem:[%s700 + $0x3b8] sm:$0xf]
        %v2906 = vld [vmem:[%s700 + $0x3bc] sm:$0xf]
        %v2907 = vld [vmem:[%s700 + $0x3c0] sm:$0xf]
        %v2908 = vld [vmem:[%s700 + $0x3c4] sm:$0xf]
        %v2909 = vld [vmem:[%s700 + $0x3c8] sm:$0xf]
        %v2910 = vld [vmem:[%s700 + $0x3cc] sm:$0xf]
        %v2911 = vld [vmem:[%s700 + $0x3d0] sm:$0xf]
        %v2912 = vld [vmem:[%s700 + $0x3d4] sm:$0xf]
        %v2913 = vld [vmem:[%s700 + $0x3d8] sm:$0xf]
        %v2914 = vld [vmem:[%s700 + $0x3dc] sm:$0xf]
        %v2915 = vld [vmem:[%s700 + $0x3e0] sm:$0xf]
        %v2916 = vld [vmem:[%s700 + $0x3e4] sm:$0xf]
        %v2917 = vld [vmem:[%s700 + $0x3e8] sm:$0xf]
        %v2918 = vld [vmem:[%s700 + $0x3ec] sm:$0xf]
        %v2919 = vld [vmem:[%s700 + $0x3f0] sm:$0xf]
        %v2920 = vld [vmem:[%s700 + $0x3f4] sm:$0xf]
        %v2921 = vld [vmem:[%s700 + $0x3f8] sm:$0xf]
        %v2922 = vld [vmem:[%s700 + $0x3fc] sm:$0xf]
        %v2987 = vunpack.c.l.b16 %v2859
        %v2988 = vunpack.c.l.b16 %v2860
        %v2989 = vunpack.c.l.b16 %v2861
        %v2990 = vunpack.c.l.b16 %v2862
        %v2991 = vunpack.c.l.b16 %v2863
        %v2992 = vunpack.c.l.b16 %v2864
        %v2993 = vunpack.c.l.b16 %v2865
        %v2994 = vunpack.c.l.b16 %v2866
        %v2995 = vunpack.c.l.b16 %v2867
        %v2996 = vunpack.c.l.b16 %v2868
        %v2997 = vunpack.c.l.b16 %v2869
        %v2998 = vunpack.c.l.b16 %v2870
        %v2999 = vunpack.c.l.b16 %v2871
        %v3000 = vunpack.c.l.b16 %v2872
        %v3001 = vunpack.c.l.b16 %v2873
        %v3002 = vunpack.c.l.b16 %v2874
        %v3003 = vunpack.c.l.b16 %v2875
        %v3004 = vunpack.c.l.b16 %v2876
        %v3005 = vunpack.c.l.b16 %v2877
        %v3006 = vunpack.c.l.b16 %v2878
        %v3007 = vunpack.c.l.b16 %v2879
        %v3008 = vunpack.c.l.b16 %v2880
        %v3009 = vunpack.c.l.b16 %v2881
        %v3010 = vunpack.c.l.b16 %v2882
        %v3011 = vunpack.c.l.b16 %v2883
        %v3012 = vunpack.c.l.b16 %v2884
        %v3013 = vunpack.c.l.b16 %v2885
        %v3014 = vunpack.c.l.b16 %v2886
        %v3015 = vunpack.c.l.b16 %v2887
        %v3016 = vunpack.c.l.b16 %v2888
        %v3017 = vunpack.c.l.b16 %v2889
        %v3018 = vunpack.c.l.b16 %v2890
        %v3019 = vunpack.c.l.b16 %v2891
        %v3020 = vunpack.c.l.b16 %v2892
        %v3021 = vunpack.c.l.b16 %v2893
        %v3022 = vunpack.c.l.b16 %v2894
        %v3023 = vunpack.c.l.b16 %v2895
        %v3024 = vunpack.c.l.b16 %v2896
        %v3025 = vunpack.c.l.b16 %v2897
        %v3026 = vunpack.c.l.b16 %v2898
        %v3027 = vunpack.c.l.b16 %v2899
        %v3028 = vunpack.c.l.b16 %v2900
        %v3029 = vunpack.c.l.b16 %v2901
        %v3030 = vunpack.c.l.b16 %v2902
        %v3031 = vunpack.c.l.b16 %v2903
        %v3032 = vunpack.c.l.b16 %v2904
        %v3033 = vunpack.c.l.b16 %v2905
        %v3034 = vunpack.c.l.b16 %v2906
        %v3035 = vunpack.c.l.b16 %v2907
        %v3036 = vunpack.c.l.b16 %v2908
        %v3037 = vunpack.c.l.b16 %v2909
        %v3038 = vunpack.c.l.b16 %v2910
        %v3039 = vunpack.c.l.b16 %v2911
        %v3040 = vunpack.c.l.b16 %v2912
        %v3041 = vunpack.c.l.b16 %v2913
        %v3042 = vunpack.c.l.b16 %v2914
        %v3043 = vunpack.c.l.b16 %v2915
        %v3044 = vunpack.c.l.b16 %v2916
        %v3045 = vunpack.c.l.b16 %v2917
        %v3046 = vunpack.c.l.b16 %v2918
        %v3047 = vunpack.c.l.b16 %v2919
        %v3048 = vunpack.c.l.b16 %v2920
        %v3049 = vunpack.c.l.b16 %v2921
        %v3050 = vunpack.c.l.b16 %v2922
        %v3051 = vpack.c.b16 %v2988, %v2987
        %v3052 = vpack.c.b16 %v2990, %v2989
        %v3053 = vpack.c.b16 %v2992, %v2991
        %v3054 = vpack.c.b16 %v2994, %v2993
        %v3055 = vpack.c.b16 %v2996, %v2995
        %v3056 = vpack.c.b16 %v2998, %v2997
        %v3057 = vpack.c.b16 %v3000, %v2999
        %v3058 = vpack.c.b16 %v3002, %v3001
        %v3059 = vpack.c.b16 %v3004, %v3003
        %v3060 = vpack.c.b16 %v3006, %v3005
        %v3061 = vpack.c.b16 %v3008, %v3007
        %v3062 = vpack.c.b16 %v3010, %v3009
        %v3063 = vpack.c.b16 %v3012, %v3011
        %v3064 = vpack.c.b16 %v3014, %v3013
        %v3065 = vpack.c.b16 %v3016, %v3015
        %v3066 = vpack.c.b16 %v3018, %v3017
        %v3067 = vpack.c.b16 %v3020, %v3019
        %v3068 = vpack.c.b16 %v3022, %v3021
        %v3069 = vpack.c.b16 %v3024, %v3023
        %v3070 = vpack.c.b16 %v3026, %v3025
        %v3071 = vpack.c.b16 %v3028, %v3027
        %v3072 = vpack.c.b16 %v3030, %v3029
        %v3073 = vpack.c.b16 %v3032, %v3031
        %v3074 = vpack.c.b16 %v3034, %v3033
        %v3075 = vpack.c.b16 %v3036, %v3035
        %v3076 = vpack.c.b16 %v3038, %v3037
        %v3077 = vpack.c.b16 %v3040, %v3039
        %v3078 = vpack.c.b16 %v3042, %v3041
        %v3079 = vpack.c.b16 %v3044, %v3043
        %v3080 = vpack.c.b16 %v3046, %v3045
        %v3081 = vpack.c.b16 %v3048, %v3047
        %v3082 = vpack.c.b16 %v3050, %v3049
        %3115 = vmatpush.bf16.msra.mxu0 %v3058
        %3116 = vmatpush.bf16.msra.mxu0 %v3057
        %3117 = vmatpush.bf16.msra.mxu0 %v3056
        %3118 = vmatpush.bf16.msra.mxu0 %v3055
        %3119 = vmatpush.bf16.msra.mxu0 %v3054
        %3120 = vmatpush.bf16.msra.mxu0 %v3053
        %3121 = vmatpush.bf16.msra.mxu0 %v3052
        %3122 = vmatpush.bf16.msra.mxu0 %v3051
        %3123 = vmatmul.bf16.gmra.mxu0 %v2855
        %v3124 = vpop.f32.mrf.mxu0
        %v3125 = vadd.f32 0.0, %v3124
        %v3126 = vpop.f32.mrf.mxu0
        %v3127 = vadd.f32 0.0, %v3126
        %3128 = vdwg.mxu0
        %3129 = vmatpush.bf16.msra.mxu0 %v3066
        %3130 = vmatpush.bf16.msra.mxu0 %v3065
        %3131 = vmatpush.bf16.msra.mxu0 %v3064
        %3132 = vmatpush.bf16.msra.mxu0 %v3063
        %3133 = vmatpush.bf16.msra.mxu0 %v3062
        %3134 = vmatpush.bf16.msra.mxu0 %v3061
        %3135 = vmatpush.bf16.msra.mxu0 %v3060
        %3136 = vmatpush.bf16.msra.mxu0 %v3059
        %3137 = vmatmul.bf16.gmra.mxu0 %v2856
        %v3138 = vpop.f32.mrf.mxu0
        %v3139 = vadd.f32 %v3125, %v3138
        %v3140 = vpop.f32.mrf.mxu0
        %v3141 = vadd.f32 %v3127, %v3140
        %3142 = vdwg.mxu0
        %3143 = vmatpush.bf16.msra.mxu0 %v3074
        %3144 = vmatpush.bf16.msra.mxu0 %v3073
        %3145 = vmatpush.bf16.msra.mxu0 %v3072
        %3146 = vmatpush.bf16.msra.mxu0 %v3071
        %3147 = vmatpush.bf16.msra.mxu0 %v3070
        %3148 = vmatpush.bf16.msra.mxu0 %v3069
        %3149 = vmatpush.bf16.msra.mxu0 %v3068
        %3150 = vmatpush.bf16.msra.mxu0 %v3067
        %3151 = vmatmul.bf16.gmra.mxu0 %v2857
        %v3152 = vpop.f32.mrf.mxu0
        %v3153 = vadd.f32 %v3139, %v3152
        %v3154 = vpop.f32.mrf.mxu0
        %v3155 = vadd.f32 %v3141, %v3154
        %3156 = vdwg.mxu0
        %3157 = vmatpush.bf16.msra.mxu0 %v3082
        %3158 = vmatpush.bf16.msra.mxu0 %v3081
        %3159 = vmatpush.bf16.msra.mxu0 %v3080
        %3160 = vmatpush.bf16.msra.mxu0 %v3079
        %3161 = vmatpush.bf16.msra.mxu0 %v3078
        %3162 = vmatpush.bf16.msra.mxu0 %v3077
        %3163 = vmatpush.bf16.msra.mxu0 %v3076
        %3164 = vmatpush.bf16.msra.mxu0 %v3075
        %3165 = vmatmul.bf16.gmra.mxu0 %v2858
        %v3166 = vpop.f32.mrf.mxu0
        %v3167 = vadd.f32 %v3153, %v3166
        %v3168 = vpop.f32.mrf.mxu0
        %v3169 = vadd.f32 %v3155, %v3168
        %3170 = vdwg.mxu0
        %v3171 = vadd.f32 %v2731, %v3167
        %v3172 = vadd.f32 %v2732, %v3169
        %v3173 = vld [vmem:[%s703] sm:$0x1]
        %v3175 = vperm.slane %v3173, 0
        %v3177 = vadd.f32 %v3171, %v3175
        %v3178 = vadd.f32 %v3172, %v3175
        %v3179 = vadd.f32 %v1411, %v3177
        %v3180 = vadd.f32 %v1412, %v3178
        %v3181 = vld [vmem:[%s706] sm:$0x1]
        %v3182 = vld [vmem:[%s709] sm:$0x1]
        %v3183 = vsel %vm752, %v3179, 0.0
        %3184 = vadd.xlane.f32.xlu0 %v3183
        %v3185 = vpop.xlane.xlu0 %3184
        %v3186 = vsel %vm752, %v3180, 0.0
        %3187 = vadd.xlane.f32.xlu0 %v3186
        %v3188 = vpop.xlane.xlu0 %3187
        %v3189 = vmul.f32 %v3185, %v1364
        %v3190 = vmul.f32 %v3188, %v1364
        %v3191 = vsub.f32 %v3179, %v3189
        %v3192 = vsub.f32 %v3180, %v3190
        %v3193 = vmul.f32 %v3191, %v3191
        %v3194 = vmul.f32 %v3192, %v3192
        %v3195 = vsel %vm752, %v3193, 0.0
        %3196 = vadd.xlane.f32.xlu0 %v3195
        %v3197 = vpop.xlane.xlu0 %3196
        %v3198 = vsel %vm752, %v3194, 0.0
        %3199 = vadd.xlane.f32.xlu0 %v3198
        %v3200 = vpop.xlane.xlu0 %3199
        %v3201 = vmul.f32 %v3197, %v1364
        %v3202 = vmul.f32 %v3200, %v1364
        %v3203 = vadd.f32 %v3201, 1e-05
        %v3204 = vadd.f32 %v3202, 1e-05
        %v3205 = vrsqrt.pop %v3203
        %v3206 = vmul.f32 %v3205, %v3203
        %v3207 = vmul.f32 %v3206, %v3205
        %v3208 = vmul.f32 0.5, %v3207
        %v3209 = vsub.f32 1.5, %v3208
        %v3210 = vmul.f32 %v3205, %v3209
        %vm3211 = vweird.f32 %v3203
        %vm3212 = vweird.f32 %v3205
        %vm3213 = vmor %vm3211, %vm3212
        %v3214 = vsel %vm3213, %v3205, %v3210
        %v3215 = vrsqrt.pop %v3204
        %v3216 = vmul.f32 %v3215, %v3204
        %v3217 = vmul.f32 %v3216, %v3215
        %v3218 = vmul.f32 0.5, %v3217
        %v3219 = vsub.f32 1.5, %v3218
        %v3220 = vmul.f32 %v3215, %v3219
        %vm3221 = vweird.f32 %v3204
        %vm3222 = vweird.f32 %v3215
        %vm3223 = vmor %vm3221, %vm3222
        %v3224 = vsel %vm3223, %v3215, %v3220
        %v3225 = vmul.f32 %v3191, %v3214
        %v3226 = vmul.f32 %v3192, %v3224
        %v3228 = vperm.slane %v3181, 0
        %v3230 = vmul.f32 %v3225, %v3228
        %v3231 = vmul.f32 %v3226, %v3228
        %v3233 = vperm.slane %v3182, 0
        %v3235 = vadd.f32 %v3230, %v3233
        %v3236 = vadd.f32 %v3231, %v3233
        %3237 = vst.msk [vmem:[#allocation2] sm:$0xff] %vm752, %v3235
        %3238 = vst.msk [vmem:[#allocation2 + $0x8] sm:$0xff] %vm752, %v3236
        %p3239 = scmp.eq.s32.totalorder %s29, 1
        // Predicated region
        $region93: #{transformer_encoder_forward.1} parent=87 // pred_check
          %p3240 = pneg %p3239
        $region94: #{transformer_encoder_forward.1} parent=87 // pred_check_branch
          %3242 = sbr.rel (%p3240) target = $region96
        $region95: #{transformer_encoder_forward.1} parent=87 // pred_region
          %v3243 = vsel %vm752, %v3235, 0.0
          %v3244 = vrot.slane %v3243, 4
          %v3245 = vadd.f32 %v3243, %v3244
          %v3246 = vrot.slane %v3245, 2
          %v3247 = vadd.f32 %v3245, %v3246
          %v3248 = vrot.slane %v3247, 1
          %v3249 = vadd.f32 %v3247, %v3248
          %v3250 = vsel %vm752, %v3236, 0.0
          %v3251 = vrot.slane %v3250, 4
          %v3252 = vadd.f32 %v3250, %v3251
          %v3253 = vrot.slane %v3252, 2
          %v3254 = vadd.f32 %v3252, %v3253
          %v3255 = vrot.slane %v3254, 1
          %v3256 = vadd.f32 %v3254, %v3255
          %v3257 = vrcp.pop 8.0
          %v3258 = vmul.f32 8.0, %v3257
          %v3259 = vsub.f32 1.0, %v3258
          %v3260 = vmul.f32 %v3257, %v3259
          %v3261 = vadd.f32 %v3257, %v3260
          %vm3262 = vweird.f32 %v3257
          %v3263 = vsel %vm3262, %v3257, %v3261
          %v3264 = vmul.f32 %v3249, %v3263
          %v3265 = vmul.f32 %v3256, %v3263
          %v3266 = vpack.c.bf16 %v3264, %v3264
          %v3267 = vpack.c.bf16 %v3265, %v3265
          %v3268 = vld [vmem:[%s15] sm:$0xf]
          %v3269 = vld [vmem:[%s15 + $0x4] sm:$0xf]
          %v3270 = vld [vmem:[%s15 + $0x8] sm:$0xf]
          %v3271 = vld [vmem:[%s15 + $0xc] sm:$0xf]
          %v3272 = vld [vmem:[%s16] sm:$0x1]
          %v3274 = vperm.slane %v3272, 0
          %v3278 = vunpack.c.l.b16 %v3266
          %v3279 = vunpack.c.l.b16 %v3267
          %vm3280 = vcmask 1041409
          %v3281 = vsel %vm3280, %v3279, %v3278
          %v3282 = vpack.c.b16 %v3281, %v3281
          %v3287 = vunpack.c.l.b16 %v3268
          %v3288 = vunpack.c.l.b16 %v3269
          %v3289 = vunpack.c.l.b16 %v3270
          %v3290 = vunpack.c.l.b16 %v3271
          %v3291 = vpack.c.b16 %v3288, %v3287
          %v3292 = vpack.c.b16 %v3290, %v3289
          %v3296 = vsel %vm752, %v3282, 0
          %3298 = vmatpush.bf16.msra.mxu0 0
          %3299 = vmatpush.bf16.msra.mxu0 0
          %3300 = vmatpush.bf16.msra.mxu0 0
          %3301 = vmatpush.bf16.msra.mxu0 0
          %3302 = vmatpush.bf16.msra.mxu0 0
          %3303 = vmatpush.bf16.msra.mxu0 0
          %3304 = vmatpush.bf16.msra.mxu0 %v3292
          %3305 = vmatpush.bf16.msra.mxu0 %v3291
          %3306 = vmatmul.bf16.gmra.mxu0 %v3296
          %v3307 = vpop.f32.mrf.mxu0
          %v3308 = vadd.f32 %v3274, %v3307
          %v3309 = vpop.f32.mrf.mxu0
          %3310 = vdwg.mxu0
          %vm3311 = vcmask 58368
          %3312 = vst.msk [vmem:[#allocation3] sm:$0x3] %vm3311, %v3308
        $region96: #{transformer_encoder_forward.1} parent=87 // pred_fallthru
          _
        // Predicated region
        $region97: #{transformer_encoder_forward.1} parent=87 // pred_check
          %p3313 = pneg %p459
        $region98: #{transformer_encoder_forward.1} parent=87 // pred_check_branch
          %3315 = sbr.rel (%p3313) target = $region100
        $region99: #{transformer_encoder_forward.1} parent=87 // pred_region
          %3317 = vsyncadd [#allocation4], 0
          %s3319 = sshll.u32 [#allocation3], 4
          %s3320 = int_to_ptr.vmem [resolvable:$true] %s3319
          %s3321 = sshll.u32 %s17, 4
          %s3322 = int_to_ptr.hbm [resolvable:$true] %s3321
          %3324 = dma.vmem_to_hbm [thread:$0]  %s3320, 32, %s3322, [#allocation4]
        $region100: #{transformer_encoder_forward.1} parent=87 // pred_fallthru
          _
        // Predicated region
        $region101: #{transformer_encoder_forward.1} parent=87 // pred_check
          %p3325 = pneg %p459
        $region102: #{transformer_encoder_forward.1} parent=87 // pred_check_branch
          %3327 = sbr.rel (%p3325) target = $region104
        $region103: #{transformer_encoder_forward.1} parent=87 // pred_region
          %3329 = dma.done [#allocation4], 32
        $region104: #{transformer_encoder_forward.1} parent=87 // pred_fallthru
          _
      $region88: #{transformer_encoder_forward.1} parent=5 // pred_fallthru
        _
      %p3330 = scmp.le.s32.totalorder 2, %s24
      // Predicated region
      $region105: #{transformer_encoder_forward.1} parent=5 // pred_check
        %p3331 = pneg %p3330
      $region106: #{transformer_encoder_forward.1} parent=5 // pred_check_branch
        %3333 = sbr.rel (%p3331) target = $region108
      $region107: #{transformer_encoder_forward.1} parent=5 // pred_region
        %s3334 = ssub.s32 %s24, 2
      $region108: #{transformer_encoder_forward.1} parent=5 // pred_fallthru
        _
    $region6: #{transformer_encoder_forward.1} parent=1 // loop_footer
      %s28 = sadd.s32 1, %s24
    $region7: #{transformer_encoder_forward.1} parent=1 // loop_footer_branch
      %23 = sbr.rel target = $region3
    $region8: #{transformer_encoder_forward.1} parent=1 // loop_exit
      _
    %3335 = vsyncpa [#allocation4], 1
    %s3336 = scalar_lea.sflag [#allocation4], 1
    %3337 = vsyncpa %s3336, 1

</llo_original>
